<compile_context>
chip_gen: v6e
topology: v6e:2x2x1
jax: 0.10.0
libtpu: 0.0.40
codegen_flags: <defaults>
</compile_context>

<pallas_src>
import functools
import math

import numpy as np
import jax
import jax.numpy as jnp
from jax.experimental import pallas as pl
from jax.experimental.pallas import tpu as pltpu

GRU_LEN = 60
INPUT_DIM_CAPSULE = 2 * GRU_LEN   # 120 (module default: gru_len * 2)
NUM_CAPSULE = 5
DIM_CAPSULE = 5
ROUTINGS = 4
T_EPSILON = 1e-7
KD = NUM_CAPSULE * DIM_CAPSULE    # 25

# Constant "group expand" (5,25) / "group pool" (25,5) matrices: column k of the
# flattened u_hat belongs to output capsule k // DIM_CAPSULE.
_EXPAND_NP = np.kron(np.eye(NUM_CAPSULE, dtype=np.float32),
                     np.ones((1, DIM_CAPSULE), dtype=np.float32))   # (5, 25)
_POOL_NP = np.ascontiguousarray(_EXPAND_NP.T)                        # (25, 5)


def _round_up(x, m):
    return ((x + m - 1) // m) * m


# --------------------------------------------------------------------------
# Kernel: one batch tile (bt samples) per grid step.
# --------------------------------------------------------------------------
def caps_kernel(x_ref, w_ref, expand_ref, pool_ref, out_ref, *, compute_dtype):
    # x_ref: (bt, Lp, D)   w_ref: (D, 25)   expand_ref: (5, 25)   pool_ref: (25, 5)
    # out_ref: (bt, 25) f32
    bt, lp, d = x_ref.shape

    expand = expand_ref[...]                        # (5, 25) f32
    pool = pool_ref[...]                            # (25, 5) f32

    # ---- u_hat = x @ W : one fused MXU matmul over all (sample, l) rows -------
    x2 = x_ref[...].astype(compute_dtype).reshape(bt * lp, d)
    u2 = jnp.dot(x2, w_ref[...].astype(compute_dtype),
                 preferred_element_type=jnp.float32)          # (rows, 25) f32
    u3f = u2.reshape(bt, lp, KD)                              # (bt, Lp, 25) f32
    u3 = u3f.astype(compute_dtype)                            # MXU operand for routing

    def squash(s):                                            # s: (bt, 25) f32
        norms = jnp.dot(s * s, pool, preferred_element_type=jnp.float32)   # (bt, 5)
        scale = jax.lax.rsqrt(norms + T_EPSILON)
        return s * jnp.dot(scale, expand, preferred_element_type=jnp.float32)

    # ---- routing iteration 0: b == 0  =>  c == 1/NUM_CAPSULE everywhere -------
    s = squash(jnp.sum(u3f, axis=1) * (1.0 / NUM_CAPSULE))    # (bt, 25) f32

    # ---- remaining ROUTINGS-1 iterations (static unroll) ----------------------
    for _ in range(ROUTINGS - 1):
        # b[b,n,l] = sum_d outputs[b,n,d] * u_hat[b,n,l,d]   -> batched MXU dot
        s_masked = (s[:, None, :] * expand[None, :, :]).astype(compute_dtype)  # (bt,5,25)
        b = jnp.einsum('bnk,blk->bnl', s_masked, u3,
                       preferred_element_type=jnp.float32)    # (bt, 5, Lp) f32
        # Softmax over the output-capsule axis. The max-subtraction is skipped
        # (logits bounded: outputs are squashed to ~unit norm -> deliberate, tiny
        # numerical deviation) and the divide uses the EUP approximate reciprocal.
        e = jnp.exp(b)
        c = e * pl.reciprocal(jnp.sum(e, axis=1, keepdims=True), approx=True)
        # outputs[b,n,d] = sum_l c[b,n,l] * u_hat[b,n,l,d]    -> batched MXU dot
        sp = jnp.einsum('bnl,blk->bnk', c.astype(compute_dtype), u3,
                        preferred_element_type=jnp.float32)   # (bt, 5, 25) f32
        s = squash(jnp.sum(sp * expand[None, :, :], axis=1))  # (bt, 25) f32

    out_ref[...] = s


# --------------------------------------------------------------------------
# VMEM sizing (lane/sublane padding accounted for).
# --------------------------------------------------------------------------
def _estimate_vmem_bytes(bt, lp, d, x_bytes):
    d_lane = _round_up(d, 128)
    kd_lane = _round_up(KD, 128)           # 25 -> 128 lanes
    lp_lane = _round_up(lp, 128)
    est = 2 * bt * lp * d_lane * x_bytes            # double-buffered x tiles
    est += 2 * _round_up(d, 8) * kd_lane * 4        # double-buffered W
    est += 2 * _round_up(bt, 8) * kd_lane * 4       # double-buffered output
    est += bt * lp * d_lane * 2                     # bf16 cast of the x tile
    est += bt * lp * kd_lane * (4 + 2)              # u_hat f32 + bf16 copy
    est += 3 * bt * 8 * lp_lane * 4                 # b / exp(b) / c  (N=5 -> 8 sublanes)
    est += 8 * _round_up(bt, 8) * kd_lane * 4       # small per-sample temporaries
    return est


def _vmem_budget_bytes():
    """Physical per-core VMEM minus headroom for compiler internal scratch."""
    phys = 64 * 1024 * 1024                          # conservative default (v7x per-TC)
    try:
        phys = int(getattr(pltpu.get_tpu_info(), "vmem_capacity_bytes", phys))
    except Exception:
        pass
    # ~48 MiB on v7x, ~112 MiB on v5e/v6e.
    return max(32 * 1024 * 1024, phys - 16 * 1024 * 1024)


# --------------------------------------------------------------------------
# Wrapper: batch-tiled grid, padding glue, VMEM-aware tile selection.
# --------------------------------------------------------------------------
def caps_layer_forward(x, w, *, batch_tile=64, compute_dtype=jnp.bfloat16):
    """x: (B, L, input_dim_capsule); w: (1, D, NUM*DIM) or (D, NUM*DIM) -> (B, NUM, DIM)."""
    if w.ndim == 3:                        # PyTorch stores the shared W as (1, D, NUM*DIM)
        w = w[0]
    B, L, D = x.shape
    assert w.shape == (D, KD)

    Lp = _round_up(L, 16)                  # tile-aligned leading-dim reshapes (f32 & bf16)
    x_bytes = jnp.dtype(x.dtype).itemsize

    budget = _vmem_budget_bytes()
    bt = _round_up(max(8, min(batch_tile, B)), 8)
    while bt > 8 and _estimate_vmem_bytes(bt, Lp, D, x_bytes) > budget:
        bt -= 8
    # Guarantee >= 2 grid steps whenever B allows so dimension_semantics=("parallel",)
    # can shard the batch across v7x's two TensorCores (harmless on v5e/v6e).
    if bt >= B and B > 8:
        bt = _round_up((B + 1) // 2, 8)
    Bp = _round_up(B, bt)

    # Pad only when needed (skips a full extra HBM pass over x in the aligned case).
    # Zero padding is neutral: padded rows contribute 0 to every routing sum.
    if (Bp, Lp) != (B, L):
        x = jnp.pad(x, ((0, Bp - B), (0, Lp - L), (0, 0)))

    est = _estimate_vmem_bytes(bt, Lp, D, x_bytes)
    vmem_limit = int(min(budget, max(32 * 1024 * 1024, int(est * 1.4))))

    kernel = functools.partial(caps_kernel, compute_dtype=compute_dtype)
    out_flat = pl.pallas_call(
        kernel,
        out_shape=jax.ShapeDtypeStruct((Bp, KD), jnp.float32),
        grid=(Bp // bt,),
        in_specs=[
            pl.BlockSpec((bt, Lp, D), lambda i: (i, 0, 0)),
            pl.BlockSpec((D, KD), lambda i: (0, 0)),
            pl.BlockSpec((NUM_CAPSULE, KD), lambda i: (0, 0)),
            pl.BlockSpec((KD, NUM_CAPSULE), lambda i: (0, 0)),
        ],
        out_specs=pl.BlockSpec((bt, KD), lambda i: (i, 0)),
        compiler_params=pltpu.CompilerParams(
            dimension_semantics=("parallel",),
            vmem_limit_bytes=vmem_limit,
        ),
    )(x, w, jnp.asarray(_EXPAND_NP), jnp.asarray(_POOL_NP))

    return out_flat[:B].reshape(B, NUM_CAPSULE, DIM_CAPSULE)


# --------------------------------------------------------------------------
# Pure-JAX reference (direct transcription of the PyTorch forward, f32).
# --------------------------------------------------------------------------
def caps_layer_reference(x, w):
    if w.ndim == 3:
        w = w[0]
    B, L, _ = x.shape
    u = jnp.einsum("bld,dk->blk", x, w)
    u = u.reshape(B, L, NUM_CAPSULE, DIM_CAPSULE)
    u = jnp.transpose(u, (0, 2, 1, 3))                  # (B, NUM, L, DIM)
    b = jnp.zeros((B, NUM_CAPSULE, L), jnp.float32)
    outputs = None
    for i in range(ROUTINGS):
        c = jax.nn.softmax(b, axis=1)                   # softmax over output capsules
        outputs = jnp.einsum("bij,bijk->bik", c, u)
        outputs = outputs / jnp.sqrt(
            jnp.sum(outputs * outputs, axis=-1, keepdims=True) + T_EPSILON)
        if i < ROUTINGS - 1:
            b = jnp.einsum("bik,bijk->bij", outputs, u)
    return outputs


if __name__ == "__main__":
    key = jax.random.PRNGKey(0)
    kx, kw = jax.random.split(key)

    B, L = 2, 8                       # small demo shapes
    D = INPUT_DIM_CAPSULE             # 120, fixed by the module (gru_len * 2)
    x = jax.random.normal(kx, (B, L, D), dtype=jnp.float32)
    # xavier_normal_ init of W (1, D, NUM*DIM), matching the PyTorch module
    std = math.sqrt(2.0 / (D + KD))
    w = (std * jax.random.normal(kw, (1, D, KD))).astype(jnp.float32)

    run = jax.jit(caps_layer_forward)
    out = jax.block_until_ready(run(x, w))

    assert out.shape == (B, NUM_CAPSULE, DIM_CAPSULE) and out.dtype == jnp.float32
    assert bool(jnp.all(jnp.isfinite(out)))
    ref = caps_layer_reference(x, w)
    # loose tolerance: kernel uses bf16 matmul operands + approx-reciprocal softmax
    assert float(jnp.max(jnp.abs(out - ref))) < 1e-1

    print("KERNEL_OK")
</pallas_src>

<mosaic_0001>
module attributes {stable_mosaic.version = 11 : i64} {
  func.func @caps_kernel(%arg0: i32, %arg1: memref<8x16x120xf32, #tpu.memory_space<vmem>>, %arg2: memref<120x25xf32, #tpu.memory_space<vmem>>, %arg3: memref<5x25xf32, #tpu.memory_space<vmem>>, %arg4: memref<25x5xf32, #tpu.memory_space<vmem>>, %arg5: memref<8x25xf32, #tpu.memory_space<vmem>>) attributes {dimension_semantics = [#tpu.dimension_semantics<parallel>], iteration_bounds = array<i64: 1>, scalar_prefetch = 0 : i64, scratch_operands = 0 : i64, tpu.core_type = #tpu.core_type<tc>, window_params = [{transform_indices = @transform_0, window_bounds = array<i64: 8, 16, 120>}, {pipeline_mode = #tpu.pipeline_mode<synchronous>, transform_indices = @transform_1, window_bounds = array<i64: 120, 25>}, {pipeline_mode = #tpu.pipeline_mode<synchronous>, transform_indices = @transform_2, window_bounds = array<i64: 5, 25>}, {pipeline_mode = #tpu.pipeline_mode<synchronous>, transform_indices = @transform_3, window_bounds = array<i64: 25, 5>}, {transform_indices = @transform_4, window_bounds = array<i64: 8, 25>}]} {
    %c0 = arith.constant 0 : index
    %c0_0 = arith.constant 0 : index
    %0 = vector.load %arg3[%c0, %c0_0] : memref<5x25xf32, #tpu.memory_space<vmem>>, vector<5x25xf32>
    %c0_1 = arith.constant 0 : index
    %c0_2 = arith.constant 0 : index
    %1 = vector.load %arg4[%c0_1, %c0_2] : memref<25x5xf32, #tpu.memory_space<vmem>>, vector<25x5xf32>
    %c0_3 = arith.constant 0 : index
    %c0_4 = arith.constant 0 : index
    %c0_5 = arith.constant 0 : index
    %2 = vector.load %arg1[%c0_3, %c0_4, %c0_5] : memref<8x16x120xf32, #tpu.memory_space<vmem>>, vector<8x16x120xf32>
    %3 = arith.truncf %2 : vector<8x16x120xf32> to vector<8x16x120xbf16>
    %4 = vector.shape_cast %3 : vector<8x16x120xbf16> to vector<128x120xbf16>
    %c0_6 = arith.constant 0 : index
    %c0_7 = arith.constant 0 : index
    %5 = vector.load %arg2[%c0_6, %c0_7] : memref<120x25xf32, #tpu.memory_space<vmem>>, vector<120x25xf32>
    %6 = arith.truncf %5 : vector<120x25xf32> to vector<120x25xbf16>
    %cst = arith.constant dense<0.000000e+00> : vector<128x25xf32>
    %7 = tpu.matmul %4, %6, %cst {dimension_numbers = #tpu.dot_dimension_numbers<[1], [0], [0], [1], [0, 0, 1, 1], [], []>} : vector<128x120xbf16>, vector<120x25xbf16>, vector<128x25xf32> -> vector<128x25xf32>
    %8 = vector.shape_cast %7 : vector<128x25xf32> to vector<8x16x25xf32>
    %9 = arith.truncf %8 : vector<8x16x25xf32> to vector<8x16x25xbf16>
    %cst_8 = arith.constant dense<0.000000e+00> : vector<8x25xf32>
    %10 = vector.multi_reduction <add>, %8, %cst_8 [1] : vector<8x16x25xf32> to vector<8x25xf32>
    %cst_9 = arith.constant 2.000000e-01 : f32
    %11 = vector.broadcast %cst_9 : f32 to vector<8x25xf32>
    %12 = arith.mulf %10, %11 : vector<8x25xf32>
    %13 = arith.mulf %12, %12 : vector<8x25xf32>
    %cst_10 = arith.constant dense<0.000000e+00> : vector<8x5xf32>
    %14 = tpu.matmul %13, %1, %cst_10 {dimension_numbers = #tpu.dot_dimension_numbers<[1], [0], [0], [1], [0, 0, 1, 1], [], []>} : vector<8x25xf32>, vector<25x5xf32>, vector<8x5xf32> -> vector<8x5xf32>
    %cst_11 = arith.constant 1.000000e-07 : f32
    %15 = vector.broadcast %cst_11 : f32 to vector<8x5xf32>
    %16 = arith.addf %14, %15 : vector<8x5xf32>
    %17 = math.rsqrt %16 : vector<8x5xf32>
    %cst_12 = arith.constant dense<0.000000e+00> : vector<8x25xf32>
    %18 = tpu.matmul %17, %0, %cst_12 {dimension_numbers = #tpu.dot_dimension_numbers<[1], [0], [0], [1], [0, 0, 1, 1], [], []>} : vector<8x5xf32>, vector<5x25xf32>, vector<8x25xf32> -> vector<8x25xf32>
    %19 = arith.mulf %12, %18 : vector<8x25xf32>
    %20 = vector.shape_cast %19 : vector<8x25xf32> to vector<8x1x25xf32>
    %21 = vector.shape_cast %0 : vector<5x25xf32> to vector<1x5x25xf32>
    %22 = vector.broadcast %20 : vector<8x1x25xf32> to vector<8x5x25xf32>
    %23 = vector.broadcast %21 : vector<1x5x25xf32> to vector<8x5x25xf32>
    %24 = arith.mulf %22, %23 : vector<8x5x25xf32>
    %25 = arith.truncf %24 : vector<8x5x25xf32> to vector<8x5x25xbf16>
    "tpu.trace_start"() <{level = 10 : i32, message = "bnk,blk->bnl"}> : () -> ()
    %cst_13 = arith.constant dense<0.000000e+00> : vector<8x5x16xf32>
    %26 = tpu.matmul %25, %9, %cst_13 {dimension_numbers = #tpu.dot_dimension_numbers<[2], [2], [1], [1], [0, 0, 0, 1, 1, 1], [0], [0]>} : vector<8x5x25xbf16>, vector<8x16x25xbf16>, vector<8x5x16xf32> -> vector<8x5x16xf32>
    "tpu.trace_stop"() : () -> ()
    %27 = math.exp %26 : vector<8x5x16xf32>
    %cst_14 = arith.constant dense<0.000000e+00> : vector<8x16xf32>
    %28 = vector.multi_reduction <add>, %27, %cst_14 [1] : vector<8x5x16xf32> to vector<8x16xf32>
    %29 = vector.shape_cast %28 : vector<8x16xf32> to vector<8x1x16xf32>
    %30 = tpu.reciprocal %29 {approx = true} : vector<8x1x16xf32> -> vector<8x1x16xf32>
    %31 = vector.broadcast %30 : vector<8x1x16xf32> to vector<8x5x16xf32>
    %32 = arith.mulf %27, %31 : vector<8x5x16xf32>
    %33 = arith.truncf %32 : vector<8x5x16xf32> to vector<8x5x16xbf16>
    "tpu.trace_start"() <{level = 10 : i32, message = "bnl,blk->bnk"}> : () -> ()
    %cst_15 = arith.constant dense<0.000000e+00> : vector<8x5x25xf32>
    %34 = tpu.matmul %33, %9, %cst_15 {dimension_numbers = #tpu.dot_dimension_numbers<[2], [1], [1], [2], [0, 0, 0, 1, 1, 2], [0], [0]>} : vector<8x5x16xbf16>, vector<8x16x25xbf16>, vector<8x5x25xf32> -> vector<8x5x25xf32>
    "tpu.trace_stop"() : () -> ()
    %35 = vector.shape_cast %0 : vector<5x25xf32> to vector<1x5x25xf32>
    %36 = vector.broadcast %35 : vector<1x5x25xf32> to vector<8x5x25xf32>
    %37 = arith.mulf %34, %36 : vector<8x5x25xf32>
    %cst_16 = arith.constant dense<0.000000e+00> : vector<8x25xf32>
    %38 = vector.multi_reduction <add>, %37, %cst_16 [1] : vector<8x5x25xf32> to vector<8x25xf32>
    %39 = arith.mulf %38, %38 : vector<8x25xf32>
    %cst_17 = arith.constant dense<0.000000e+00> : vector<8x5xf32>
    %40 = tpu.matmul %39, %1, %cst_17 {dimension_numbers = #tpu.dot_dimension_numbers<[1], [0], [0], [1], [0, 0, 1, 1], [], []>} : vector<8x25xf32>, vector<25x5xf32>, vector<8x5xf32> -> vector<8x5xf32>
    %cst_18 = arith.constant 1.000000e-07 : f32
    %41 = vector.broadcast %cst_18 : f32 to vector<8x5xf32>
    %42 = arith.addf %40, %41 : vector<8x5xf32>
    %43 = math.rsqrt %42 : vector<8x5xf32>
    %cst_19 = arith.constant dense<0.000000e+00> : vector<8x25xf32>
    %44 = tpu.matmul %43, %0, %cst_19 {dimension_numbers = #tpu.dot_dimension_numbers<[1], [0], [0], [1], [0, 0, 1, 1], [], []>} : vector<8x5xf32>, vector<5x25xf32>, vector<8x25xf32> -> vector<8x25xf32>
    %45 = arith.mulf %38, %44 : vector<8x25xf32>
    %46 = vector.shape_cast %45 : vector<8x25xf32> to vector<8x1x25xf32>
    %47 = vector.shape_cast %0 : vector<5x25xf32> to vector<1x5x25xf32>
    %48 = vector.broadcast %46 : vector<8x1x25xf32> to vector<8x5x25xf32>
    %49 = vector.broadcast %47 : vector<1x5x25xf32> to vector<8x5x25xf32>
    %50 = arith.mulf %48, %49 : vector<8x5x25xf32>
    %51 = arith.truncf %50 : vector<8x5x25xf32> to vector<8x5x25xbf16>
    "tpu.trace_start"() <{level = 10 : i32, message = "bnk,blk->bnl"}> : () -> ()
    %cst_20 = arith.constant dense<0.000000e+00> : vector<8x5x16xf32>
    %52 = tpu.matmul %51, %9, %cst_20 {dimension_numbers = #tpu.dot_dimension_numbers<[2], [2], [1], [1], [0, 0, 0, 1, 1, 1], [0], [0]>} : vector<8x5x25xbf16>, vector<8x16x25xbf16>, vector<8x5x16xf32> -> vector<8x5x16xf32>
    "tpu.trace_stop"() : () -> ()
    %53 = math.exp %52 : vector<8x5x16xf32>
    %cst_21 = arith.constant dense<0.000000e+00> : vector<8x16xf32>
    %54 = vector.multi_reduction <add>, %53, %cst_21 [1] : vector<8x5x16xf32> to vector<8x16xf32>
    %55 = vector.shape_cast %54 : vector<8x16xf32> to vector<8x1x16xf32>
    %56 = tpu.reciprocal %55 {approx = true} : vector<8x1x16xf32> -> vector<8x1x16xf32>
    %57 = vector.broadcast %56 : vector<8x1x16xf32> to vector<8x5x16xf32>
    %58 = arith.mulf %53, %57 : vector<8x5x16xf32>
    %59 = arith.truncf %58 : vector<8x5x16xf32> to vector<8x5x16xbf16>
    "tpu.trace_start"() <{level = 10 : i32, message = "bnl,blk->bnk"}> : () -> ()
    %cst_22 = arith.constant dense<0.000000e+00> : vector<8x5x25xf32>
    %60 = tpu.matmul %59, %9, %cst_22 {dimension_numbers = #tpu.dot_dimension_numbers<[2], [1], [1], [2], [0, 0, 0, 1, 1, 2], [0], [0]>} : vector<8x5x16xbf16>, vector<8x16x25xbf16>, vector<8x5x25xf32> -> vector<8x5x25xf32>
    "tpu.trace_stop"() : () -> ()
    %61 = vector.shape_cast %0 : vector<5x25xf32> to vector<1x5x25xf32>
    %62 = vector.broadcast %61 : vector<1x5x25xf32> to vector<8x5x25xf32>
    %63 = arith.mulf %60, %62 : vector<8x5x25xf32>
    %cst_23 = arith.constant dense<0.000000e+00> : vector<8x25xf32>
    %64 = vector.multi_reduction <add>, %63, %cst_23 [1] : vector<8x5x25xf32> to vector<8x25xf32>
    %65 = arith.mulf %64, %64 : vector<8x25xf32>
    %cst_24 = arith.constant dense<0.000000e+00> : vector<8x5xf32>
    %66 = tpu.matmul %65, %1, %cst_24 {dimension_numbers = #tpu.dot_dimension_numbers<[1], [0], [0], [1], [0, 0, 1, 1], [], []>} : vector<8x25xf32>, vector<25x5xf32>, vector<8x5xf32> -> vector<8x5xf32>
    %cst_25 = arith.constant 1.000000e-07 : f32
    %67 = vector.broadcast %cst_25 : f32 to vector<8x5xf32>
    %68 = arith.addf %66, %67 : vector<8x5xf32>
    %69 = math.rsqrt %68 : vector<8x5xf32>
    %cst_26 = arith.constant dense<0.000000e+00> : vector<8x25xf32>
    %70 = tpu.matmul %69, %0, %cst_26 {dimension_numbers = #tpu.dot_dimension_numbers<[1], [0], [0], [1], [0, 0, 1, 1], [], []>} : vector<8x5xf32>, vector<5x25xf32>, vector<8x25xf32> -> vector<8x25xf32>
    %71 = arith.mulf %64, %70 : vector<8x25xf32>
    %72 = vector.shape_cast %71 : vector<8x25xf32> to vector<8x1x25xf32>
    %73 = vector.shape_cast %0 : vector<5x25xf32> to vector<1x5x25xf32>
    %74 = vector.broadcast %72 : vector<8x1x25xf32> to vector<8x5x25xf32>
    %75 = vector.broadcast %73 : vector<1x5x25xf32> to vector<8x5x25xf32>
    %76 = arith.mulf %74, %75 : vector<8x5x25xf32>
    %77 = arith.truncf %76 : vector<8x5x25xf32> to vector<8x5x25xbf16>
    "tpu.trace_start"() <{level = 10 : i32, message = "bnk,blk->bnl"}> : () -> ()
    %cst_27 = arith.constant dense<0.000000e+00> : vector<8x5x16xf32>
    %78 = tpu.matmul %77, %9, %cst_27 {dimension_numbers = #tpu.dot_dimension_numbers<[2], [2], [1], [1], [0, 0, 0, 1, 1, 1], [0], [0]>} : vector<8x5x25xbf16>, vector<8x16x25xbf16>, vector<8x5x16xf32> -> vector<8x5x16xf32>
    "tpu.trace_stop"() : () -> ()
    %79 = math.exp %78 : vector<8x5x16xf32>
    %cst_28 = arith.constant dense<0.000000e+00> : vector<8x16xf32>
    %80 = vector.multi_reduction <add>, %79, %cst_28 [1] : vector<8x5x16xf32> to vector<8x16xf32>
    %81 = vector.shape_cast %80 : vector<8x16xf32> to vector<8x1x16xf32>
    %82 = tpu.reciprocal %81 {approx = true} : vector<8x1x16xf32> -> vector<8x1x16xf32>
    %83 = vector.broadcast %82 : vector<8x1x16xf32> to vector<8x5x16xf32>
    %84 = arith.mulf %79, %83 : vector<8x5x16xf32>
    %85 = arith.truncf %84 : vector<8x5x16xf32> to vector<8x5x16xbf16>
    "tpu.trace_start"() <{level = 10 : i32, message = "bnl,blk->bnk"}> : () -> ()
    %cst_29 = arith.constant dense<0.000000e+00> : vector<8x5x25xf32>
    %86 = tpu.matmul %85, %9, %cst_29 {dimension_numbers = #tpu.dot_dimension_numbers<[2], [1], [1], [2], [0, 0, 0, 1, 1, 2], [0], [0]>} : vector<8x5x16xbf16>, vector<8x16x25xbf16>, vector<8x5x25xf32> -> vector<8x5x25xf32>
    "tpu.trace_stop"() : () -> ()
    %87 = vector.shape_cast %0 : vector<5x25xf32> to vector<1x5x25xf32>
    %88 = vector.broadcast %87 : vector<1x5x25xf32> to vector<8x5x25xf32>
    %89 = arith.mulf %86, %88 : vector<8x5x25xf32>
    %cst_30 = arith.constant dense<0.000000e+00> : vector<8x25xf32>
    %90 = vector.multi_reduction <add>, %89, %cst_30 [1] : vector<8x5x25xf32> to vector<8x25xf32>
    %91 = arith.mulf %90, %90 : vector<8x25xf32>
    %cst_31 = arith.constant dense<0.000000e+00> : vector<8x5xf32>
    %92 = tpu.matmul %91, %1, %cst_31 {dimension_numbers = #tpu.dot_dimension_numbers<[1], [0], [0], [1], [0, 0, 1, 1], [], []>} : vector<8x25xf32>, vector<25x5xf32>, vector<8x5xf32> -> vector<8x5xf32>
    %cst_32 = arith.constant 1.000000e-07 : f32
    %93 = vector.broadcast %cst_32 : f32 to vector<8x5xf32>
    %94 = arith.addf %92, %93 : vector<8x5xf32>
    %95 = math.rsqrt %94 : vector<8x5xf32>
    %cst_33 = arith.constant dense<0.000000e+00> : vector<8x25xf32>
    %96 = tpu.matmul %95, %0, %cst_33 {dimension_numbers = #tpu.dot_dimension_numbers<[1], [0], [0], [1], [0, 0, 1, 1], [], []>} : vector<8x5xf32>, vector<5x25xf32>, vector<8x25xf32> -> vector<8x25xf32>
    %97 = arith.mulf %90, %96 : vector<8x25xf32>
    %c0_34 = arith.constant 0 : index
    %c0_35 = arith.constant 0 : index
    %98 = vector.load %arg5[%c0_34, %c0_35] : memref<8x25xf32, #tpu.memory_space<vmem>>, vector<8x25xf32>
    tpu.vector_store %arg5[%c0_34, %c0_35], %97 {strides = array<i32>} : memref<8x25xf32, #tpu.memory_space<vmem>>, vector<8x25xf32>,
    return
  }
  func.func @transform_0(%arg0: i32) -> (i32, i32, i32) {
    %c0_i32 = arith.constant 0 : i32
    %c0_i32_0 = arith.constant 0 : i32
    %c0_i32_1 = arith.constant 0 : i32
    return %arg0, %c0_i32, %c0_i32_0 : i32, i32, i32
  }
  func.func @transform_1(%arg0: i32) -> (i32, i32) {
    %c0_i32 = arith.constant 0 : i32
    %c0_i32_0 = arith.constant 0 : i32
    %c0_i32_1 = arith.constant 0 : i32
    return %c0_i32, %c0_i32_0 : i32, i32
  }
  func.func @transform_2(%arg0: i32) -> (i32, i32) {
    %c0_i32 = arith.constant 0 : i32
    %c0_i32_0 = arith.constant 0 : i32
    %c0_i32_1 = arith.constant 0 : i32
    return %c0_i32, %c0_i32_0 : i32, i32
  }
  func.func @transform_3(%arg0: i32) -> (i32, i32) {
    %c0_i32 = arith.constant 0 : i32
    %c0_i32_0 = arith.constant 0 : i32
    %c0_i32_1 = arith.constant 0 : i32
    return %c0_i32, %c0_i32_0 : i32, i32
  }
  func.func @transform_4(%arg0: i32) -> (i32, i32) {
    %c0_i32 = arith.constant 0 : i32
    %c0_i32_0 = arith.constant 0 : i32
    return %arg0, %c0_i32 : i32, i32
  }
}

</mosaic_0001>

<llo_original>
// kernel: caps_layer_forward.1
$region0: #{caps_layer_forward.1}
  #allocation0 [shape = 'u32[]', space=smem, size = 0x4, offset = 0x4, fixed_abs, tag = 'smem constant byte address 0x4 - core index']
  #allocation1 [shape = 'u32[144,128]{1,0:T(1,128)}', space=vmem, size = 0x12000, scoped, tag = 'internal scratch']
  %s0 = inlined_call_operand.vmem [shape: f32[8,16,120], index: 0, kind: input, shape index: {}]
  %s1 = inlined_call_operand.vmem [shape: f32[120,25], index: 1, kind: input, shape index: {}]
  %s2 = inlined_call_operand.vmem [shape: f32[5,25], index: 2, kind: input, shape index: {}]
  %s3 = inlined_call_operand.vmem [shape: f32[25,5], index: 3, kind: input, shape index: {}]
  %s4 = inlined_call_operand.vmem [shape: f32[8,25], index: 4, kind: output, shape index: {}]
  %s5 = sld [smem:[#allocation0]]
  $region26: #{caps_layer_forward.1} parent=0
    _
  %s7 = ssub.s32 1, %s5
  %s8 = scalar_select 0, %s7, %s5
  // Predicated region
  $region2: #{caps_layer_forward.1} parent=0 // pred_check
    _
  $region3: #{caps_layer_forward.1} parent=0 // pred_check_branch
    %10 = sbr.rel (0) target = $region5
  $region4: #{caps_layer_forward.1} parent=0 // pred_region
    _
  $region5: #{caps_layer_forward.1} parent=0 // pred_fallthru
    _
  // Predicated region
  $region6: #{caps_layer_forward.1} parent=0 // pred_check
    _
  $region7: #{caps_layer_forward.1} parent=0 // pred_check_branch
    %12 = sbr.rel (0) target = $region9
  $region8: #{caps_layer_forward.1} parent=0 // pred_region
    _
  $region9: #{caps_layer_forward.1} parent=0 // pred_fallthru
    _
  // Predicated region
  $region10: #{caps_layer_forward.1} parent=0 // pred_check
    _
  $region11: #{caps_layer_forward.1} parent=0 // pred_check_branch
    %14 = sbr.rel (0) target = $region13
  $region12: #{caps_layer_forward.1} parent=0 // pred_region
    _
  $region13: #{caps_layer_forward.1} parent=0 // pred_fallthru
    _
  // Predicated region
  $region14: #{caps_layer_forward.1} parent=0 // pred_check
    _
  $region15: #{caps_layer_forward.1} parent=0 // pred_check_branch
    %16 = sbr.rel (0) target = $region17
  $region16: #{caps_layer_forward.1} parent=0 // pred_region
    _
  $region17: #{caps_layer_forward.1} parent=0 // pred_fallthru
    _
  %v18 = vld [vmem:[%s2] sm:$0x1f]
  %v19 = vld [vmem:[%s3] sm:$0xff]
  %v20 = vld [vmem:[%s3 + $0x8] sm:$0xff]
  %v21 = vld [vmem:[%s3 + $0x10] sm:$0xff]
  %v22 = vld [vmem:[%s3 + $0x18] sm:$0x1]
  %v23 = vld [vmem:[%s0] sm:$0xff]
  %v24 = vld [vmem:[%s0 + $0x8] sm:$0xff]
  %v25 = vld [vmem:[%s0 + $0x10] sm:$0xff]
  %v26 = vld [vmem:[%s0 + $0x18] sm:$0xff]
  %v27 = vld [vmem:[%s0 + $0x20] sm:$0xff]
  %v28 = vld [vmem:[%s0 + $0x28] sm:$0xff]
  %v29 = vld [vmem:[%s0 + $0x30] sm:$0xff]
  %v30 = vld [vmem:[%s0 + $0x38] sm:$0xff]
  %v31 = vld [vmem:[%s0 + $0x40] sm:$0xff]
  %v32 = vld [vmem:[%s0 + $0x48] sm:$0xff]
  %v33 = vld [vmem:[%s0 + $0x50] sm:$0xff]
  %v34 = vld [vmem:[%s0 + $0x58] sm:$0xff]
  %v35 = vld [vmem:[%s0 + $0x60] sm:$0xff]
  %v36 = vld [vmem:[%s0 + $0x68] sm:$0xff]
  %v37 = vld [vmem:[%s0 + $0x70] sm:$0xff]
  %v38 = vld [vmem:[%s0 + $0x78] sm:$0xff]
  %v39 = vpack.c.bf16 %v24, %v23
  %v40 = vpack.c.bf16 %v26, %v25
  %v41 = vpack.c.bf16 %v28, %v27
  %v42 = vpack.c.bf16 %v30, %v29
  %v43 = vpack.c.bf16 %v32, %v31
  %v44 = vpack.c.bf16 %v34, %v33
  %v45 = vpack.c.bf16 %v36, %v35
  %v46 = vpack.c.bf16 %v38, %v37
  %v47 = vld [vmem:[%s1] sm:$0xff]
  %v48 = vld [vmem:[%s1 + $0x8] sm:$0xff]
  %v49 = vld [vmem:[%s1 + $0x10] sm:$0xff]
  %v50 = vld [vmem:[%s1 + $0x18] sm:$0xff]
  %v51 = vld [vmem:[%s1 + $0x20] sm:$0xff]
  %v52 = vld [vmem:[%s1 + $0x28] sm:$0xff]
  %v53 = vld [vmem:[%s1 + $0x30] sm:$0xff]
  %v54 = vld [vmem:[%s1 + $0x38] sm:$0xff]
  %v55 = vld [vmem:[%s1 + $0x40] sm:$0xff]
  %v56 = vld [vmem:[%s1 + $0x48] sm:$0xff]
  %v57 = vld [vmem:[%s1 + $0x50] sm:$0xff]
  %v58 = vld [vmem:[%s1 + $0x58] sm:$0xff]
  %v59 = vld [vmem:[%s1 + $0x60] sm:$0xff]
  %v60 = vld [vmem:[%s1 + $0x68] sm:$0xff]
  %v61 = vld [vmem:[%s1 + $0x70] sm:$0xff]
  %v62 = vpack.c.bf16 %v48, %v47
  %v63 = vpack.c.bf16 %v50, %v49
  %v64 = vpack.c.bf16 %v52, %v51
  %v65 = vpack.c.bf16 %v54, %v53
  %v66 = vpack.c.bf16 %v56, %v55
  %v67 = vpack.c.bf16 %v58, %v57
  %v68 = vpack.c.bf16 %v60, %v59
  %v69 = vpack.c.bf16 %v61, %v61
  %vm70 = vcmask 982016
  %v72 = vsel %vm70, %v39, 0
  %v75 = vsel %vm70, %v40, 0
  %v78 = vsel %vm70, %v41, 0
  %v81 = vsel %vm70, %v42, 0
  %v84 = vsel %vm70, %v43, 0
  %v87 = vsel %vm70, %v44, 0
  %v90 = vsel %vm70, %v45, 0
  %v93 = vsel %vm70, %v46, 0
  %vm95 = vcmask 1043456
  %v97 = vsel %vm95, %v69, 0
  %99 = vmatprep.subr.bf16.mxu0 0
  %100 = vmatpush1.bf16.msra.mxu0 %v97
  %101 = vmatprep.subr.bf16.mxu0 0
  %102 = vmatpush1.bf16.msra.mxu0 %v68
  %103 = vmatprep.subr.bf16.mxu0 0
  %104 = vmatpush1.bf16.msra.mxu0 %v67
  %105 = vmatprep.subr.bf16.mxu0 0
  %106 = vmatpush1.bf16.msra.mxu0 %v66
  %107 = vmatprep.subr.bf16.mxu0 0
  %108 = vmatpush1.bf16.msra.mxu0 %v65
  %109 = vmatprep.subr.bf16.mxu0 0
  %110 = vmatpush1.bf16.msra.mxu0 %v64
  %111 = vmatprep.subr.bf16.mxu0 0
  %112 = vmatpush1.bf16.msra.mxu0 %v63
  %113 = vmatprep.subr.bf16.mxu0 0
  %114 = vmatpush1.bf16.msra.mxu0 %v62
  %115 = vmatprep.subr.bf16.mxu0 0
  %116 = vmatpush2.bf16.msra.mxu0 0
  %117 = vmatprep.subr.bf16.mxu0 0
  %118 = vmatpush2.bf16.msra.mxu0 0
  %119 = vmatprep.subr.bf16.mxu0 0
  %120 = vmatpush2.bf16.msra.mxu0 0
  %121 = vmatprep.subr.bf16.mxu0 0
  %122 = vmatpush2.bf16.msra.mxu0 0
  %123 = vmatprep.subr.bf16.mxu0 0
  %124 = vmatpush2.bf16.msra.mxu0 0
  %125 = vmatprep.subr.bf16.mxu0 0
  %126 = vmatpush2.bf16.msra.mxu0 0
  %127 = vmatprep.subr.bf16.mxu0 0
  %128 = vmatpush2.bf16.msra.mxu0 0
  %129 = vmatprep.subr.bf16.mxu0 0
  %130 = vmatpush2.bf16.msra.mxu0 0
  %131 = vmatprep.mubr.bf16.mxu0 0
  %132 = vmatmul.mubr.bf16.gmra.mxu0 %v72
  %v133 = vpop.f32.mrf.mxu0
  %v134 = vadd.f32 0.0, %v133
  %v135 = vpop.f32.mrf.mxu0
  %v136 = vpop.f32.mrf.mxu0
  %v137 = vadd.f32 0.0, %v136
  %v138 = vpop.f32.mrf.mxu0
  %139 = vmatprep.mubr.bf16.mxu0 0
  %140 = vmatmul.mubr.bf16.gmra.mxu0 %v75
  %v141 = vpop.f32.mrf.mxu0
  %v142 = vadd.f32 0.0, %v141
  %v143 = vpop.f32.mrf.mxu0
  %v144 = vpop.f32.mrf.mxu0
  %v145 = vadd.f32 0.0, %v144
  %v146 = vpop.f32.mrf.mxu0
  %147 = vmatprep.mubr.bf16.mxu0 0
  %148 = vmatmul.mubr.bf16.gmra.mxu0 %v78
  %v149 = vpop.f32.mrf.mxu0
  %v150 = vadd.f32 0.0, %v149
  %v151 = vpop.f32.mrf.mxu0
  %v152 = vpop.f32.mrf.mxu0
  %v153 = vadd.f32 0.0, %v152
  %v154 = vpop.f32.mrf.mxu0
  %155 = vmatprep.mubr.bf16.mxu0 0
  %156 = vmatmul.mubr.bf16.gmra.mxu0 %v81
  %v157 = vpop.f32.mrf.mxu0
  %v158 = vadd.f32 0.0, %v157
  %v159 = vpop.f32.mrf.mxu0
  %v160 = vpop.f32.mrf.mxu0
  %v161 = vadd.f32 0.0, %v160
  %v162 = vpop.f32.mrf.mxu0
  %163 = vmatprep.mubr.bf16.mxu0 0
  %164 = vmatmul.mubr.bf16.gmra.mxu0 %v84
  %v165 = vpop.f32.mrf.mxu0
  %v166 = vadd.f32 0.0, %v165
  %v167 = vpop.f32.mrf.mxu0
  %v168 = vpop.f32.mrf.mxu0
  %v169 = vadd.f32 0.0, %v168
  %v170 = vpop.f32.mrf.mxu0
  %171 = vmatprep.mubr.bf16.mxu0 0
  %172 = vmatmul.mubr.bf16.gmra.mxu0 %v87
  %v173 = vpop.f32.mrf.mxu0
  %v174 = vadd.f32 0.0, %v173
  %v175 = vpop.f32.mrf.mxu0
  %v176 = vpop.f32.mrf.mxu0
  %v177 = vadd.f32 0.0, %v176
  %v178 = vpop.f32.mrf.mxu0
  %179 = vmatprep.mubr.bf16.mxu0 0
  %180 = vmatmul.mubr.bf16.gmra.mxu0 %v90
  %v181 = vpop.f32.mrf.mxu0
  %v182 = vadd.f32 0.0, %v181
  %v183 = vpop.f32.mrf.mxu0
  %v184 = vpop.f32.mrf.mxu0
  %v185 = vadd.f32 0.0, %v184
  %v186 = vpop.f32.mrf.mxu0
  %187 = vmatprep.mubr.bf16.mxu0 0
  %188 = vmatmul.mubr.bf16.gmra.mxu0 %v93
  %v189 = vpop.f32.mrf.mxu0
  %v190 = vadd.f32 0.0, %v189
  %v191 = vpop.f32.mrf.mxu0
  %v192 = vpop.f32.mrf.mxu0
  %v193 = vadd.f32 0.0, %v192
  %v194 = vpop.f32.mrf.mxu0
  %195 = vdwg.mxu0
  %v196 = vpack.c.bf16 %v137, %v134
  %v197 = vpack.c.bf16 %v145, %v142
  %v198 = vpack.c.bf16 %v153, %v150
  %v199 = vpack.c.bf16 %v161, %v158
  %v200 = vpack.c.bf16 %v169, %v166
  %v201 = vpack.c.bf16 %v177, %v174
  %v202 = vpack.c.bf16 %v185, %v182
  %v203 = vpack.c.bf16 %v193, %v190
  %vm204 = vcmask 203776
  %v205 = vsel %vm204, %v134, 0.0
  %v206 = vsel %vm204, %v137, 0.0
  %v207 = vadd.f32 %v205, %v206
  %v208 = vrot.slane %v207, 4
  %v209 = vadd.f32 %v207, %v208
  %v210 = vrot.slane %v209, 2
  %v211 = vadd.f32 %v209, %v210
  %v212 = vrot.slane %v211, 1
  %v213 = vadd.f32 %v211, %v212
  %v214 = vsel %vm204, %v142, 0.0
  %v215 = vsel %vm204, %v145, 0.0
  %v216 = vadd.f32 %v214, %v215
  %v217 = vrot.slane %v216, 4
  %v218 = vadd.f32 %v216, %v217
  %v219 = vrot.slane %v218, 2
  %v220 = vadd.f32 %v218, %v219
  %v221 = vrot.slane %v220, 1
  %v222 = vadd.f32 %v220, %v221
  %v223 = vsel %vm204, %v150, 0.0
  %v224 = vsel %vm204, %v153, 0.0
  %v225 = vadd.f32 %v223, %v224
  %v226 = vrot.slane %v225, 4
  %v227 = vadd.f32 %v225, %v226
  %v228 = vrot.slane %v227, 2
  %v229 = vadd.f32 %v227, %v228
  %v230 = vrot.slane %v229, 1
  %v231 = vadd.f32 %v229, %v230
  %v232 = vsel %vm204, %v158, 0.0
  %v233 = vsel %vm204, %v161, 0.0
  %v234 = vadd.f32 %v232, %v233
  %v235 = vrot.slane %v234, 4
  %v236 = vadd.f32 %v234, %v235
  %v237 = vrot.slane %v236, 2
  %v238 = vadd.f32 %v236, %v237
  %v239 = vrot.slane %v238, 1
  %v240 = vadd.f32 %v238, %v239
  %v241 = vsel %vm204, %v166, 0.0
  %v242 = vsel %vm204, %v169, 0.0
  %v243 = vadd.f32 %v241, %v242
  %v244 = vrot.slane %v243, 4
  %v245 = vadd.f32 %v243, %v244
  %v246 = vrot.slane %v245, 2
  %v247 = vadd.f32 %v245, %v246
  %v248 = vrot.slane %v247, 1
  %v249 = vadd.f32 %v247, %v248
  %v250 = vsel %vm204, %v174, 0.0
  %v251 = vsel %vm204, %v177, 0.0
  %v252 = vadd.f32 %v250, %v251
  %v253 = vrot.slane %v252, 4
  %v254 = vadd.f32 %v252, %v253
  %v255 = vrot.slane %v254, 2
  %v256 = vadd.f32 %v254, %v255
  %v257 = vrot.slane %v256, 1
  %v258 = vadd.f32 %v256, %v257
  %v259 = vsel %vm204, %v182, 0.0
  %v260 = vsel %vm204, %v185, 0.0
  %v261 = vadd.f32 %v259, %v260
  %v262 = vrot.slane %v261, 4
  %v263 = vadd.f32 %v261, %v262
  %v264 = vrot.slane %v263, 2
  %v265 = vadd.f32 %v263, %v264
  %v266 = vrot.slane %v265, 1
  %v267 = vadd.f32 %v265, %v266
  %v268 = vsel %vm204, %v190, 0.0
  %v269 = vsel %vm204, %v193, 0.0
  %v270 = vadd.f32 %v268, %v269
  %v271 = vrot.slane %v270, 4
  %v272 = vadd.f32 %v270, %v271
  %v273 = vrot.slane %v272, 2
  %v274 = vadd.f32 %v272, %v273
  %v275 = vrot.slane %v274, 1
  %v276 = vadd.f32 %v274, %v275
  %v277 = vmul.f32 %v213, 0.2
  %v278 = vmul.f32 %v222, 0.2
  %v279 = vmul.f32 %v231, 0.2
  %v280 = vmul.f32 %v240, 0.2
  %v281 = vmul.f32 %v249, 0.2
  %v282 = vmul.f32 %v258, 0.2
  %v283 = vmul.f32 %v267, 0.2
  %v284 = vmul.f32 %v276, 0.2
  %v285 = vmul.f32 %v277, %v277
  %v286 = vmul.f32 %v278, %v278
  %v287 = vmul.f32 %v279, %v279
  %v288 = vmul.f32 %v280, %v280
  %v289 = vmul.f32 %v281, %v281
  %v290 = vmul.f32 %v282, %v282
  %v291 = vmul.f32 %v283, %v283
  %v292 = vmul.f32 %v284, %v284
  %vm301 = vcmask 1041409
  %v302 = vsel %vm301, %v286, %v285
  %vm303 = vcmask 1042434
  %v304 = vsel %vm303, %v287, %v302
  %vm305 = vcmask 1043459
  %v306 = vsel %vm305, %v288, %v304
  %vm307 = vcmask 1044484
  %v308 = vsel %vm307, %v289, %v306
  %vm309 = vcmask 1045509
  %v310 = vsel %vm309, %v290, %v308
  %vm311 = vcmask 1046534
  %v312 = vsel %vm311, %v291, %v310
  %vm313 = vcmask 1047559
  %v314 = vsel %vm313, %v292, %v312
  %v315 = vsel %vm204, %v314, 0
  %vm317 = vcmask 1040384
  %v319 = vsel %vm317, %v22, 0
  %321 = vmatprep.subr.mxu0 0.0
  %322 = vmatpush1.msra.mxu0 0.0
  %323 = vmatprep.subr.mxu0 0.0
  %324 = vmatpush1.msra.mxu0 0.0
  %325 = vmatprep.subr.mxu0 0.0
  %326 = vmatpush1.msra.mxu0 0.0
  %327 = vmatprep.subr.mxu0 0.0
  %328 = vmatpush1.msra.mxu0 0.0
  %329 = vmatprep.subr.mxu0 0.0
  %330 = vmatpush1.msra.mxu0 0.0
  %331 = vmatprep.subr.mxu0 0.0
  %332 = vmatpush1.msra.mxu0 0.0
  %333 = vmatprep.subr.mxu0 0.0
  %334 = vmatpush1.msra.mxu0 0.0
  %335 = vmatprep.subr.mxu0 0.0
  %336 = vmatpush1.msra.mxu0 0.0
  %337 = vmatprep.subr.mxu0 0.0
  %338 = vmatpush1.msra.mxu0 0.0
  %339 = vmatprep.subr.mxu0 0.0
  %340 = vmatpush1.msra.mxu0 0.0
  %341 = vmatprep.subr.mxu0 0.0
  %342 = vmatpush1.msra.mxu0 0.0
  %343 = vmatprep.subr.mxu0 0.0
  %344 = vmatpush1.msra.mxu0 0.0
  %345 = vmatprep.subr.mxu0 0.0
  %346 = vmatpush1.msra.mxu0 %v319
  %347 = vmatprep.subr.mxu0 0.0
  %348 = vmatpush1.msra.mxu0 %v21
  %349 = vmatprep.subr.mxu0 0.0
  %350 = vmatpush1.msra.mxu0 %v20
  %351 = vmatprep.subr.mxu0 0.0
  %352 = vmatpush1.msra.mxu0 %v19
  %353 = vmatprep.subr.mxu0 0.0
  %354 = vmatpush2.msra.mxu0 0.0
  %355 = vmatprep.subr.mxu0 0.0
  %356 = vmatpush2.msra.mxu0 0.0
  %357 = vmatprep.subr.mxu0 0.0
  %358 = vmatpush2.msra.mxu0 0.0
  %359 = vmatprep.subr.mxu0 0.0
  %360 = vmatpush2.msra.mxu0 0.0
  %361 = vmatprep.subr.mxu0 0.0
  %362 = vmatpush2.msra.mxu0 0.0
  %363 = vmatprep.subr.mxu0 0.0
  %364 = vmatpush2.msra.mxu0 0.0
  %365 = vmatprep.subr.mxu0 0.0
  %366 = vmatpush2.msra.mxu0 0.0
  %367 = vmatprep.subr.mxu0 0.0
  %368 = vmatpush2.msra.mxu0 0.0
  %369 = vmatprep.subr.mxu0 0.0
  %370 = vmatpush2.msra.mxu0 0.0
  %371 = vmatprep.subr.mxu0 0.0
  %372 = vmatpush2.msra.mxu0 0.0
  %373 = vmatprep.subr.mxu0 0.0
  %374 = vmatpush2.msra.mxu0 0.0
  %375 = vmatprep.subr.mxu0 0.0
  %376 = vmatpush2.msra.mxu0 0.0
  %377 = vmatprep.subr.mxu0 0.0
  %378 = vmatpush2.msra.mxu0 0.0
  %379 = vmatprep.subr.mxu0 0.0
  %380 = vmatpush2.msra.mxu0 0.0
  %381 = vmatprep.subr.mxu0 0.0
  %382 = vmatpush2.msra.mxu0 0.0
  %383 = vmatprep.subr.mxu0 0.0
  %384 = vmatpush2.msra.mxu0 0.0
  %385 = vmatprep.mubr.f32.mxu0 0.0
  %386 = vmatmul.mubr.f32.gmra.mxu0 %v315
  %v387 = vpop.f32.mrf.mxu0
  %v388 = vadd.f32 1e-07, %v387
  %v389 = vpop.f32.mrf.mxu0
  %390 = vdwg.mxu0
  %v391 = vrsqrt.pop %v388
  %vm392 = vcmask 39936
  %v394 = vsel %vm392, %v391, 0
  %vm396 = vcmask 1044480
  %v398 = vsel %vm396, %v18, 0
  %400 = vmatprep.subr.mxu0 0.0
  %401 = vmatpush1.msra.mxu0 0.0
  %402 = vmatprep.subr.mxu0 0.0
  %403 = vmatpush1.msra.mxu0 0.0
  %404 = vmatprep.subr.mxu0 0.0
  %405 = vmatpush1.msra.mxu0 0.0
  %406 = vmatprep.subr.mxu0 0.0
  %407 = vmatpush1.msra.mxu0 0.0
  %408 = vmatprep.subr.mxu0 0.0
  %409 = vmatpush1.msra.mxu0 0.0
  %410 = vmatprep.subr.mxu0 0.0
  %411 = vmatpush1.msra.mxu0 0.0
  %412 = vmatprep.subr.mxu0 0.0
  %413 = vmatpush1.msra.mxu0 0.0
  %414 = vmatprep.subr.mxu0 0.0
  %415 = vmatpush1.msra.mxu0 0.0
  %416 = vmatprep.subr.mxu0 0.0
  %417 = vmatpush1.msra.mxu0 0.0
  %418 = vmatprep.subr.mxu0 0.0
  %419 = vmatpush1.msra.mxu0 0.0
  %420 = vmatprep.subr.mxu0 0.0
  %421 = vmatpush1.msra.mxu0 0.0
  %422 = vmatprep.subr.mxu0 0.0
  %423 = vmatpush1.msra.mxu0 0.0
  %424 = vmatprep.subr.mxu0 0.0
  %425 = vmatpush1.msra.mxu0 0.0
  %426 = vmatprep.subr.mxu0 0.0
  %427 = vmatpush1.msra.mxu0 0.0
  %428 = vmatprep.subr.mxu0 0.0
  %429 = vmatpush1.msra.mxu0 0.0
  %430 = vmatprep.subr.mxu0 0.0
  %431 = vmatpush1.msra.mxu0 %v398
  %432 = vmatprep.subr.mxu0 0.0
  %433 = vmatpush2.msra.mxu0 0.0
  %434 = vmatprep.subr.mxu0 0.0
  %435 = vmatpush2.msra.mxu0 0.0
  %436 = vmatprep.subr.mxu0 0.0
  %437 = vmatpush2.msra.mxu0 0.0
  %438 = vmatprep.subr.mxu0 0.0
  %439 = vmatpush2.msra.mxu0 0.0
  %440 = vmatprep.subr.mxu0 0.0
  %441 = vmatpush2.msra.mxu0 0.0
  %442 = vmatprep.subr.mxu0 0.0
  %443 = vmatpush2.msra.mxu0 0.0
  %444 = vmatprep.subr.mxu0 0.0
  %445 = vmatpush2.msra.mxu0 0.0
  %446 = vmatprep.subr.mxu0 0.0
  %447 = vmatpush2.msra.mxu0 0.0
  %448 = vmatprep.subr.mxu0 0.0
  %449 = vmatpush2.msra.mxu0 0.0
  %450 = vmatprep.subr.mxu0 0.0
  %451 = vmatpush2.msra.mxu0 0.0
  %452 = vmatprep.subr.mxu0 0.0
  %453 = vmatpush2.msra.mxu0 0.0
  %454 = vmatprep.subr.mxu0 0.0
  %455 = vmatpush2.msra.mxu0 0.0
  %456 = vmatprep.subr.mxu0 0.0
  %457 = vmatpush2.msra.mxu0 0.0
  %458 = vmatprep.subr.mxu0 0.0
  %459 = vmatpush2.msra.mxu0 0.0
  %460 = vmatprep.subr.mxu0 0.0
  %461 = vmatpush2.msra.mxu0 0.0
  %462 = vmatprep.subr.mxu0 0.0
  %463 = vmatpush2.msra.mxu0 0.0
  %464 = vmatprep.mubr.f32.mxu0 0.0
  %465 = vmatmul.mubr.f32.gmra.mxu0 %v394
  %v466 = vpop.f32.mrf.mxu0
  %v467 = vadd.f32 0.0, %v466
  %v468 = vpop.f32.mrf.mxu0
  %469 = vdwg.mxu0
  %v471 = vrot.slane %v467, 1
  %v472 = vrot.slane %v467, 2
  %v473 = vrot.slane %v467, 3
  %v474 = vrot.slane %v467, 4
  %v475 = vrot.slane %v467, 5
  %v476 = vrot.slane %v467, 6
  %v477 = vrot.slane %v467, 7
  %v486 = vmul.f32 %v277, %v467
  %v487 = vmul.f32 %v278, %v471
  %v488 = vmul.f32 %v279, %v472
  %v489 = vmul.f32 %v280, %v473
  %v490 = vmul.f32 %v281, %v474
  %v491 = vmul.f32 %v282, %v475
  %v492 = vmul.f32 %v283, %v476
  %v493 = vmul.f32 %v284, %v477
  %v494 = vlaneseq
  %v495 = vshrl.u32 %v494, 7
  %v496 = vsub.s32 0, %v495
  %v497 = vrot.slane %v486, %v496
  %v498 = vlaneseq
  %v499 = vshrl.u32 %v498, 7
  %v500 = vsub.s32 0, %v499
  %v501 = vrot.slane %v487, %v500
  %v502 = vlaneseq
  %v503 = vshrl.u32 %v502, 7
  %v504 = vsub.s32 0, %v503
  %v505 = vrot.slane %v488, %v504
  %v506 = vlaneseq
  %v507 = vshrl.u32 %v506, 7
  %v508 = vsub.s32 0, %v507
  %v509 = vrot.slane %v489, %v508
  %v510 = vlaneseq
  %v511 = vshrl.u32 %v510, 7
  %v512 = vsub.s32 0, %v511
  %v513 = vrot.slane %v490, %v512
  %v514 = vlaneseq
  %v515 = vshrl.u32 %v514, 7
  %v516 = vsub.s32 0, %v515
  %v517 = vrot.slane %v491, %v516
  %v518 = vlaneseq
  %v519 = vshrl.u32 %v518, 7
  %v520 = vsub.s32 0, %v519
  %v521 = vrot.slane %v492, %v520
  %v522 = vlaneseq
  %v523 = vshrl.u32 %v522, 7
  %v524 = vsub.s32 0, %v523
  %v525 = vrot.slane %v493, %v524
  %v526 = vmul.f32 %v497, %v18
  %v527 = vmul.f32 %v501, %v18
  %v528 = vmul.f32 %v505, %v18
  %v529 = vmul.f32 %v509, %v18
  %v530 = vmul.f32 %v513, %v18
  %v531 = vmul.f32 %v517, %v18
  %v532 = vmul.f32 %v521, %v18
  %v533 = vmul.f32 %v525, %v18
  %v534 = vpack.c.bf16 %v526, %v526
  %v535 = vpack.c.bf16 %v527, %v527
  %v536 = vpack.c.bf16 %v528, %v528
  %v537 = vpack.c.bf16 %v529, %v529
  %v538 = vpack.c.bf16 %v530, %v530
  %v539 = vpack.c.bf16 %v531, %v531
  %v540 = vpack.c.bf16 %v532, %v532
  %v541 = vpack.c.bf16 %v533, %v533
  %v543 = vsel %vm204, %v534, 0
  %v546 = vsel %vm204, %v196, 0
  %548 = vmatprep.subr.bf16.mxu0 0
  %549 = vmatpush1.bf16.xpose.msra.mxu0 0
  %550 = vmatprep.subr.bf16.mxu0 0
  %551 = vmatpush1.bf16.xpose.msra.mxu0 0
  %552 = vmatprep.subr.bf16.mxu0 0
  %553 = vmatpush1.bf16.xpose.msra.mxu0 0
  %554 = vmatprep.subr.bf16.mxu0 0
  %555 = vmatpush1.bf16.xpose.msra.mxu0 0
  %556 = vmatprep.subr.bf16.mxu0 0
  %557 = vmatpush1.bf16.xpose.msra.mxu0 0
  %558 = vmatprep.subr.bf16.mxu0 0
  %559 = vmatpush1.bf16.xpose.msra.mxu0 0
  %560 = vmatprep.subr.bf16.mxu0 0
  %561 = vmatpush1.bf16.xpose.msra.mxu0 0
  %562 = vmatprep.subr.bf16.mxu0 0
  %563 = vmatpush1.bf16.xpose.msra.mxu0 %v546
  %564 = vmatprep.subr.bf16.mxu0 0
  %565 = vmatpush2.bf16.xpose.msra.mxu0 0
  %566 = vmatprep.subr.bf16.mxu0 0
  %567 = vmatpush2.bf16.xpose.msra.mxu0 0
  %568 = vmatprep.subr.bf16.mxu0 0
  %569 = vmatpush2.bf16.xpose.msra.mxu0 0
  %570 = vmatprep.subr.bf16.mxu0 0
  %571 = vmatpush2.bf16.xpose.msra.mxu0 0
  %572 = vmatprep.subr.bf16.mxu0 0
  %573 = vmatpush2.bf16.xpose.msra.mxu0 0
  %574 = vmatprep.subr.bf16.mxu0 0
  %575 = vmatpush2.bf16.xpose.msra.mxu0 0
  %576 = vmatprep.subr.bf16.mxu0 0
  %577 = vmatpush2.bf16.xpose.msra.mxu0 0
  %578 = vmatprep.subr.bf16.mxu0 0
  %579 = vmatpush2.bf16.xpose.msra.mxu0 0
  %580 = vmatprep.mubr.bf16.mxu0 0
  %581 = vmatmul.mubr.bf16.gmra.mxu0 %v543
  %v582 = vpop.f32.mrf.mxu0
  %v583 = vadd.f32 0.0, %v582
  %v584 = vpop.f32.mrf.mxu0
  %v585 = vpop.f32.mrf.mxu0
  %v586 = vpop.f32.mrf.mxu0
  %587 = vdwg.mxu0
  %v589 = vsel %vm204, %v535, 0
  %v592 = vsel %vm204, %v197, 0
  %594 = vmatprep.subr.bf16.mxu0 0
  %595 = vmatpush1.bf16.xpose.msra.mxu0 0
  %596 = vmatprep.subr.bf16.mxu0 0
  %597 = vmatpush1.bf16.xpose.msra.mxu0 0
  %598 = vmatprep.subr.bf16.mxu0 0
  %599 = vmatpush1.bf16.xpose.msra.mxu0 0
  %600 = vmatprep.subr.bf16.mxu0 0
  %601 = vmatpush1.bf16.xpose.msra.mxu0 0
  %602 = vmatprep.subr.bf16.mxu0 0
  %603 = vmatpush1.bf16.xpose.msra.mxu0 0
  %604 = vmatprep.subr.bf16.mxu0 0
  %605 = vmatpush1.bf16.xpose.msra.mxu0 0
  %606 = vmatprep.subr.bf16.mxu0 0
  %607 = vmatpush1.bf16.xpose.msra.mxu0 0
  %608 = vmatprep.subr.bf16.mxu0 0
  %609 = vmatpush1.bf16.xpose.msra.mxu0 %v592
  %610 = vmatprep.subr.bf16.mxu0 0
  %611 = vmatpush2.bf16.xpose.msra.mxu0 0
  %612 = vmatprep.subr.bf16.mxu0 0
  %613 = vmatpush2.bf16.xpose.msra.mxu0 0
  %614 = vmatprep.subr.bf16.mxu0 0
  %615 = vmatpush2.bf16.xpose.msra.mxu0 0
  %616 = vmatprep.subr.bf16.mxu0 0
  %617 = vmatpush2.bf16.xpose.msra.mxu0 0
  %618 = vmatprep.subr.bf16.mxu0 0
  %619 = vmatpush2.bf16.xpose.msra.mxu0 0
  %620 = vmatprep.subr.bf16.mxu0 0
  %621 = vmatpush2.bf16.xpose.msra.mxu0 0
  %622 = vmatprep.subr.bf16.mxu0 0
  %623 = vmatpush2.bf16.xpose.msra.mxu0 0
  %624 = vmatprep.subr.bf16.mxu0 0
  %625 = vmatpush2.bf16.xpose.msra.mxu0 0
  %626 = vmatprep.mubr.bf16.mxu0 0
  %627 = vmatmul.mubr.bf16.gmra.mxu0 %v589
  %v628 = vpop.f32.mrf.mxu0
  %v629 = vadd.f32 0.0, %v628
  %v630 = vpop.f32.mrf.mxu0
  %v631 = vpop.f32.mrf.mxu0
  %v632 = vpop.f32.mrf.mxu0
  %633 = vdwg.mxu0
  %v635 = vsel %vm204, %v536, 0
  %v638 = vsel %vm204, %v198, 0
  %640 = vmatprep.subr.bf16.mxu0 0
  %641 = vmatpush1.bf16.xpose.msra.mxu0 0
  %642 = vmatprep.subr.bf16.mxu0 0
  %643 = vmatpush1.bf16.xpose.msra.mxu0 0
  %644 = vmatprep.subr.bf16.mxu0 0
  %645 = vmatpush1.bf16.xpose.msra.mxu0 0
  %646 = vmatprep.subr.bf16.mxu0 0
  %647 = vmatpush1.bf16.xpose.msra.mxu0 0
  %648 = vmatprep.subr.bf16.mxu0 0
  %649 = vmatpush1.bf16.xpose.msra.mxu0 0
  %650 = vmatprep.subr.bf16.mxu0 0
  %651 = vmatpush1.bf16.xpose.msra.mxu0 0
  %652 = vmatprep.subr.bf16.mxu0 0
  %653 = vmatpush1.bf16.xpose.msra.mxu0 0
  %654 = vmatprep.subr.bf16.mxu0 0
  %655 = vmatpush1.bf16.xpose.msra.mxu0 %v638
  %656 = vmatprep.subr.bf16.mxu0 0
  %657 = vmatpush2.bf16.xpose.msra.mxu0 0
  %658 = vmatprep.subr.bf16.mxu0 0
  %659 = vmatpush2.bf16.xpose.msra.mxu0 0
  %660 = vmatprep.subr.bf16.mxu0 0
  %661 = vmatpush2.bf16.xpose.msra.mxu0 0
  %662 = vmatprep.subr.bf16.mxu0 0
  %663 = vmatpush2.bf16.xpose.msra.mxu0 0
  %664 = vmatprep.subr.bf16.mxu0 0
  %665 = vmatpush2.bf16.xpose.msra.mxu0 0
  %666 = vmatprep.subr.bf16.mxu0 0
  %667 = vmatpush2.bf16.xpose.msra.mxu0 0
  %668 = vmatprep.subr.bf16.mxu0 0
  %669 = vmatpush2.bf16.xpose.msra.mxu0 0
  %670 = vmatprep.subr.bf16.mxu0 0
  %671 = vmatpush2.bf16.xpose.msra.mxu0 0
  %672 = vmatprep.mubr.bf16.mxu0 0
  %673 = vmatmul.mubr.bf16.gmra.mxu0 %v635
  %v674 = vpop.f32.mrf.mxu0
  %v675 = vadd.f32 0.0, %v674
  %v676 = vpop.f32.mrf.mxu0
  %v677 = vpop.f32.mrf.mxu0
  %v678 = vpop.f32.mrf.mxu0
  %679 = vdwg.mxu0
  %v681 = vsel %vm204, %v537, 0
  %v684 = vsel %vm204, %v199, 0
  %686 = vmatprep.subr.bf16.mxu0 0
  %687 = vmatpush1.bf16.xpose.msra.mxu0 0
  %688 = vmatprep.subr.bf16.mxu0 0
  %689 = vmatpush1.bf16.xpose.msra.mxu0 0
  %690 = vmatprep.subr.bf16.mxu0 0
  %691 = vmatpush1.bf16.xpose.msra.mxu0 0
  %692 = vmatprep.subr.bf16.mxu0 0
  %693 = vmatpush1.bf16.xpose.msra.mxu0 0
  %694 = vmatprep.subr.bf16.mxu0 0
  %695 = vmatpush1.bf16.xpose.msra.mxu0 0
  %696 = vmatprep.subr.bf16.mxu0 0
  %697 = vmatpush1.bf16.xpose.msra.mxu0 0
  %698 = vmatprep.subr.bf16.mxu0 0
  %699 = vmatpush1.bf16.xpose.msra.mxu0 0
  %700 = vmatprep.subr.bf16.mxu0 0
  %701 = vmatpush1.bf16.xpose.msra.mxu0 %v684
  %702 = vmatprep.subr.bf16.mxu0 0
  %703 = vmatpush2.bf16.xpose.msra.mxu0 0
  %704 = vmatprep.subr.bf16.mxu0 0
  %705 = vmatpush2.bf16.xpose.msra.mxu0 0
  %706 = vmatprep.subr.bf16.mxu0 0
  %707 = vmatpush2.bf16.xpose.msra.mxu0 0
  %708 = vmatprep.subr.bf16.mxu0 0
  %709 = vmatpush2.bf16.xpose.msra.mxu0 0
  %710 = vmatprep.subr.bf16.mxu0 0
  %711 = vmatpush2.bf16.xpose.msra.mxu0 0
  %712 = vmatprep.subr.bf16.mxu0 0
  %713 = vmatpush2.bf16.xpose.msra.mxu0 0
  %714 = vmatprep.subr.bf16.mxu0 0
  %715 = vmatpush2.bf16.xpose.msra.mxu0 0
  %716 = vmatprep.subr.bf16.mxu0 0
  %717 = vmatpush2.bf16.xpose.msra.mxu0 0
  %718 = vmatprep.mubr.bf16.mxu0 0
  %719 = vmatmul.mubr.bf16.gmra.mxu0 %v681
  %v720 = vpop.f32.mrf.mxu0
  %v721 = vadd.f32 0.0, %v720
  %v722 = vpop.f32.mrf.mxu0
  %v723 = vpop.f32.mrf.mxu0
  %v724 = vpop.f32.mrf.mxu0
  %725 = vdwg.mxu0
  %v727 = vsel %vm204, %v538, 0
  %v730 = vsel %vm204, %v200, 0
  %732 = vmatprep.subr.bf16.mxu0 0
  %733 = vmatpush1.bf16.xpose.msra.mxu0 0
  %734 = vmatprep.subr.bf16.mxu0 0
  %735 = vmatpush1.bf16.xpose.msra.mxu0 0
  %736 = vmatprep.subr.bf16.mxu0 0
  %737 = vmatpush1.bf16.xpose.msra.mxu0 0
  %738 = vmatprep.subr.bf16.mxu0 0
  %739 = vmatpush1.bf16.xpose.msra.mxu0 0
  %740 = vmatprep.subr.bf16.mxu0 0
  %741 = vmatpush1.bf16.xpose.msra.mxu0 0
  %742 = vmatprep.subr.bf16.mxu0 0
  %743 = vmatpush1.bf16.xpose.msra.mxu0 0
  %744 = vmatprep.subr.bf16.mxu0 0
  %745 = vmatpush1.bf16.xpose.msra.mxu0 0
  %746 = vmatprep.subr.bf16.mxu0 0
  %747 = vmatpush1.bf16.xpose.msra.mxu0 %v730
  %748 = vmatprep.subr.bf16.mxu0 0
  %749 = vmatpush2.bf16.xpose.msra.mxu0 0
  %750 = vmatprep.subr.bf16.mxu0 0
  %751 = vmatpush2.bf16.xpose.msra.mxu0 0
  %752 = vmatprep.subr.bf16.mxu0 0
  %753 = vmatpush2.bf16.xpose.msra.mxu0 0
  %754 = vmatprep.subr.bf16.mxu0 0
  %755 = vmatpush2.bf16.xpose.msra.mxu0 0
  %756 = vmatprep.subr.bf16.mxu0 0
  %757 = vmatpush2.bf16.xpose.msra.mxu0 0
  %758 = vmatprep.subr.bf16.mxu0 0
  %759 = vmatpush2.bf16.xpose.msra.mxu0 0
  %760 = vmatprep.subr.bf16.mxu0 0
  %761 = vmatpush2.bf16.xpose.msra.mxu0 0
  %762 = vmatprep.subr.bf16.mxu0 0
  %763 = vmatpush2.bf16.xpose.msra.mxu0 0
  %764 = vmatprep.mubr.bf16.mxu0 0
  %765 = vmatmul.mubr.bf16.gmra.mxu0 %v727
  %v766 = vpop.f32.mrf.mxu0
  %v767 = vadd.f32 0.0, %v766
  %v768 = vpop.f32.mrf.mxu0
  %v769 = vpop.f32.mrf.mxu0
  %v770 = vpop.f32.mrf.mxu0
  %771 = vdwg.mxu0
  %v773 = vsel %vm204, %v539, 0
  %v776 = vsel %vm204, %v201, 0
  %778 = vmatprep.subr.bf16.mxu0 0
  %779 = vmatpush1.bf16.xpose.msra.mxu0 0
  %780 = vmatprep.subr.bf16.mxu0 0
  %781 = vmatpush1.bf16.xpose.msra.mxu0 0
  %782 = vmatprep.subr.bf16.mxu0 0
  %783 = vmatpush1.bf16.xpose.msra.mxu0 0
  %784 = vmatprep.subr.bf16.mxu0 0
  %785 = vmatpush1.bf16.xpose.msra.mxu0 0
  %786 = vmatprep.subr.bf16.mxu0 0
  %787 = vmatpush1.bf16.xpose.msra.mxu0 0
  %788 = vmatprep.subr.bf16.mxu0 0
  %789 = vmatpush1.bf16.xpose.msra.mxu0 0
  %790 = vmatprep.subr.bf16.mxu0 0
  %791 = vmatpush1.bf16.xpose.msra.mxu0 0
  %792 = vmatprep.subr.bf16.mxu0 0
  %793 = vmatpush1.bf16.xpose.msra.mxu0 %v776
  %794 = vmatprep.subr.bf16.mxu0 0
  %795 = vmatpush2.bf16.xpose.msra.mxu0 0
  %796 = vmatprep.subr.bf16.mxu0 0
  %797 = vmatpush2.bf16.xpose.msra.mxu0 0
  %798 = vmatprep.subr.bf16.mxu0 0
  %799 = vmatpush2.bf16.xpose.msra.mxu0 0
  %800 = vmatprep.subr.bf16.mxu0 0
  %801 = vmatpush2.bf16.xpose.msra.mxu0 0
  %802 = vmatprep.subr.bf16.mxu0 0
  %803 = vmatpush2.bf16.xpose.msra.mxu0 0
  %804 = vmatprep.subr.bf16.mxu0 0
  %805 = vmatpush2.bf16.xpose.msra.mxu0 0
  %806 = vmatprep.subr.bf16.mxu0 0
  %807 = vmatpush2.bf16.xpose.msra.mxu0 0
  %808 = vmatprep.subr.bf16.mxu0 0
  %809 = vmatpush2.bf16.xpose.msra.mxu0 0
  %810 = vmatprep.mubr.bf16.mxu0 0
  %811 = vmatmul.mubr.bf16.gmra.mxu0 %v773
  %v812 = vpop.f32.mrf.mxu0
  %v813 = vadd.f32 0.0, %v812
  %v814 = vpop.f32.mrf.mxu0
  %v815 = vpop.f32.mrf.mxu0
  %v816 = vpop.f32.mrf.mxu0
  %817 = vdwg.mxu0
  %v819 = vsel %vm204, %v540, 0
  %v822 = vsel %vm204, %v202, 0
  %824 = vmatprep.subr.bf16.mxu0 0
  %825 = vmatpush1.bf16.xpose.msra.mxu0 0
  %826 = vmatprep.subr.bf16.mxu0 0
  %827 = vmatpush1.bf16.xpose.msra.mxu0 0
  %828 = vmatprep.subr.bf16.mxu0 0
  %829 = vmatpush1.bf16.xpose.msra.mxu0 0
  %830 = vmatprep.subr.bf16.mxu0 0
  %831 = vmatpush1.bf16.xpose.msra.mxu0 0
  %832 = vmatprep.subr.bf16.mxu0 0
  %833 = vmatpush1.bf16.xpose.msra.mxu0 0
  %834 = vmatprep.subr.bf16.mxu0 0
  %835 = vmatpush1.bf16.xpose.msra.mxu0 0
  %836 = vmatprep.subr.bf16.mxu0 0
  %837 = vmatpush1.bf16.xpose.msra.mxu0 0
  %838 = vmatprep.subr.bf16.mxu0 0
  %839 = vmatpush1.bf16.xpose.msra.mxu0 %v822
  %840 = vmatprep.subr.bf16.mxu0 0
  %841 = vmatpush2.bf16.xpose.msra.mxu0 0
  %842 = vmatprep.subr.bf16.mxu0 0
  %843 = vmatpush2.bf16.xpose.msra.mxu0 0
  %844 = vmatprep.subr.bf16.mxu0 0
  %845 = vmatpush2.bf16.xpose.msra.mxu0 0
  %846 = vmatprep.subr.bf16.mxu0 0
  %847 = vmatpush2.bf16.xpose.msra.mxu0 0
  %848 = vmatprep.subr.bf16.mxu0 0
  %849 = vmatpush2.bf16.xpose.msra.mxu0 0
  %850 = vmatprep.subr.bf16.mxu0 0
  %851 = vmatpush2.bf16.xpose.msra.mxu0 0
  %852 = vmatprep.subr.bf16.mxu0 0
  %853 = vmatpush2.bf16.xpose.msra.mxu0 0
  %854 = vmatprep.subr.bf16.mxu0 0
  %855 = vmatpush2.bf16.xpose.msra.mxu0 0
  %856 = vmatprep.mubr.bf16.mxu0 0
  %857 = vmatmul.mubr.bf16.gmra.mxu0 %v819
  %v858 = vpop.f32.mrf.mxu0
  %v859 = vadd.f32 0.0, %v858
  %v860 = vpop.f32.mrf.mxu0
  %v861 = vpop.f32.mrf.mxu0
  %v862 = vpop.f32.mrf.mxu0
  %863 = vdwg.mxu0
  %v865 = vsel %vm204, %v541, 0
  %v868 = vsel %vm204, %v203, 0
  %870 = vmatprep.subr.bf16.mxu0 0
  %871 = vmatpush1.bf16.xpose.msra.mxu0 0
  %872 = vmatprep.subr.bf16.mxu0 0
  %873 = vmatpush1.bf16.xpose.msra.mxu0 0
  %874 = vmatprep.subr.bf16.mxu0 0
  %875 = vmatpush1.bf16.xpose.msra.mxu0 0
  %876 = vmatprep.subr.bf16.mxu0 0
  %877 = vmatpush1.bf16.xpose.msra.mxu0 0
  %878 = vmatprep.subr.bf16.mxu0 0
  %879 = vmatpush1.bf16.xpose.msra.mxu0 0
  %880 = vmatprep.subr.bf16.mxu0 0
  %881 = vmatpush1.bf16.xpose.msra.mxu0 0
  %882 = vmatprep.subr.bf16.mxu0 0
  %883 = vmatpush1.bf16.xpose.msra.mxu0 0
  %884 = vmatprep.subr.bf16.mxu0 0
  %885 = vmatpush1.bf16.xpose.msra.mxu0 %v868
  %886 = vmatprep.subr.bf16.mxu0 0
  %887 = vmatpush2.bf16.xpose.msra.mxu0 0
  %888 = vmatprep.subr.bf16.mxu0 0
  %889 = vmatpush2.bf16.xpose.msra.mxu0 0
  %890 = vmatprep.subr.bf16.mxu0 0
  %891 = vmatpush2.bf16.xpose.msra.mxu0 0
  %892 = vmatprep.subr.bf16.mxu0 0
  %893 = vmatpush2.bf16.xpose.msra.mxu0 0
  %894 = vmatprep.subr.bf16.mxu0 0
  %895 = vmatpush2.bf16.xpose.msra.mxu0 0
  %896 = vmatprep.subr.bf16.mxu0 0
  %897 = vmatpush2.bf16.xpose.msra.mxu0 0
  %898 = vmatprep.subr.bf16.mxu0 0
  %899 = vmatpush2.bf16.xpose.msra.mxu0 0
  %900 = vmatprep.subr.bf16.mxu0 0
  %901 = vmatpush2.bf16.xpose.msra.mxu0 0
  %902 = vmatprep.mubr.bf16.mxu0 0
  %903 = vmatmul.mubr.bf16.gmra.mxu0 %v865
  %v904 = vpop.f32.mrf.mxu0
  %v905 = vadd.f32 0.0, %v904
  %v906 = vpop.f32.mrf.mxu0
  %v907 = vpop.f32.mrf.mxu0
  %v908 = vpop.f32.mrf.mxu0
  %909 = vdwg.mxu0
  %v910 = vmul.f32 %v583, 1.442695
  %v911 = vpow.pop %v910
  %v912 = vmul.f32 %v629, 1.442695
  %v913 = vpow.pop %v912
  %v914 = vmul.f32 %v675, 1.442695
  %v915 = vpow.pop %v914
  %v916 = vmul.f32 %v721, 1.442695
  %v917 = vpow.pop %v916
  %v918 = vmul.f32 %v767, 1.442695
  %v919 = vpow.pop %v918
  %v920 = vmul.f32 %v813, 1.442695
  %v921 = vpow.pop %v920
  %v922 = vmul.f32 %v859, 1.442695
  %v923 = vpow.pop %v922
  %v924 = vmul.f32 %v905, 1.442695
  %v925 = vpow.pop %v924
  %vm926 = vcmask 126976
  %v927 = vsel %vm926, %v911, 0.0
  %v928 = vrot.slane %v927, 4
  %v929 = vadd.f32 %v927, %v928
  %v930 = vrot.slane %v929, 2
  %v931 = vadd.f32 %v929, %v930
  %v932 = vrot.slane %v931, 1
  %v933 = vadd.f32 %v931, %v932
  %v934 = vsel %vm926, %v913, 0.0
  %v935 = vrot.slane %v934, 4
  %v936 = vadd.f32 %v934, %v935
  %v937 = vrot.slane %v936, 2
  %v938 = vadd.f32 %v936, %v937
  %v939 = vrot.slane %v938, 1
  %v940 = vadd.f32 %v938, %v939
  %v941 = vsel %vm926, %v915, 0.0
  %v942 = vrot.slane %v941, 4
  %v943 = vadd.f32 %v941, %v942
  %v944 = vrot.slane %v943, 2
  %v945 = vadd.f32 %v943, %v944
  %v946 = vrot.slane %v945, 1
  %v947 = vadd.f32 %v945, %v946
  %v948 = vsel %vm926, %v917, 0.0
  %v949 = vrot.slane %v948, 4
  %v950 = vadd.f32 %v948, %v949
  %v951 = vrot.slane %v950, 2
  %v952 = vadd.f32 %v950, %v951
  %v953 = vrot.slane %v952, 1
  %v954 = vadd.f32 %v952, %v953
  %v955 = vsel %vm926, %v919, 0.0
  %v956 = vrot.slane %v955, 4
  %v957 = vadd.f32 %v955, %v956
  %v958 = vrot.slane %v957, 2
  %v959 = vadd.f32 %v957, %v958
  %v960 = vrot.slane %v959, 1
  %v961 = vadd.f32 %v959, %v960
  %v962 = vsel %vm926, %v921, 0.0
  %v963 = vrot.slane %v962, 4
  %v964 = vadd.f32 %v962, %v963
  %v965 = vrot.slane %v964, 2
  %v966 = vadd.f32 %v964, %v965
  %v967 = vrot.slane %v966, 1
  %v968 = vadd.f32 %v966, %v967
  %v969 = vsel %vm926, %v923, 0.0
  %v970 = vrot.slane %v969, 4
  %v971 = vadd.f32 %v969, %v970
  %v972 = vrot.slane %v971, 2
  %v973 = vadd.f32 %v971, %v972
  %v974 = vrot.slane %v973, 1
  %v975 = vadd.f32 %v973, %v974
  %v976 = vsel %vm926, %v925, 0.0
  %v977 = vrot.slane %v976, 4
  %v978 = vadd.f32 %v976, %v977
  %v979 = vrot.slane %v978, 2
  %v980 = vadd.f32 %v978, %v979
  %v981 = vrot.slane %v980, 1
  %v982 = vadd.f32 %v980, %v981
  %v983 = vrcp.pop %v933
  %v984 = vrcp.pop %v940
  %v985 = vrcp.pop %v947
  %v986 = vrcp.pop %v954
  %v987 = vrcp.pop %v961
  %v988 = vrcp.pop %v968
  %v989 = vrcp.pop %v975
  %v990 = vrcp.pop %v982
  %v991 = vmul.f32 %v911, %v983
  %v992 = vmul.f32 %v913, %v984
  %v993 = vmul.f32 %v915, %v985
  %v994 = vmul.f32 %v917, %v986
  %v995 = vmul.f32 %v919, %v987
  %v996 = vmul.f32 %v921, %v988
  %v997 = vmul.f32 %v923, %v989
  %v998 = vmul.f32 %v925, %v990
  %v999 = vpack.c.bf16 %v991, %v991
  %v1000 = vpack.c.bf16 %v992, %v992
  %v1001 = vpack.c.bf16 %v993, %v993
  %v1002 = vpack.c.bf16 %v994, %v994
  %v1003 = vpack.c.bf16 %v995, %v995
  %v1004 = vpack.c.bf16 %v996, %v996
  %v1005 = vpack.c.bf16 %v997, %v997
  %v1006 = vpack.c.bf16 %v998, %v998
  %vm1007 = vcmask 130048
  %v1009 = vsel %vm1007, %v999, 0
  %1011 = vmatprep.subr.bf16.mxu0 0
  %1012 = vmatpush1.bf16.msra.mxu0 0
  %1013 = vmatprep.subr.bf16.mxu0 0
  %1014 = vmatpush1.bf16.msra.mxu0 0
  %1015 = vmatprep.subr.bf16.mxu0 0
  %1016 = vmatpush1.bf16.msra.mxu0 0
  %1017 = vmatprep.subr.bf16.mxu0 0
  %1018 = vmatpush1.bf16.msra.mxu0 0
  %1019 = vmatprep.subr.bf16.mxu0 0
  %1020 = vmatpush1.bf16.msra.mxu0 0
  %1021 = vmatprep.subr.bf16.mxu0 0
  %1022 = vmatpush1.bf16.msra.mxu0 0
  %1023 = vmatprep.subr.bf16.mxu0 0
  %1024 = vmatpush1.bf16.msra.mxu0 0
  %1025 = vmatprep.subr.bf16.mxu0 0
  %1026 = vmatpush1.bf16.msra.mxu0 %v196
  %1027 = vmatprep.subr.bf16.mxu0 0
  %1028 = vmatpush2.bf16.msra.mxu0 0
  %1029 = vmatprep.subr.bf16.mxu0 0
  %1030 = vmatpush2.bf16.msra.mxu0 0
  %1031 = vmatprep.subr.bf16.mxu0 0
  %1032 = vmatpush2.bf16.msra.mxu0 0
  %1033 = vmatprep.subr.bf16.mxu0 0
  %1034 = vmatpush2.bf16.msra.mxu0 0
  %1035 = vmatprep.subr.bf16.mxu0 0
  %1036 = vmatpush2.bf16.msra.mxu0 0
  %1037 = vmatprep.subr.bf16.mxu0 0
  %1038 = vmatpush2.bf16.msra.mxu0 0
  %1039 = vmatprep.subr.bf16.mxu0 0
  %1040 = vmatpush2.bf16.msra.mxu0 0
  %1041 = vmatprep.subr.bf16.mxu0 0
  %1042 = vmatpush2.bf16.msra.mxu0 0
  %1043 = vmatprep.mubr.bf16.mxu0 0
  %1044 = vmatmul.mubr.bf16.gmra.mxu0 %v1009
  %v1045 = vpop.f32.mrf.mxu0
  %v1046 = vadd.f32 0.0, %v1045
  %v1047 = vpop.f32.mrf.mxu0
  %v1048 = vpop.f32.mrf.mxu0
  %v1049 = vpop.f32.mrf.mxu0
  %1050 = vdwg.mxu0
  %v1052 = vsel %vm1007, %v1000, 0
  %1054 = vmatprep.subr.bf16.mxu0 0
  %1055 = vmatpush1.bf16.msra.mxu0 0
  %1056 = vmatprep.subr.bf16.mxu0 0
  %1057 = vmatpush1.bf16.msra.mxu0 0
  %1058 = vmatprep.subr.bf16.mxu0 0
  %1059 = vmatpush1.bf16.msra.mxu0 0
  %1060 = vmatprep.subr.bf16.mxu0 0
  %1061 = vmatpush1.bf16.msra.mxu0 0
  %1062 = vmatprep.subr.bf16.mxu0 0
  %1063 = vmatpush1.bf16.msra.mxu0 0
  %1064 = vmatprep.subr.bf16.mxu0 0
  %1065 = vmatpush1.bf16.msra.mxu0 0
  %1066 = vmatprep.subr.bf16.mxu0 0
  %1067 = vmatpush1.bf16.msra.mxu0 0
  %1068 = vmatprep.subr.bf16.mxu0 0
  %1069 = vmatpush1.bf16.msra.mxu0 %v197
  %1070 = vmatprep.subr.bf16.mxu0 0
  %1071 = vmatpush2.bf16.msra.mxu0 0
  %1072 = vmatprep.subr.bf16.mxu0 0
  %1073 = vmatpush2.bf16.msra.mxu0 0
  %1074 = vmatprep.subr.bf16.mxu0 0
  %1075 = vmatpush2.bf16.msra.mxu0 0
  %1076 = vmatprep.subr.bf16.mxu0 0
  %1077 = vmatpush2.bf16.msra.mxu0 0
  %1078 = vmatprep.subr.bf16.mxu0 0
  %1079 = vmatpush2.bf16.msra.mxu0 0
  %1080 = vmatprep.subr.bf16.mxu0 0
  %1081 = vmatpush2.bf16.msra.mxu0 0
  %1082 = vmatprep.subr.bf16.mxu0 0
  %1083 = vmatpush2.bf16.msra.mxu0 0
  %1084 = vmatprep.subr.bf16.mxu0 0
  %1085 = vmatpush2.bf16.msra.mxu0 0
  %1086 = vmatprep.mubr.bf16.mxu0 0
  %1087 = vmatmul.mubr.bf16.gmra.mxu0 %v1052
  %v1088 = vpop.f32.mrf.mxu0
  %v1089 = vadd.f32 0.0, %v1088
  %v1090 = vpop.f32.mrf.mxu0
  %v1091 = vpop.f32.mrf.mxu0
  %v1092 = vpop.f32.mrf.mxu0
  %1093 = vdwg.mxu0
  %v1095 = vsel %vm1007, %v1001, 0
  %1097 = vmatprep.subr.bf16.mxu0 0
  %1098 = vmatpush1.bf16.msra.mxu0 0
  %1099 = vmatprep.subr.bf16.mxu0 0
  %1100 = vmatpush1.bf16.msra.mxu0 0
  %1101 = vmatprep.subr.bf16.mxu0 0
  %1102 = vmatpush1.bf16.msra.mxu0 0
  %1103 = vmatprep.subr.bf16.mxu0 0
  %1104 = vmatpush1.bf16.msra.mxu0 0
  %1105 = vmatprep.subr.bf16.mxu0 0
  %1106 = vmatpush1.bf16.msra.mxu0 0
  %1107 = vmatprep.subr.bf16.mxu0 0
  %1108 = vmatpush1.bf16.msra.mxu0 0
  %1109 = vmatprep.subr.bf16.mxu0 0
  %1110 = vmatpush1.bf16.msra.mxu0 0
  %1111 = vmatprep.subr.bf16.mxu0 0
  %1112 = vmatpush1.bf16.msra.mxu0 %v198
  %1113 = vmatprep.subr.bf16.mxu0 0
  %1114 = vmatpush2.bf16.msra.mxu0 0
  %1115 = vmatprep.subr.bf16.mxu0 0
  %1116 = vmatpush2.bf16.msra.mxu0 0
  %1117 = vmatprep.subr.bf16.mxu0 0
  %1118 = vmatpush2.bf16.msra.mxu0 0
  %1119 = vmatprep.subr.bf16.mxu0 0
  %1120 = vmatpush2.bf16.msra.mxu0 0
  %1121 = vmatprep.subr.bf16.mxu0 0
  %1122 = vmatpush2.bf16.msra.mxu0 0
  %1123 = vmatprep.subr.bf16.mxu0 0
  %1124 = vmatpush2.bf16.msra.mxu0 0
  %1125 = vmatprep.subr.bf16.mxu0 0
  %1126 = vmatpush2.bf16.msra.mxu0 0
  %1127 = vmatprep.subr.bf16.mxu0 0
  %1128 = vmatpush2.bf16.msra.mxu0 0
  %1129 = vmatprep.mubr.bf16.mxu0 0
  %1130 = vmatmul.mubr.bf16.gmra.mxu0 %v1095
  %v1131 = vpop.f32.mrf.mxu0
  %v1132 = vadd.f32 0.0, %v1131
  %v1133 = vpop.f32.mrf.mxu0
  %v1134 = vpop.f32.mrf.mxu0
  %v1135 = vpop.f32.mrf.mxu0
  %1136 = vdwg.mxu0
  %v1138 = vsel %vm1007, %v1002, 0
  %1140 = vmatprep.subr.bf16.mxu0 0
  %1141 = vmatpush1.bf16.msra.mxu0 0
  %1142 = vmatprep.subr.bf16.mxu0 0
  %1143 = vmatpush1.bf16.msra.mxu0 0
  %1144 = vmatprep.subr.bf16.mxu0 0
  %1145 = vmatpush1.bf16.msra.mxu0 0
  %1146 = vmatprep.subr.bf16.mxu0 0
  %1147 = vmatpush1.bf16.msra.mxu0 0
  %1148 = vmatprep.subr.bf16.mxu0 0
  %1149 = vmatpush1.bf16.msra.mxu0 0
  %1150 = vmatprep.subr.bf16.mxu0 0
  %1151 = vmatpush1.bf16.msra.mxu0 0
  %1152 = vmatprep.subr.bf16.mxu0 0
  %1153 = vmatpush1.bf16.msra.mxu0 0
  %1154 = vmatprep.subr.bf16.mxu0 0
  %1155 = vmatpush1.bf16.msra.mxu0 %v199
  %1156 = vmatprep.subr.bf16.mxu0 0
  %1157 = vmatpush2.bf16.msra.mxu0 0
  %1158 = vmatprep.subr.bf16.mxu0 0
  %1159 = vmatpush2.bf16.msra.mxu0 0
  %1160 = vmatprep.subr.bf16.mxu0 0
  %1161 = vmatpush2.bf16.msra.mxu0 0
  %1162 = vmatprep.subr.bf16.mxu0 0
  %1163 = vmatpush2.bf16.msra.mxu0 0
  %1164 = vmatprep.subr.bf16.mxu0 0
  %1165 = vmatpush2.bf16.msra.mxu0 0
  %1166 = vmatprep.subr.bf16.mxu0 0
  %1167 = vmatpush2.bf16.msra.mxu0 0
  %1168 = vmatprep.subr.bf16.mxu0 0
  %1169 = vmatpush2.bf16.msra.mxu0 0
  %1170 = vmatprep.subr.bf16.mxu0 0
  %1171 = vmatpush2.bf16.msra.mxu0 0
  %1172 = vmatprep.mubr.bf16.mxu0 0
  %1173 = vmatmul.mubr.bf16.gmra.mxu0 %v1138
  %v1174 = vpop.f32.mrf.mxu0
  %v1175 = vadd.f32 0.0, %v1174
  %v1176 = vpop.f32.mrf.mxu0
  %v1177 = vpop.f32.mrf.mxu0
  %v1178 = vpop.f32.mrf.mxu0
  %1179 = vdwg.mxu0
  %v1181 = vsel %vm1007, %v1003, 0
  %1183 = vmatprep.subr.bf16.mxu0 0
  %1184 = vmatpush1.bf16.msra.mxu0 0
  %1185 = vmatprep.subr.bf16.mxu0 0
  %1186 = vmatpush1.bf16.msra.mxu0 0
  %1187 = vmatprep.subr.bf16.mxu0 0
  %1188 = vmatpush1.bf16.msra.mxu0 0
  %1189 = vmatprep.subr.bf16.mxu0 0
  %1190 = vmatpush1.bf16.msra.mxu0 0
  %1191 = vmatprep.subr.bf16.mxu0 0
  %1192 = vmatpush1.bf16.msra.mxu0 0
  %1193 = vmatprep.subr.bf16.mxu0 0
  %1194 = vmatpush1.bf16.msra.mxu0 0
  %1195 = vmatprep.subr.bf16.mxu0 0
  %1196 = vmatpush1.bf16.msra.mxu0 0
  %1197 = vmatprep.subr.bf16.mxu0 0
  %1198 = vmatpush1.bf16.msra.mxu0 %v200
  %1199 = vmatprep.subr.bf16.mxu0 0
  %1200 = vmatpush2.bf16.msra.mxu0 0
  %1201 = vmatprep.subr.bf16.mxu0 0
  %1202 = vmatpush2.bf16.msra.mxu0 0
  %1203 = vmatprep.subr.bf16.mxu0 0
  %1204 = vmatpush2.bf16.msra.mxu0 0
  %1205 = vmatprep.subr.bf16.mxu0 0
  %1206 = vmatpush2.bf16.msra.mxu0 0
  %1207 = vmatprep.subr.bf16.mxu0 0
  %1208 = vmatpush2.bf16.msra.mxu0 0
  %1209 = vmatprep.subr.bf16.mxu0 0
  %1210 = vmatpush2.bf16.msra.mxu0 0
  %1211 = vmatprep.subr.bf16.mxu0 0
  %1212 = vmatpush2.bf16.msra.mxu0 0
  %1213 = vmatprep.subr.bf16.mxu0 0
  %1214 = vmatpush2.bf16.msra.mxu0 0
  %1215 = vmatprep.mubr.bf16.mxu0 0
  %1216 = vmatmul.mubr.bf16.gmra.mxu0 %v1181
  %v1217 = vpop.f32.mrf.mxu0
  %v1218 = vadd.f32 0.0, %v1217
  %v1219 = vpop.f32.mrf.mxu0
  %v1220 = vpop.f32.mrf.mxu0
  %v1221 = vpop.f32.mrf.mxu0
  %1222 = vdwg.mxu0
  %v1224 = vsel %vm1007, %v1004, 0
  %1226 = vmatprep.subr.bf16.mxu0 0
  %1227 = vmatpush1.bf16.msra.mxu0 0
  %1228 = vmatprep.subr.bf16.mxu0 0
  %1229 = vmatpush1.bf16.msra.mxu0 0
  %1230 = vmatprep.subr.bf16.mxu0 0
  %1231 = vmatpush1.bf16.msra.mxu0 0
  %1232 = vmatprep.subr.bf16.mxu0 0
  %1233 = vmatpush1.bf16.msra.mxu0 0
  %1234 = vmatprep.subr.bf16.mxu0 0
  %1235 = vmatpush1.bf16.msra.mxu0 0
  %1236 = vmatprep.subr.bf16.mxu0 0
  %1237 = vmatpush1.bf16.msra.mxu0 0
  %1238 = vmatprep.subr.bf16.mxu0 0
  %1239 = vmatpush1.bf16.msra.mxu0 0
  %1240 = vmatprep.subr.bf16.mxu0 0
  %1241 = vmatpush1.bf16.msra.mxu0 %v201
  %1242 = vmatprep.subr.bf16.mxu0 0
  %1243 = vmatpush2.bf16.msra.mxu0 0
  %1244 = vmatprep.subr.bf16.mxu0 0
  %1245 = vmatpush2.bf16.msra.mxu0 0
  %1246 = vmatprep.subr.bf16.mxu0 0
  %1247 = vmatpush2.bf16.msra.mxu0 0
  %1248 = vmatprep.subr.bf16.mxu0 0
  %1249 = vmatpush2.bf16.msra.mxu0 0
  %1250 = vmatprep.subr.bf16.mxu0 0
  %1251 = vmatpush2.bf16.msra.mxu0 0
  %1252 = vmatprep.subr.bf16.mxu0 0
  %1253 = vmatpush2.bf16.msra.mxu0 0
  %1254 = vmatprep.subr.bf16.mxu0 0
  %1255 = vmatpush2.bf16.msra.mxu0 0
  %1256 = vmatprep.subr.bf16.mxu0 0
  %1257 = vmatpush2.bf16.msra.mxu0 0
  %1258 = vmatprep.mubr.bf16.mxu0 0
  %1259 = vmatmul.mubr.bf16.gmra.mxu0 %v1224
  %v1260 = vpop.f32.mrf.mxu0
  %v1261 = vadd.f32 0.0, %v1260
  %v1262 = vpop.f32.mrf.mxu0
  %v1263 = vpop.f32.mrf.mxu0
  %v1264 = vpop.f32.mrf.mxu0
  %1265 = vdwg.mxu0
  %v1267 = vsel %vm1007, %v1005, 0
  %1269 = vmatprep.subr.bf16.mxu0 0
  %1270 = vmatpush1.bf16.msra.mxu0 0
  %1271 = vmatprep.subr.bf16.mxu0 0
  %1272 = vmatpush1.bf16.msra.mxu0 0
  %1273 = vmatprep.subr.bf16.mxu0 0
  %1274 = vmatpush1.bf16.msra.mxu0 0
  %1275 = vmatprep.subr.bf16.mxu0 0
  %1276 = vmatpush1.bf16.msra.mxu0 0
  %1277 = vmatprep.subr.bf16.mxu0 0
  %1278 = vmatpush1.bf16.msra.mxu0 0
  %1279 = vmatprep.subr.bf16.mxu0 0
  %1280 = vmatpush1.bf16.msra.mxu0 0
  %1281 = vmatprep.subr.bf16.mxu0 0
  %1282 = vmatpush1.bf16.msra.mxu0 0
  %1283 = vmatprep.subr.bf16.mxu0 0
  %1284 = vmatpush1.bf16.msra.mxu0 %v202
  %1285 = vmatprep.subr.bf16.mxu0 0
  %1286 = vmatpush2.bf16.msra.mxu0 0
  %1287 = vmatprep.subr.bf16.mxu0 0
  %1288 = vmatpush2.bf16.msra.mxu0 0
  %1289 = vmatprep.subr.bf16.mxu0 0
  %1290 = vmatpush2.bf16.msra.mxu0 0
  %1291 = vmatprep.subr.bf16.mxu0 0
  %1292 = vmatpush2.bf16.msra.mxu0 0
  %1293 = vmatprep.subr.bf16.mxu0 0
  %1294 = vmatpush2.bf16.msra.mxu0 0
  %1295 = vmatprep.subr.bf16.mxu0 0
  %1296 = vmatpush2.bf16.msra.mxu0 0
  %1297 = vmatprep.subr.bf16.mxu0 0
  %1298 = vmatpush2.bf16.msra.mxu0 0
  %1299 = vmatprep.subr.bf16.mxu0 0
  %1300 = vmatpush2.bf16.msra.mxu0 0
  %1301 = vmatprep.mubr.bf16.mxu0 0
  %1302 = vmatmul.mubr.bf16.gmra.mxu0 %v1267
  %v1303 = vpop.f32.mrf.mxu0
  %v1304 = vadd.f32 0.0, %v1303
  %v1305 = vpop.f32.mrf.mxu0
  %v1306 = vpop.f32.mrf.mxu0
  %v1307 = vpop.f32.mrf.mxu0
  %1308 = vdwg.mxu0
  %v1310 = vsel %vm1007, %v1006, 0
  %1312 = vmatprep.subr.bf16.mxu0 0
  %1313 = vmatpush1.bf16.msra.mxu0 0
  %1314 = vmatprep.subr.bf16.mxu0 0
  %1315 = vmatpush1.bf16.msra.mxu0 0
  %1316 = vmatprep.subr.bf16.mxu0 0
  %1317 = vmatpush1.bf16.msra.mxu0 0
  %1318 = vmatprep.subr.bf16.mxu0 0
  %1319 = vmatpush1.bf16.msra.mxu0 0
  %1320 = vmatprep.subr.bf16.mxu0 0
  %1321 = vmatpush1.bf16.msra.mxu0 0
  %1322 = vmatprep.subr.bf16.mxu0 0
  %1323 = vmatpush1.bf16.msra.mxu0 0
  %1324 = vmatprep.subr.bf16.mxu0 0
  %1325 = vmatpush1.bf16.msra.mxu0 0
  %1326 = vmatprep.subr.bf16.mxu0 0
  %1327 = vmatpush1.bf16.msra.mxu0 %v203
  %1328 = vmatprep.subr.bf16.mxu0 0
  %1329 = vmatpush2.bf16.msra.mxu0 0
  %1330 = vmatprep.subr.bf16.mxu0 0
  %1331 = vmatpush2.bf16.msra.mxu0 0
  %1332 = vmatprep.subr.bf16.mxu0 0
  %1333 = vmatpush2.bf16.msra.mxu0 0
  %1334 = vmatprep.subr.bf16.mxu0 0
  %1335 = vmatpush2.bf16.msra.mxu0 0
  %1336 = vmatprep.subr.bf16.mxu0 0
  %1337 = vmatpush2.bf16.msra.mxu0 0
  %1338 = vmatprep.subr.bf16.mxu0 0
  %1339 = vmatpush2.bf16.msra.mxu0 0
  %1340 = vmatprep.subr.bf16.mxu0 0
  %1341 = vmatpush2.bf16.msra.mxu0 0
  %1342 = vmatprep.subr.bf16.mxu0 0
  %1343 = vmatpush2.bf16.msra.mxu0 0
  %1344 = vmatprep.mubr.bf16.mxu0 0
  %1345 = vmatmul.mubr.bf16.gmra.mxu0 %v1310
  %v1346 = vpop.f32.mrf.mxu0
  %v1347 = vadd.f32 0.0, %v1346
  %v1348 = vpop.f32.mrf.mxu0
  %v1349 = vpop.f32.mrf.mxu0
  %v1350 = vpop.f32.mrf.mxu0
  %1351 = vdwg.mxu0
  %v1352 = vmul.f32 %v1046, %v18
  %v1353 = vmul.f32 %v1089, %v18
  %v1354 = vmul.f32 %v1132, %v18
  %v1355 = vmul.f32 %v1175, %v18
  %v1356 = vmul.f32 %v1218, %v18
  %v1357 = vmul.f32 %v1261, %v18
  %v1358 = vmul.f32 %v1304, %v18
  %v1359 = vmul.f32 %v1347, %v18
  %vm1360 = vcmask 200704
  %v1361 = vsel %vm1360, %v1352, 0.0
  %v1362 = vrot.slane %v1361, 4
  %v1363 = vadd.f32 %v1361, %v1362
  %v1364 = vrot.slane %v1363, 2
  %v1365 = vadd.f32 %v1363, %v1364
  %v1366 = vrot.slane %v1365, 1
  %v1367 = vadd.f32 %v1365, %v1366
  %v1368 = vsel %vm1360, %v1353, 0.0
  %v1369 = vrot.slane %v1368, 4
  %v1370 = vadd.f32 %v1368, %v1369
  %v1371 = vrot.slane %v1370, 2
  %v1372 = vadd.f32 %v1370, %v1371
  %v1373 = vrot.slane %v1372, 1
  %v1374 = vadd.f32 %v1372, %v1373
  %v1375 = vsel %vm1360, %v1354, 0.0
  %v1376 = vrot.slane %v1375, 4
  %v1377 = vadd.f32 %v1375, %v1376
  %v1378 = vrot.slane %v1377, 2
  %v1379 = vadd.f32 %v1377, %v1378
  %v1380 = vrot.slane %v1379, 1
  %v1381 = vadd.f32 %v1379, %v1380
  %v1382 = vsel %vm1360, %v1355, 0.0
  %v1383 = vrot.slane %v1382, 4
  %v1384 = vadd.f32 %v1382, %v1383
  %v1385 = vrot.slane %v1384, 2
  %v1386 = vadd.f32 %v1384, %v1385
  %v1387 = vrot.slane %v1386, 1
  %v1388 = vadd.f32 %v1386, %v1387
  %v1389 = vsel %vm1360, %v1356, 0.0
  %v1390 = vrot.slane %v1389, 4
  %v1391 = vadd.f32 %v1389, %v1390
  %v1392 = vrot.slane %v1391, 2
  %v1393 = vadd.f32 %v1391, %v1392
  %v1394 = vrot.slane %v1393, 1
  %v1395 = vadd.f32 %v1393, %v1394
  %v1396 = vsel %vm1360, %v1357, 0.0
  %v1397 = vrot.slane %v1396, 4
  %v1398 = vadd.f32 %v1396, %v1397
  %v1399 = vrot.slane %v1398, 2
  %v1400 = vadd.f32 %v1398, %v1399
  %v1401 = vrot.slane %v1400, 1
  %v1402 = vadd.f32 %v1400, %v1401
  %v1403 = vsel %vm1360, %v1358, 0.0
  %v1404 = vrot.slane %v1403, 4
  %v1405 = vadd.f32 %v1403, %v1404
  %v1406 = vrot.slane %v1405, 2
  %v1407 = vadd.f32 %v1405, %v1406
  %v1408 = vrot.slane %v1407, 1
  %v1409 = vadd.f32 %v1407, %v1408
  %v1410 = vsel %vm1360, %v1359, 0.0
  %v1411 = vrot.slane %v1410, 4
  %v1412 = vadd.f32 %v1410, %v1411
  %v1413 = vrot.slane %v1412, 2
  %v1414 = vadd.f32 %v1412, %v1413
  %v1415 = vrot.slane %v1414, 1
  %v1416 = vadd.f32 %v1414, %v1415
  %v1417 = vmul.f32 %v1367, %v1367
  %v1418 = vmul.f32 %v1374, %v1374
  %v1419 = vmul.f32 %v1381, %v1381
  %v1420 = vmul.f32 %v1388, %v1388
  %v1421 = vmul.f32 %v1395, %v1395
  %v1422 = vmul.f32 %v1402, %v1402
  %v1423 = vmul.f32 %v1409, %v1409
  %v1424 = vmul.f32 %v1416, %v1416
  %v1433 = vsel %vm301, %v1418, %v1417
  %v1434 = vsel %vm303, %v1419, %v1433
  %v1435 = vsel %vm305, %v1420, %v1434
  %v1436 = vsel %vm307, %v1421, %v1435
  %v1437 = vsel %vm309, %v1422, %v1436
  %v1438 = vsel %vm311, %v1423, %v1437
  %v1439 = vsel %vm313, %v1424, %v1438
  %v1440 = vsel %vm204, %v1439, 0
  %1442 = vmatprep.subr.mxu0 0.0
  %1443 = vmatpush1.msra.mxu0 0.0
  %1444 = vmatprep.subr.mxu0 0.0
  %1445 = vmatpush1.msra.mxu0 0.0
  %1446 = vmatprep.subr.mxu0 0.0
  %1447 = vmatpush1.msra.mxu0 0.0
  %1448 = vmatprep.subr.mxu0 0.0
  %1449 = vmatpush1.msra.mxu0 0.0
  %1450 = vmatprep.subr.mxu0 0.0
  %1451 = vmatpush1.msra.mxu0 0.0
  %1452 = vmatprep.subr.mxu0 0.0
  %1453 = vmatpush1.msra.mxu0 0.0
  %1454 = vmatprep.subr.mxu0 0.0
  %1455 = vmatpush1.msra.mxu0 0.0
  %1456 = vmatprep.subr.mxu0 0.0
  %1457 = vmatpush1.msra.mxu0 0.0
  %1458 = vmatprep.subr.mxu0 0.0
  %1459 = vmatpush1.msra.mxu0 0.0
  %1460 = vmatprep.subr.mxu0 0.0
  %1461 = vmatpush1.msra.mxu0 0.0
  %1462 = vmatprep.subr.mxu0 0.0
  %1463 = vmatpush1.msra.mxu0 0.0
  %1464 = vmatprep.subr.mxu0 0.0
  %1465 = vmatpush1.msra.mxu0 0.0
  %1466 = vmatprep.subr.mxu0 0.0
  %1467 = vmatpush1.msra.mxu0 %v319
  %1468 = vmatprep.subr.mxu0 0.0
  %1469 = vmatpush1.msra.mxu0 %v21
  %1470 = vmatprep.subr.mxu0 0.0
  %1471 = vmatpush1.msra.mxu0 %v20
  %1472 = vmatprep.subr.mxu0 0.0
  %1473 = vmatpush1.msra.mxu0 %v19
  %1474 = vmatprep.subr.mxu0 0.0
  %1475 = vmatpush2.msra.mxu0 0.0
  %1476 = vmatprep.subr.mxu0 0.0
  %1477 = vmatpush2.msra.mxu0 0.0
  %1478 = vmatprep.subr.mxu0 0.0
  %1479 = vmatpush2.msra.mxu0 0.0
  %1480 = vmatprep.subr.mxu0 0.0
  %1481 = vmatpush2.msra.mxu0 0.0
  %1482 = vmatprep.subr.mxu0 0.0
  %1483 = vmatpush2.msra.mxu0 0.0
  %1484 = vmatprep.subr.mxu0 0.0
  %1485 = vmatpush2.msra.mxu0 0.0
  %1486 = vmatprep.subr.mxu0 0.0
  %1487 = vmatpush2.msra.mxu0 0.0
  %1488 = vmatprep.subr.mxu0 0.0
  %1489 = vmatpush2.msra.mxu0 0.0
  %1490 = vmatprep.subr.mxu0 0.0
  %1491 = vmatpush2.msra.mxu0 0.0
  %1492 = vmatprep.subr.mxu0 0.0
  %1493 = vmatpush2.msra.mxu0 0.0
  %1494 = vmatprep.subr.mxu0 0.0
  %1495 = vmatpush2.msra.mxu0 0.0
  %1496 = vmatprep.subr.mxu0 0.0
  %1497 = vmatpush2.msra.mxu0 0.0
  %1498 = vmatprep.subr.mxu0 0.0
  %1499 = vmatpush2.msra.mxu0 0.0
  %1500 = vmatprep.subr.mxu0 0.0
  %1501 = vmatpush2.msra.mxu0 0.0
  %1502 = vmatprep.subr.mxu0 0.0
  %1503 = vmatpush2.msra.mxu0 0.0
  %1504 = vmatprep.subr.mxu0 0.0
  %1505 = vmatpush2.msra.mxu0 0.0
  %1506 = vmatprep.mubr.f32.mxu0 0.0
  %1507 = vmatmul.mubr.f32.gmra.mxu0 %v1440
  %v1508 = vpop.f32.mrf.mxu0
  %v1509 = vadd.f32 1e-07, %v1508
  %v1510 = vpop.f32.mrf.mxu0
  %1511 = vdwg.mxu0
  %v1512 = vrsqrt.pop %v1509
  %v1514 = vsel %vm392, %v1512, 0
  %1516 = vmatprep.subr.mxu0 0.0
  %1517 = vmatpush1.msra.mxu0 0.0
  %1518 = vmatprep.subr.mxu0 0.0
  %1519 = vmatpush1.msra.mxu0 0.0
  %1520 = vmatprep.subr.mxu0 0.0
  %1521 = vmatpush1.msra.mxu0 0.0
  %1522 = vmatprep.subr.mxu0 0.0
  %1523 = vmatpush1.msra.mxu0 0.0
  %1524 = vmatprep.subr.mxu0 0.0
  %1525 = vmatpush1.msra.mxu0 0.0
  %1526 = vmatprep.subr.mxu0 0.0
  %1527 = vmatpush1.msra.mxu0 0.0
  %1528 = vmatprep.subr.mxu0 0.0
  %1529 = vmatpush1.msra.mxu0 0.0
  %1530 = vmatprep.subr.mxu0 0.0
  %1531 = vmatpush1.msra.mxu0 0.0
  %1532 = vmatprep.subr.mxu0 0.0
  %1533 = vmatpush1.msra.mxu0 0.0
  %1534 = vmatprep.subr.mxu0 0.0
  %1535 = vmatpush1.msra.mxu0 0.0
  %1536 = vmatprep.subr.mxu0 0.0
  %1537 = vmatpush1.msra.mxu0 0.0
  %1538 = vmatprep.subr.mxu0 0.0
  %1539 = vmatpush1.msra.mxu0 0.0
  %1540 = vmatprep.subr.mxu0 0.0
  %1541 = vmatpush1.msra.mxu0 0.0
  %1542 = vmatprep.subr.mxu0 0.0
  %1543 = vmatpush1.msra.mxu0 0.0
  %1544 = vmatprep.subr.mxu0 0.0
  %1545 = vmatpush1.msra.mxu0 0.0
  %1546 = vmatprep.subr.mxu0 0.0
  %1547 = vmatpush1.msra.mxu0 %v398
  %1548 = vmatprep.subr.mxu0 0.0
  %1549 = vmatpush2.msra.mxu0 0.0
  %1550 = vmatprep.subr.mxu0 0.0
  %1551 = vmatpush2.msra.mxu0 0.0
  %1552 = vmatprep.subr.mxu0 0.0
  %1553 = vmatpush2.msra.mxu0 0.0
  %1554 = vmatprep.subr.mxu0 0.0
  %1555 = vmatpush2.msra.mxu0 0.0
  %1556 = vmatprep.subr.mxu0 0.0
  %1557 = vmatpush2.msra.mxu0 0.0
  %1558 = vmatprep.subr.mxu0 0.0
  %1559 = vmatpush2.msra.mxu0 0.0
  %1560 = vmatprep.subr.mxu0 0.0
  %1561 = vmatpush2.msra.mxu0 0.0
  %1562 = vmatprep.subr.mxu0 0.0
  %1563 = vmatpush2.msra.mxu0 0.0
  %1564 = vmatprep.subr.mxu0 0.0
  %1565 = vmatpush2.msra.mxu0 0.0
  %1566 = vmatprep.subr.mxu0 0.0
  %1567 = vmatpush2.msra.mxu0 0.0
  %1568 = vmatprep.subr.mxu0 0.0
  %1569 = vmatpush2.msra.mxu0 0.0
  %1570 = vmatprep.subr.mxu0 0.0
  %1571 = vmatpush2.msra.mxu0 0.0
  %1572 = vmatprep.subr.mxu0 0.0
  %1573 = vmatpush2.msra.mxu0 0.0
  %1574 = vmatprep.subr.mxu0 0.0
  %1575 = vmatpush2.msra.mxu0 0.0
  %1576 = vmatprep.subr.mxu0 0.0
  %1577 = vmatpush2.msra.mxu0 0.0
  %1578 = vmatprep.subr.mxu0 0.0
  %1579 = vmatpush2.msra.mxu0 0.0
  %1580 = vmatprep.mubr.f32.mxu0 0.0
  %1581 = vmatmul.mubr.f32.gmra.mxu0 %v1514
  %v1582 = vpop.f32.mrf.mxu0
  %v1583 = vadd.f32 0.0, %v1582
  %v1584 = vpop.f32.mrf.mxu0
  %1585 = vdwg.mxu0
  %v1587 = vrot.slane %v1583, 1
  %v1588 = vrot.slane %v1583, 2
  %v1589 = vrot.slane %v1583, 3
  %v1590 = vrot.slane %v1583, 4
  %v1591 = vrot.slane %v1583, 5
  %v1592 = vrot.slane %v1583, 6
  %v1593 = vrot.slane %v1583, 7
  %v1602 = vmul.f32 %v1367, %v1583
  %v1603 = vmul.f32 %v1374, %v1587
  %v1604 = vmul.f32 %v1381, %v1588
  %v1605 = vmul.f32 %v1388, %v1589
  %v1606 = vmul.f32 %v1395, %v1590
  %v1607 = vmul.f32 %v1402, %v1591
  %v1608 = vmul.f32 %v1409, %v1592
  %v1609 = vmul.f32 %v1416, %v1593
  %v1610 = vlaneseq
  %v1611 = vshrl.u32 %v1610, 7
  %v1612 = vsub.s32 0, %v1611
  %v1613 = vrot.slane %v1602, %v1612
  %v1614 = vlaneseq
  %v1615 = vshrl.u32 %v1614, 7
  %v1616 = vsub.s32 0, %v1615
  %v1617 = vrot.slane %v1603, %v1616
  %v1618 = vlaneseq
  %v1619 = vshrl.u32 %v1618, 7
  %v1620 = vsub.s32 0, %v1619
  %v1621 = vrot.slane %v1604, %v1620
  %v1622 = vlaneseq
  %v1623 = vshrl.u32 %v1622, 7
  %v1624 = vsub.s32 0, %v1623
  %v1625 = vrot.slane %v1605, %v1624
  %v1626 = vlaneseq
  %v1627 = vshrl.u32 %v1626, 7
  %v1628 = vsub.s32 0, %v1627
  %v1629 = vrot.slane %v1606, %v1628
  %v1630 = vlaneseq
  %v1631 = vshrl.u32 %v1630, 7
  %v1632 = vsub.s32 0, %v1631
  %v1633 = vrot.slane %v1607, %v1632
  %v1634 = vlaneseq
  %v1635 = vshrl.u32 %v1634, 7
  %v1636 = vsub.s32 0, %v1635
  %v1637 = vrot.slane %v1608, %v1636
  %v1638 = vlaneseq
  %v1639 = vshrl.u32 %v1638, 7
  %v1640 = vsub.s32 0, %v1639
  %v1641 = vrot.slane %v1609, %v1640
  %v1642 = vmul.f32 %v1613, %v18
  %v1643 = vmul.f32 %v1617, %v18
  %v1644 = vmul.f32 %v1621, %v18
  %v1645 = vmul.f32 %v1625, %v18
  %v1646 = vmul.f32 %v1629, %v18
  %v1647 = vmul.f32 %v1633, %v18
  %v1648 = vmul.f32 %v1637, %v18
  %v1649 = vmul.f32 %v1641, %v18
  %v1650 = vpack.c.bf16 %v1642, %v1642
  %v1651 = vpack.c.bf16 %v1643, %v1643
  %v1652 = vpack.c.bf16 %v1644, %v1644
  %v1653 = vpack.c.bf16 %v1645, %v1645
  %v1654 = vpack.c.bf16 %v1646, %v1646
  %v1655 = vpack.c.bf16 %v1647, %v1647
  %v1656 = vpack.c.bf16 %v1648, %v1648
  %v1657 = vpack.c.bf16 %v1649, %v1649
  %v1659 = vsel %vm204, %v1650, 0
  %1661 = vmatprep.subr.bf16.mxu0 0
  %1662 = vmatpush1.bf16.xpose.msra.mxu0 0
  %1663 = vmatprep.subr.bf16.mxu0 0
  %1664 = vmatpush1.bf16.xpose.msra.mxu0 0
  %1665 = vmatprep.subr.bf16.mxu0 0
  %1666 = vmatpush1.bf16.xpose.msra.mxu0 0
  %1667 = vmatprep.subr.bf16.mxu0 0
  %1668 = vmatpush1.bf16.xpose.msra.mxu0 0
  %1669 = vmatprep.subr.bf16.mxu0 0
  %1670 = vmatpush1.bf16.xpose.msra.mxu0 0
  %1671 = vmatprep.subr.bf16.mxu0 0
  %1672 = vmatpush1.bf16.xpose.msra.mxu0 0
  %1673 = vmatprep.subr.bf16.mxu0 0
  %1674 = vmatpush1.bf16.xpose.msra.mxu0 0
  %1675 = vmatprep.subr.bf16.mxu0 0
  %1676 = vmatpush1.bf16.xpose.msra.mxu0 %v546
  %1677 = vmatprep.subr.bf16.mxu0 0
  %1678 = vmatpush2.bf16.xpose.msra.mxu0 0
  %1679 = vmatprep.subr.bf16.mxu0 0
  %1680 = vmatpush2.bf16.xpose.msra.mxu0 0
  %1681 = vmatprep.subr.bf16.mxu0 0
  %1682 = vmatpush2.bf16.xpose.msra.mxu0 0
  %1683 = vmatprep.subr.bf16.mxu0 0
  %1684 = vmatpush2.bf16.xpose.msra.mxu0 0
  %1685 = vmatprep.subr.bf16.mxu0 0
  %1686 = vmatpush2.bf16.xpose.msra.mxu0 0
  %1687 = vmatprep.subr.bf16.mxu0 0
  %1688 = vmatpush2.bf16.xpose.msra.mxu0 0
  %1689 = vmatprep.subr.bf16.mxu0 0
  %1690 = vmatpush2.bf16.xpose.msra.mxu0 0
  %1691 = vmatprep.subr.bf16.mxu0 0
  %1692 = vmatpush2.bf16.xpose.msra.mxu0 0
  %1693 = vmatprep.mubr.bf16.mxu0 0
  %1694 = vmatmul.mubr.bf16.gmra.mxu0 %v1659
  %v1695 = vpop.f32.mrf.mxu0
  %v1696 = vadd.f32 0.0, %v1695
  %v1697 = vpop.f32.mrf.mxu0
  %v1698 = vpop.f32.mrf.mxu0
  %v1699 = vpop.f32.mrf.mxu0
  %1700 = vdwg.mxu0
  %v1702 = vsel %vm204, %v1651, 0
  %1704 = vmatprep.subr.bf16.mxu0 0
  %1705 = vmatpush1.bf16.xpose.msra.mxu0 0
  %1706 = vmatprep.subr.bf16.mxu0 0
  %1707 = vmatpush1.bf16.xpose.msra.mxu0 0
  %1708 = vmatprep.subr.bf16.mxu0 0
  %1709 = vmatpush1.bf16.xpose.msra.mxu0 0
  %1710 = vmatprep.subr.bf16.mxu0 0
  %1711 = vmatpush1.bf16.xpose.msra.mxu0 0
  %1712 = vmatprep.subr.bf16.mxu0 0
  %1713 = vmatpush1.bf16.xpose.msra.mxu0 0
  %1714 = vmatprep.subr.bf16.mxu0 0
  %1715 = vmatpush1.bf16.xpose.msra.mxu0 0
  %1716 = vmatprep.subr.bf16.mxu0 0
  %1717 = vmatpush1.bf16.xpose.msra.mxu0 0
  %1718 = vmatprep.subr.bf16.mxu0 0
  %1719 = vmatpush1.bf16.xpose.msra.mxu0 %v592
  %1720 = vmatprep.subr.bf16.mxu0 0
  %1721 = vmatpush2.bf16.xpose.msra.mxu0 0
  %1722 = vmatprep.subr.bf16.mxu0 0
  %1723 = vmatpush2.bf16.xpose.msra.mxu0 0
  %1724 = vmatprep.subr.bf16.mxu0 0
  %1725 = vmatpush2.bf16.xpose.msra.mxu0 0
  %1726 = vmatprep.subr.bf16.mxu0 0
  %1727 = vmatpush2.bf16.xpose.msra.mxu0 0
  %1728 = vmatprep.subr.bf16.mxu0 0
  %1729 = vmatpush2.bf16.xpose.msra.mxu0 0
  %1730 = vmatprep.subr.bf16.mxu0 0
  %1731 = vmatpush2.bf16.xpose.msra.mxu0 0
  %1732 = vmatprep.subr.bf16.mxu0 0
  %1733 = vmatpush2.bf16.xpose.msra.mxu0 0
  %1734 = vmatprep.subr.bf16.mxu0 0
  %1735 = vmatpush2.bf16.xpose.msra.mxu0 0
  %1736 = vmatprep.mubr.bf16.mxu0 0
  %1737 = vmatmul.mubr.bf16.gmra.mxu0 %v1702
  %v1738 = vpop.f32.mrf.mxu0
  %v1739 = vadd.f32 0.0, %v1738
  %v1740 = vpop.f32.mrf.mxu0
  %v1741 = vpop.f32.mrf.mxu0
  %v1742 = vpop.f32.mrf.mxu0
  %1743 = vdwg.mxu0
  %v1745 = vsel %vm204, %v1652, 0
  %1747 = vmatprep.subr.bf16.mxu0 0
  %1748 = vmatpush1.bf16.xpose.msra.mxu0 0
  %1749 = vmatprep.subr.bf16.mxu0 0
  %1750 = vmatpush1.bf16.xpose.msra.mxu0 0
  %1751 = vmatprep.subr.bf16.mxu0 0
  %1752 = vmatpush1.bf16.xpose.msra.mxu0 0
  %1753 = vmatprep.subr.bf16.mxu0 0
  %1754 = vmatpush1.bf16.xpose.msra.mxu0 0
  %1755 = vmatprep.subr.bf16.mxu0 0
  %1756 = vmatpush1.bf16.xpose.msra.mxu0 0
  %1757 = vmatprep.subr.bf16.mxu0 0
  %1758 = vmatpush1.bf16.xpose.msra.mxu0 0
  %1759 = vmatprep.subr.bf16.mxu0 0
  %1760 = vmatpush1.bf16.xpose.msra.mxu0 0
  %1761 = vmatprep.subr.bf16.mxu0 0
  %1762 = vmatpush1.bf16.xpose.msra.mxu0 %v638
  %1763 = vmatprep.subr.bf16.mxu0 0
  %1764 = vmatpush2.bf16.xpose.msra.mxu0 0
  %1765 = vmatprep.subr.bf16.mxu0 0
  %1766 = vmatpush2.bf16.xpose.msra.mxu0 0
  %1767 = vmatprep.subr.bf16.mxu0 0
  %1768 = vmatpush2.bf16.xpose.msra.mxu0 0
  %1769 = vmatprep.subr.bf16.mxu0 0
  %1770 = vmatpush2.bf16.xpose.msra.mxu0 0
  %1771 = vmatprep.subr.bf16.mxu0 0
  %1772 = vmatpush2.bf16.xpose.msra.mxu0 0
  %1773 = vmatprep.subr.bf16.mxu0 0
  %1774 = vmatpush2.bf16.xpose.msra.mxu0 0
  %1775 = vmatprep.subr.bf16.mxu0 0
  %1776 = vmatpush2.bf16.xpose.msra.mxu0 0
  %1777 = vmatprep.subr.bf16.mxu0 0
  %1778 = vmatpush2.bf16.xpose.msra.mxu0 0
  %1779 = vmatprep.mubr.bf16.mxu0 0
  %1780 = vmatmul.mubr.bf16.gmra.mxu0 %v1745
  %v1781 = vpop.f32.mrf.mxu0
  %v1782 = vadd.f32 0.0, %v1781
  %v1783 = vpop.f32.mrf.mxu0
  %v1784 = vpop.f32.mrf.mxu0
  %v1785 = vpop.f32.mrf.mxu0
  %1786 = vdwg.mxu0
  %v1788 = vsel %vm204, %v1653, 0
  %1790 = vmatprep.subr.bf16.mxu0 0
  %1791 = vmatpush1.bf16.xpose.msra.mxu0 0
  %1792 = vmatprep.subr.bf16.mxu0 0
  %1793 = vmatpush1.bf16.xpose.msra.mxu0 0
  %1794 = vmatprep.subr.bf16.mxu0 0
  %1795 = vmatpush1.bf16.xpose.msra.mxu0 0
  %1796 = vmatprep.subr.bf16.mxu0 0
  %1797 = vmatpush1.bf16.xpose.msra.mxu0 0
  %1798 = vmatprep.subr.bf16.mxu0 0
  %1799 = vmatpush1.bf16.xpose.msra.mxu0 0
  %1800 = vmatprep.subr.bf16.mxu0 0
  %1801 = vmatpush1.bf16.xpose.msra.mxu0 0
  %1802 = vmatprep.subr.bf16.mxu0 0
  %1803 = vmatpush1.bf16.xpose.msra.mxu0 0
  %1804 = vmatprep.subr.bf16.mxu0 0
  %1805 = vmatpush1.bf16.xpose.msra.mxu0 %v684
  %1806 = vmatprep.subr.bf16.mxu0 0
  %1807 = vmatpush2.bf16.xpose.msra.mxu0 0
  %1808 = vmatprep.subr.bf16.mxu0 0
  %1809 = vmatpush2.bf16.xpose.msra.mxu0 0
  %1810 = vmatprep.subr.bf16.mxu0 0
  %1811 = vmatpush2.bf16.xpose.msra.mxu0 0
  %1812 = vmatprep.subr.bf16.mxu0 0
  %1813 = vmatpush2.bf16.xpose.msra.mxu0 0
  %1814 = vmatprep.subr.bf16.mxu0 0
  %1815 = vmatpush2.bf16.xpose.msra.mxu0 0
  %1816 = vmatprep.subr.bf16.mxu0 0
  %1817 = vmatpush2.bf16.xpose.msra.mxu0 0
  %1818 = vmatprep.subr.bf16.mxu0 0
  %1819 = vmatpush2.bf16.xpose.msra.mxu0 0
  %1820 = vmatprep.subr.bf16.mxu0 0
  %1821 = vmatpush2.bf16.xpose.msra.mxu0 0
  %1822 = vmatprep.mubr.bf16.mxu0 0
  %1823 = vmatmul.mubr.bf16.gmra.mxu0 %v1788
  %v1824 = vpop.f32.mrf.mxu0
  %v1825 = vadd.f32 0.0, %v1824
  %v1826 = vpop.f32.mrf.mxu0
  %v1827 = vpop.f32.mrf.mxu0
  %v1828 = vpop.f32.mrf.mxu0
  %1829 = vdwg.mxu0
  %v1831 = vsel %vm204, %v1654, 0
  %1833 = vmatprep.subr.bf16.mxu0 0
  %1834 = vmatpush1.bf16.xpose.msra.mxu0 0
  %1835 = vmatprep.subr.bf16.mxu0 0
  %1836 = vmatpush1.bf16.xpose.msra.mxu0 0
  %1837 = vmatprep.subr.bf16.mxu0 0
  %1838 = vmatpush1.bf16.xpose.msra.mxu0 0
  %1839 = vmatprep.subr.bf16.mxu0 0
  %1840 = vmatpush1.bf16.xpose.msra.mxu0 0
  %1841 = vmatprep.subr.bf16.mxu0 0
  %1842 = vmatpush1.bf16.xpose.msra.mxu0 0
  %1843 = vmatprep.subr.bf16.mxu0 0
  %1844 = vmatpush1.bf16.xpose.msra.mxu0 0
  %1845 = vmatprep.subr.bf16.mxu0 0
  %1846 = vmatpush1.bf16.xpose.msra.mxu0 0
  %1847 = vmatprep.subr.bf16.mxu0 0
  %1848 = vmatpush1.bf16.xpose.msra.mxu0 %v730
  %1849 = vmatprep.subr.bf16.mxu0 0
  %1850 = vmatpush2.bf16.xpose.msra.mxu0 0
  %1851 = vmatprep.subr.bf16.mxu0 0
  %1852 = vmatpush2.bf16.xpose.msra.mxu0 0
  %1853 = vmatprep.subr.bf16.mxu0 0
  %1854 = vmatpush2.bf16.xpose.msra.mxu0 0
  %1855 = vmatprep.subr.bf16.mxu0 0
  %1856 = vmatpush2.bf16.xpose.msra.mxu0 0
  %1857 = vmatprep.subr.bf16.mxu0 0
  %1858 = vmatpush2.bf16.xpose.msra.mxu0 0
  %1859 = vmatprep.subr.bf16.mxu0 0
  %1860 = vmatpush2.bf16.xpose.msra.mxu0 0
  %1861 = vmatprep.subr.bf16.mxu0 0
  %1862 = vmatpush2.bf16.xpose.msra.mxu0 0
  %1863 = vmatprep.subr.bf16.mxu0 0
  %1864 = vmatpush2.bf16.xpose.msra.mxu0 0
  %1865 = vmatprep.mubr.bf16.mxu0 0
  %1866 = vmatmul.mubr.bf16.gmra.mxu0 %v1831
  %v1867 = vpop.f32.mrf.mxu0
  %v1868 = vadd.f32 0.0, %v1867
  %v1869 = vpop.f32.mrf.mxu0
  %v1870 = vpop.f32.mrf.mxu0
  %v1871 = vpop.f32.mrf.mxu0
  %1872 = vdwg.mxu0
  %v1874 = vsel %vm204, %v1655, 0
  %1876 = vmatprep.subr.bf16.mxu0 0
  %1877 = vmatpush1.bf16.xpose.msra.mxu0 0
  %1878 = vmatprep.subr.bf16.mxu0 0
  %1879 = vmatpush1.bf16.xpose.msra.mxu0 0
  %1880 = vmatprep.subr.bf16.mxu0 0
  %1881 = vmatpush1.bf16.xpose.msra.mxu0 0
  %1882 = vmatprep.subr.bf16.mxu0 0
  %1883 = vmatpush1.bf16.xpose.msra.mxu0 0
  %1884 = vmatprep.subr.bf16.mxu0 0
  %1885 = vmatpush1.bf16.xpose.msra.mxu0 0
  %1886 = vmatprep.subr.bf16.mxu0 0
  %1887 = vmatpush1.bf16.xpose.msra.mxu0 0
  %1888 = vmatprep.subr.bf16.mxu0 0
  %1889 = vmatpush1.bf16.xpose.msra.mxu0 0
  %1890 = vmatprep.subr.bf16.mxu0 0
  %1891 = vmatpush1.bf16.xpose.msra.mxu0 %v776
  %1892 = vmatprep.subr.bf16.mxu0 0
  %1893 = vmatpush2.bf16.xpose.msra.mxu0 0
  %1894 = vmatprep.subr.bf16.mxu0 0
  %1895 = vmatpush2.bf16.xpose.msra.mxu0 0
  %1896 = vmatprep.subr.bf16.mxu0 0
  %1897 = vmatpush2.bf16.xpose.msra.mxu0 0
  %1898 = vmatprep.subr.bf16.mxu0 0
  %1899 = vmatpush2.bf16.xpose.msra.mxu0 0
  %1900 = vmatprep.subr.bf16.mxu0 0
  %1901 = vmatpush2.bf16.xpose.msra.mxu0 0
  %1902 = vmatprep.subr.bf16.mxu0 0
  %1903 = vmatpush2.bf16.xpose.msra.mxu0 0
  %1904 = vmatprep.subr.bf16.mxu0 0
  %1905 = vmatpush2.bf16.xpose.msra.mxu0 0
  %1906 = vmatprep.subr.bf16.mxu0 0
  %1907 = vmatpush2.bf16.xpose.msra.mxu0 0
  %1908 = vmatprep.mubr.bf16.mxu0 0
  %1909 = vmatmul.mubr.bf16.gmra.mxu0 %v1874
  %v1910 = vpop.f32.mrf.mxu0
  %v1911 = vadd.f32 0.0, %v1910
  %v1912 = vpop.f32.mrf.mxu0
  %v1913 = vpop.f32.mrf.mxu0
  %v1914 = vpop.f32.mrf.mxu0
  %1915 = vdwg.mxu0
  %v1917 = vsel %vm204, %v1656, 0
  %1919 = vmatprep.subr.bf16.mxu0 0
  %1920 = vmatpush1.bf16.xpose.msra.mxu0 0
  %1921 = vmatprep.subr.bf16.mxu0 0
  %1922 = vmatpush1.bf16.xpose.msra.mxu0 0
  %1923 = vmatprep.subr.bf16.mxu0 0
  %1924 = vmatpush1.bf16.xpose.msra.mxu0 0
  %1925 = vmatprep.subr.bf16.mxu0 0
  %1926 = vmatpush1.bf16.xpose.msra.mxu0 0
  %1927 = vmatprep.subr.bf16.mxu0 0
  %1928 = vmatpush1.bf16.xpose.msra.mxu0 0
  %1929 = vmatprep.subr.bf16.mxu0 0
  %1930 = vmatpush1.bf16.xpose.msra.mxu0 0
  %1931 = vmatprep.subr.bf16.mxu0 0
  %1932 = vmatpush1.bf16.xpose.msra.mxu0 0
  %1933 = vmatprep.subr.bf16.mxu0 0
  %1934 = vmatpush1.bf16.xpose.msra.mxu0 %v822
  %1935 = vmatprep.subr.bf16.mxu0 0
  %1936 = vmatpush2.bf16.xpose.msra.mxu0 0
  %1937 = vmatprep.subr.bf16.mxu0 0
  %1938 = vmatpush2.bf16.xpose.msra.mxu0 0
  %1939 = vmatprep.subr.bf16.mxu0 0
  %1940 = vmatpush2.bf16.xpose.msra.mxu0 0
  %1941 = vmatprep.subr.bf16.mxu0 0
  %1942 = vmatpush2.bf16.xpose.msra.mxu0 0
  %1943 = vmatprep.subr.bf16.mxu0 0
  %1944 = vmatpush2.bf16.xpose.msra.mxu0 0
  %1945 = vmatprep.subr.bf16.mxu0 0
  %1946 = vmatpush2.bf16.xpose.msra.mxu0 0
  %1947 = vmatprep.subr.bf16.mxu0 0
  %1948 = vmatpush2.bf16.xpose.msra.mxu0 0
  %1949 = vmatprep.subr.bf16.mxu0 0
  %1950 = vmatpush2.bf16.xpose.msra.mxu0 0
  %1951 = vmatprep.mubr.bf16.mxu0 0
  %1952 = vmatmul.mubr.bf16.gmra.mxu0 %v1917
  %v1953 = vpop.f32.mrf.mxu0
  %v1954 = vadd.f32 0.0, %v1953
  %v1955 = vpop.f32.mrf.mxu0
  %v1956 = vpop.f32.mrf.mxu0
  %v1957 = vpop.f32.mrf.mxu0
  %1958 = vdwg.mxu0
  %v1960 = vsel %vm204, %v1657, 0
  %1962 = vmatprep.subr.bf16.mxu0 0
  %1963 = vmatpush1.bf16.xpose.msra.mxu0 0
  %1964 = vmatprep.subr.bf16.mxu0 0
  %1965 = vmatpush1.bf16.xpose.msra.mxu0 0
  %1966 = vmatprep.subr.bf16.mxu0 0
  %1967 = vmatpush1.bf16.xpose.msra.mxu0 0
  %1968 = vmatprep.subr.bf16.mxu0 0
  %1969 = vmatpush1.bf16.xpose.msra.mxu0 0
  %1970 = vmatprep.subr.bf16.mxu0 0
  %1971 = vmatpush1.bf16.xpose.msra.mxu0 0
  %1972 = vmatprep.subr.bf16.mxu0 0
  %1973 = vmatpush1.bf16.xpose.msra.mxu0 0
  %1974 = vmatprep.subr.bf16.mxu0 0
  %1975 = vmatpush1.bf16.xpose.msra.mxu0 0
  %1976 = vmatprep.subr.bf16.mxu0 0
  %1977 = vmatpush1.bf16.xpose.msra.mxu0 %v868
  %1978 = vmatprep.subr.bf16.mxu0 0
  %1979 = vmatpush2.bf16.xpose.msra.mxu0 0
  %1980 = vmatprep.subr.bf16.mxu0 0
  %1981 = vmatpush2.bf16.xpose.msra.mxu0 0
  %1982 = vmatprep.subr.bf16.mxu0 0
  %1983 = vmatpush2.bf16.xpose.msra.mxu0 0
  %1984 = vmatprep.subr.bf16.mxu0 0
  %1985 = vmatpush2.bf16.xpose.msra.mxu0 0
  %1986 = vmatprep.subr.bf16.mxu0 0
  %1987 = vmatpush2.bf16.xpose.msra.mxu0 0
  %1988 = vmatprep.subr.bf16.mxu0 0
  %1989 = vmatpush2.bf16.xpose.msra.mxu0 0
  %1990 = vmatprep.subr.bf16.mxu0 0
  %1991 = vmatpush2.bf16.xpose.msra.mxu0 0
  %1992 = vmatprep.subr.bf16.mxu0 0
  %1993 = vmatpush2.bf16.xpose.msra.mxu0 0
  %1994 = vmatprep.mubr.bf16.mxu0 0
  %1995 = vmatmul.mubr.bf16.gmra.mxu0 %v1960
  %v1996 = vpop.f32.mrf.mxu0
  %v1997 = vadd.f32 0.0, %v1996
  %v1998 = vpop.f32.mrf.mxu0
  %v1999 = vpop.f32.mrf.mxu0
  %v2000 = vpop.f32.mrf.mxu0
  %2001 = vdwg.mxu0
  %v2002 = vmul.f32 %v1696, 1.442695
  %v2003 = vpow.pop %v2002
  %v2004 = vmul.f32 %v1739, 1.442695
  %v2005 = vpow.pop %v2004
  %v2006 = vmul.f32 %v1782, 1.442695
  %v2007 = vpow.pop %v2006
  %v2008 = vmul.f32 %v1825, 1.442695
  %v2009 = vpow.pop %v2008
  %v2010 = vmul.f32 %v1868, 1.442695
  %v2011 = vpow.pop %v2010
  %v2012 = vmul.f32 %v1911, 1.442695
  %v2013 = vpow.pop %v2012
  %v2014 = vmul.f32 %v1954, 1.442695
  %v2015 = vpow.pop %v2014
  %v2016 = vmul.f32 %v1997, 1.442695
  %v2017 = vpow.pop %v2016
  %v2018 = vsel %vm926, %v2003, 0.0
  %v2019 = vrot.slane %v2018, 4
  %v2020 = vadd.f32 %v2018, %v2019
  %v2021 = vrot.slane %v2020, 2
  %v2022 = vadd.f32 %v2020, %v2021
  %v2023 = vrot.slane %v2022, 1
  %v2024 = vadd.f32 %v2022, %v2023
  %v2025 = vsel %vm926, %v2005, 0.0
  %v2026 = vrot.slane %v2025, 4
  %v2027 = vadd.f32 %v2025, %v2026
  %v2028 = vrot.slane %v2027, 2
  %v2029 = vadd.f32 %v2027, %v2028
  %v2030 = vrot.slane %v2029, 1
  %v2031 = vadd.f32 %v2029, %v2030
  %v2032 = vsel %vm926, %v2007, 0.0
  %v2033 = vrot.slane %v2032, 4
  %v2034 = vadd.f32 %v2032, %v2033
  %v2035 = vrot.slane %v2034, 2
  %v2036 = vadd.f32 %v2034, %v2035
  %v2037 = vrot.slane %v2036, 1
  %v2038 = vadd.f32 %v2036, %v2037
  %v2039 = vsel %vm926, %v2009, 0.0
  %v2040 = vrot.slane %v2039, 4
  %v2041 = vadd.f32 %v2039, %v2040
  %v2042 = vrot.slane %v2041, 2
  %v2043 = vadd.f32 %v2041, %v2042
  %v2044 = vrot.slane %v2043, 1
  %v2045 = vadd.f32 %v2043, %v2044
  %v2046 = vsel %vm926, %v2011, 0.0
  %v2047 = vrot.slane %v2046, 4
  %v2048 = vadd.f32 %v2046, %v2047
  %v2049 = vrot.slane %v2048, 2
  %v2050 = vadd.f32 %v2048, %v2049
  %v2051 = vrot.slane %v2050, 1
  %v2052 = vadd.f32 %v2050, %v2051
  %v2053 = vsel %vm926, %v2013, 0.0
  %v2054 = vrot.slane %v2053, 4
  %v2055 = vadd.f32 %v2053, %v2054
  %v2056 = vrot.slane %v2055, 2
  %v2057 = vadd.f32 %v2055, %v2056
  %v2058 = vrot.slane %v2057, 1
  %v2059 = vadd.f32 %v2057, %v2058
  %v2060 = vsel %vm926, %v2015, 0.0
  %v2061 = vrot.slane %v2060, 4
  %v2062 = vadd.f32 %v2060, %v2061
  %v2063 = vrot.slane %v2062, 2
  %v2064 = vadd.f32 %v2062, %v2063
  %v2065 = vrot.slane %v2064, 1
  %v2066 = vadd.f32 %v2064, %v2065
  %v2067 = vsel %vm926, %v2017, 0.0
  %v2068 = vrot.slane %v2067, 4
  %v2069 = vadd.f32 %v2067, %v2068
  %v2070 = vrot.slane %v2069, 2
  %v2071 = vadd.f32 %v2069, %v2070
  %v2072 = vrot.slane %v2071, 1
  %v2073 = vadd.f32 %v2071, %v2072
  %v2074 = vrcp.pop %v2024
  %v2075 = vrcp.pop %v2031
  %v2076 = vrcp.pop %v2038
  %v2077 = vrcp.pop %v2045
  %v2078 = vrcp.pop %v2052
  %v2079 = vrcp.pop %v2059
  %v2080 = vrcp.pop %v2066
  %v2081 = vrcp.pop %v2073
  %v2082 = vmul.f32 %v2003, %v2074
  %v2083 = vmul.f32 %v2005, %v2075
  %v2084 = vmul.f32 %v2007, %v2076
  %v2085 = vmul.f32 %v2009, %v2077
  %v2086 = vmul.f32 %v2011, %v2078
  %v2087 = vmul.f32 %v2013, %v2079
  %v2088 = vmul.f32 %v2015, %v2080
  %v2089 = vmul.f32 %v2017, %v2081
  %v2090 = vpack.c.bf16 %v2082, %v2082
  %v2091 = vpack.c.bf16 %v2083, %v2083
  %v2092 = vpack.c.bf16 %v2084, %v2084
  %v2093 = vpack.c.bf16 %v2085, %v2085
  %v2094 = vpack.c.bf16 %v2086, %v2086
  %v2095 = vpack.c.bf16 %v2087, %v2087
  %v2096 = vpack.c.bf16 %v2088, %v2088
  %v2097 = vpack.c.bf16 %v2089, %v2089
  %v2099 = vsel %vm1007, %v2090, 0
  %2101 = vmatprep.subr.bf16.mxu0 0
  %2102 = vmatpush1.bf16.msra.mxu0 0
  %2103 = vmatprep.subr.bf16.mxu0 0
  %2104 = vmatpush1.bf16.msra.mxu0 0
  %2105 = vmatprep.subr.bf16.mxu0 0
  %2106 = vmatpush1.bf16.msra.mxu0 0
  %2107 = vmatprep.subr.bf16.mxu0 0
  %2108 = vmatpush1.bf16.msra.mxu0 0
  %2109 = vmatprep.subr.bf16.mxu0 0
  %2110 = vmatpush1.bf16.msra.mxu0 0
  %2111 = vmatprep.subr.bf16.mxu0 0
  %2112 = vmatpush1.bf16.msra.mxu0 0
  %2113 = vmatprep.subr.bf16.mxu0 0
  %2114 = vmatpush1.bf16.msra.mxu0 0
  %2115 = vmatprep.subr.bf16.mxu0 0
  %2116 = vmatpush1.bf16.msra.mxu0 %v196
  %2117 = vmatprep.subr.bf16.mxu0 0
  %2118 = vmatpush2.bf16.msra.mxu0 0
  %2119 = vmatprep.subr.bf16.mxu0 0
  %2120 = vmatpush2.bf16.msra.mxu0 0
  %2121 = vmatprep.subr.bf16.mxu0 0
  %2122 = vmatpush2.bf16.msra.mxu0 0
  %2123 = vmatprep.subr.bf16.mxu0 0
  %2124 = vmatpush2.bf16.msra.mxu0 0
  %2125 = vmatprep.subr.bf16.mxu0 0
  %2126 = vmatpush2.bf16.msra.mxu0 0
  %2127 = vmatprep.subr.bf16.mxu0 0
  %2128 = vmatpush2.bf16.msra.mxu0 0
  %2129 = vmatprep.subr.bf16.mxu0 0
  %2130 = vmatpush2.bf16.msra.mxu0 0
  %2131 = vmatprep.subr.bf16.mxu0 0
  %2132 = vmatpush2.bf16.msra.mxu0 0
  %2133 = vmatprep.mubr.bf16.mxu0 0
  %2134 = vmatmul.mubr.bf16.gmra.mxu0 %v2099
  %v2135 = vpop.f32.mrf.mxu0
  %v2136 = vadd.f32 0.0, %v2135
  %v2137 = vpop.f32.mrf.mxu0
  %v2138 = vpop.f32.mrf.mxu0
  %v2139 = vpop.f32.mrf.mxu0
  %2140 = vdwg.mxu0
  %v2142 = vsel %vm1007, %v2091, 0
  %2144 = vmatprep.subr.bf16.mxu0 0
  %2145 = vmatpush1.bf16.msra.mxu0 0
  %2146 = vmatprep.subr.bf16.mxu0 0
  %2147 = vmatpush1.bf16.msra.mxu0 0
  %2148 = vmatprep.subr.bf16.mxu0 0
  %2149 = vmatpush1.bf16.msra.mxu0 0
  %2150 = vmatprep.subr.bf16.mxu0 0
  %2151 = vmatpush1.bf16.msra.mxu0 0
  %2152 = vmatprep.subr.bf16.mxu0 0
  %2153 = vmatpush1.bf16.msra.mxu0 0
  %2154 = vmatprep.subr.bf16.mxu0 0
  %2155 = vmatpush1.bf16.msra.mxu0 0
  %2156 = vmatprep.subr.bf16.mxu0 0
  %2157 = vmatpush1.bf16.msra.mxu0 0
  %2158 = vmatprep.subr.bf16.mxu0 0
  %2159 = vmatpush1.bf16.msra.mxu0 %v197
  %2160 = vmatprep.subr.bf16.mxu0 0
  %2161 = vmatpush2.bf16.msra.mxu0 0
  %2162 = vmatprep.subr.bf16.mxu0 0
  %2163 = vmatpush2.bf16.msra.mxu0 0
  %2164 = vmatprep.subr.bf16.mxu0 0
  %2165 = vmatpush2.bf16.msra.mxu0 0
  %2166 = vmatprep.subr.bf16.mxu0 0
  %2167 = vmatpush2.bf16.msra.mxu0 0
  %2168 = vmatprep.subr.bf16.mxu0 0
  %2169 = vmatpush2.bf16.msra.mxu0 0
  %2170 = vmatprep.subr.bf16.mxu0 0
  %2171 = vmatpush2.bf16.msra.mxu0 0
  %2172 = vmatprep.subr.bf16.mxu0 0
  %2173 = vmatpush2.bf16.msra.mxu0 0
  %2174 = vmatprep.subr.bf16.mxu0 0
  %2175 = vmatpush2.bf16.msra.mxu0 0
  %2176 = vmatprep.mubr.bf16.mxu0 0
  %2177 = vmatmul.mubr.bf16.gmra.mxu0 %v2142
  %v2178 = vpop.f32.mrf.mxu0
  %v2179 = vadd.f32 0.0, %v2178
  %v2180 = vpop.f32.mrf.mxu0
  %v2181 = vpop.f32.mrf.mxu0
  %v2182 = vpop.f32.mrf.mxu0
  %2183 = vdwg.mxu0
  %v2185 = vsel %vm1007, %v2092, 0
  %2187 = vmatprep.subr.bf16.mxu0 0
  %2188 = vmatpush1.bf16.msra.mxu0 0
  %2189 = vmatprep.subr.bf16.mxu0 0
  %2190 = vmatpush1.bf16.msra.mxu0 0
  %2191 = vmatprep.subr.bf16.mxu0 0
  %2192 = vmatpush1.bf16.msra.mxu0 0
  %2193 = vmatprep.subr.bf16.mxu0 0
  %2194 = vmatpush1.bf16.msra.mxu0 0
  %2195 = vmatprep.subr.bf16.mxu0 0
  %2196 = vmatpush1.bf16.msra.mxu0 0
  %2197 = vmatprep.subr.bf16.mxu0 0
  %2198 = vmatpush1.bf16.msra.mxu0 0
  %2199 = vmatprep.subr.bf16.mxu0 0
  %2200 = vmatpush1.bf16.msra.mxu0 0
  %2201 = vmatprep.subr.bf16.mxu0 0
  %2202 = vmatpush1.bf16.msra.mxu0 %v198
  %2203 = vmatprep.subr.bf16.mxu0 0
  %2204 = vmatpush2.bf16.msra.mxu0 0
  %2205 = vmatprep.subr.bf16.mxu0 0
  %2206 = vmatpush2.bf16.msra.mxu0 0
  %2207 = vmatprep.subr.bf16.mxu0 0
  %2208 = vmatpush2.bf16.msra.mxu0 0
  %2209 = vmatprep.subr.bf16.mxu0 0
  %2210 = vmatpush2.bf16.msra.mxu0 0
  %2211 = vmatprep.subr.bf16.mxu0 0
  %2212 = vmatpush2.bf16.msra.mxu0 0
  %2213 = vmatprep.subr.bf16.mxu0 0
  %2214 = vmatpush2.bf16.msra.mxu0 0
  %2215 = vmatprep.subr.bf16.mxu0 0
  %2216 = vmatpush2.bf16.msra.mxu0 0
  %2217 = vmatprep.subr.bf16.mxu0 0
  %2218 = vmatpush2.bf16.msra.mxu0 0
  %2219 = vmatprep.mubr.bf16.mxu0 0
  %2220 = vmatmul.mubr.bf16.gmra.mxu0 %v2185
  %v2221 = vpop.f32.mrf.mxu0
  %v2222 = vadd.f32 0.0, %v2221
  %v2223 = vpop.f32.mrf.mxu0
  %v2224 = vpop.f32.mrf.mxu0
  %v2225 = vpop.f32.mrf.mxu0
  %2226 = vdwg.mxu0
  %v2228 = vsel %vm1007, %v2093, 0
  %2230 = vmatprep.subr.bf16.mxu0 0
  %2231 = vmatpush1.bf16.msra.mxu0 0
  %2232 = vmatprep.subr.bf16.mxu0 0
  %2233 = vmatpush1.bf16.msra.mxu0 0
  %2234 = vmatprep.subr.bf16.mxu0 0
  %2235 = vmatpush1.bf16.msra.mxu0 0
  %2236 = vmatprep.subr.bf16.mxu0 0
  %2237 = vmatpush1.bf16.msra.mxu0 0
  %2238 = vmatprep.subr.bf16.mxu0 0
  %2239 = vmatpush1.bf16.msra.mxu0 0
  %2240 = vmatprep.subr.bf16.mxu0 0
  %2241 = vmatpush1.bf16.msra.mxu0 0
  %2242 = vmatprep.subr.bf16.mxu0 0
  %2243 = vmatpush1.bf16.msra.mxu0 0
  %2244 = vmatprep.subr.bf16.mxu0 0
  %2245 = vmatpush1.bf16.msra.mxu0 %v199
  %2246 = vmatprep.subr.bf16.mxu0 0
  %2247 = vmatpush2.bf16.msra.mxu0 0
  %2248 = vmatprep.subr.bf16.mxu0 0
  %2249 = vmatpush2.bf16.msra.mxu0 0
  %2250 = vmatprep.subr.bf16.mxu0 0
  %2251 = vmatpush2.bf16.msra.mxu0 0
  %2252 = vmatprep.subr.bf16.mxu0 0
  %2253 = vmatpush2.bf16.msra.mxu0 0
  %2254 = vmatprep.subr.bf16.mxu0 0
  %2255 = vmatpush2.bf16.msra.mxu0 0
  %2256 = vmatprep.subr.bf16.mxu0 0
  %2257 = vmatpush2.bf16.msra.mxu0 0
  %2258 = vmatprep.subr.bf16.mxu0 0
  %2259 = vmatpush2.bf16.msra.mxu0 0
  %2260 = vmatprep.subr.bf16.mxu0 0
  %2261 = vmatpush2.bf16.msra.mxu0 0
  %2262 = vmatprep.mubr.bf16.mxu0 0
  %2263 = vmatmul.mubr.bf16.gmra.mxu0 %v2228
  %v2264 = vpop.f32.mrf.mxu0
  %v2265 = vadd.f32 0.0, %v2264
  %v2266 = vpop.f32.mrf.mxu0
  %v2267 = vpop.f32.mrf.mxu0
  %v2268 = vpop.f32.mrf.mxu0
  %2269 = vdwg.mxu0
  %v2271 = vsel %vm1007, %v2094, 0
  %2273 = vmatprep.subr.bf16.mxu0 0
  %2274 = vmatpush1.bf16.msra.mxu0 0
  %2275 = vmatprep.subr.bf16.mxu0 0
  %2276 = vmatpush1.bf16.msra.mxu0 0
  %2277 = vmatprep.subr.bf16.mxu0 0
  %2278 = vmatpush1.bf16.msra.mxu0 0
  %2279 = vmatprep.subr.bf16.mxu0 0
  %2280 = vmatpush1.bf16.msra.mxu0 0
  %2281 = vmatprep.subr.bf16.mxu0 0
  %2282 = vmatpush1.bf16.msra.mxu0 0
  %2283 = vmatprep.subr.bf16.mxu0 0
  %2284 = vmatpush1.bf16.msra.mxu0 0
  %2285 = vmatprep.subr.bf16.mxu0 0
  %2286 = vmatpush1.bf16.msra.mxu0 0
  %2287 = vmatprep.subr.bf16.mxu0 0
  %2288 = vmatpush1.bf16.msra.mxu0 %v200
  %2289 = vmatprep.subr.bf16.mxu0 0
  %2290 = vmatpush2.bf16.msra.mxu0 0
  %2291 = vmatprep.subr.bf16.mxu0 0
  %2292 = vmatpush2.bf16.msra.mxu0 0
  %2293 = vmatprep.subr.bf16.mxu0 0
  %2294 = vmatpush2.bf16.msra.mxu0 0
  %2295 = vmatprep.subr.bf16.mxu0 0
  %2296 = vmatpush2.bf16.msra.mxu0 0
  %2297 = vmatprep.subr.bf16.mxu0 0
  %2298 = vmatpush2.bf16.msra.mxu0 0
  %2299 = vmatprep.subr.bf16.mxu0 0
  %2300 = vmatpush2.bf16.msra.mxu0 0
  %2301 = vmatprep.subr.bf16.mxu0 0
  %2302 = vmatpush2.bf16.msra.mxu0 0
  %2303 = vmatprep.subr.bf16.mxu0 0
  %2304 = vmatpush2.bf16.msra.mxu0 0
  %2305 = vmatprep.mubr.bf16.mxu0 0
  %2306 = vmatmul.mubr.bf16.gmra.mxu0 %v2271
  %v2307 = vpop.f32.mrf.mxu0
  %v2308 = vadd.f32 0.0, %v2307
  %v2309 = vpop.f32.mrf.mxu0
  %v2310 = vpop.f32.mrf.mxu0
  %v2311 = vpop.f32.mrf.mxu0
  %2312 = vdwg.mxu0
  %v2314 = vsel %vm1007, %v2095, 0
  %2316 = vmatprep.subr.bf16.mxu0 0
  %2317 = vmatpush1.bf16.msra.mxu0 0
  %2318 = vmatprep.subr.bf16.mxu0 0
  %2319 = vmatpush1.bf16.msra.mxu0 0
  %2320 = vmatprep.subr.bf16.mxu0 0
  %2321 = vmatpush1.bf16.msra.mxu0 0
  %2322 = vmatprep.subr.bf16.mxu0 0
  %2323 = vmatpush1.bf16.msra.mxu0 0
  %2324 = vmatprep.subr.bf16.mxu0 0
  %2325 = vmatpush1.bf16.msra.mxu0 0
  %2326 = vmatprep.subr.bf16.mxu0 0
  %2327 = vmatpush1.bf16.msra.mxu0 0
  %2328 = vmatprep.subr.bf16.mxu0 0
  %2329 = vmatpush1.bf16.msra.mxu0 0
  %2330 = vmatprep.subr.bf16.mxu0 0
  %2331 = vmatpush1.bf16.msra.mxu0 %v201
  %2332 = vmatprep.subr.bf16.mxu0 0
  %2333 = vmatpush2.bf16.msra.mxu0 0
  %2334 = vmatprep.subr.bf16.mxu0 0
  %2335 = vmatpush2.bf16.msra.mxu0 0
  %2336 = vmatprep.subr.bf16.mxu0 0
  %2337 = vmatpush2.bf16.msra.mxu0 0
  %2338 = vmatprep.subr.bf16.mxu0 0
  %2339 = vmatpush2.bf16.msra.mxu0 0
  %2340 = vmatprep.subr.bf16.mxu0 0
  %2341 = vmatpush2.bf16.msra.mxu0 0
  %2342 = vmatprep.subr.bf16.mxu0 0
  %2343 = vmatpush2.bf16.msra.mxu0 0
  %2344 = vmatprep.subr.bf16.mxu0 0
  %2345 = vmatpush2.bf16.msra.mxu0 0
  %2346 = vmatprep.subr.bf16.mxu0 0
  %2347 = vmatpush2.bf16.msra.mxu0 0
  %2348 = vmatprep.mubr.bf16.mxu0 0
  %2349 = vmatmul.mubr.bf16.gmra.mxu0 %v2314
  %v2350 = vpop.f32.mrf.mxu0
  %v2351 = vadd.f32 0.0, %v2350
  %v2352 = vpop.f32.mrf.mxu0
  %v2353 = vpop.f32.mrf.mxu0
  %v2354 = vpop.f32.mrf.mxu0
  %2355 = vdwg.mxu0
  %v2357 = vsel %vm1007, %v2096, 0
  %2359 = vmatprep.subr.bf16.mxu0 0
  %2360 = vmatpush1.bf16.msra.mxu0 0
  %2361 = vmatprep.subr.bf16.mxu0 0
  %2362 = vmatpush1.bf16.msra.mxu0 0
  %2363 = vmatprep.subr.bf16.mxu0 0
  %2364 = vmatpush1.bf16.msra.mxu0 0
  %2365 = vmatprep.subr.bf16.mxu0 0
  %2366 = vmatpush1.bf16.msra.mxu0 0
  %2367 = vmatprep.subr.bf16.mxu0 0
  %2368 = vmatpush1.bf16.msra.mxu0 0
  %2369 = vmatprep.subr.bf16.mxu0 0
  %2370 = vmatpush1.bf16.msra.mxu0 0
  %2371 = vmatprep.subr.bf16.mxu0 0
  %2372 = vmatpush1.bf16.msra.mxu0 0
  %2373 = vmatprep.subr.bf16.mxu0 0
  %2374 = vmatpush1.bf16.msra.mxu0 %v202
  %2375 = vmatprep.subr.bf16.mxu0 0
  %2376 = vmatpush2.bf16.msra.mxu0 0
  %2377 = vmatprep.subr.bf16.mxu0 0
  %2378 = vmatpush2.bf16.msra.mxu0 0
  %2379 = vmatprep.subr.bf16.mxu0 0
  %2380 = vmatpush2.bf16.msra.mxu0 0
  %2381 = vmatprep.subr.bf16.mxu0 0
  %2382 = vmatpush2.bf16.msra.mxu0 0
  %2383 = vmatprep.subr.bf16.mxu0 0
  %2384 = vmatpush2.bf16.msra.mxu0 0
  %2385 = vmatprep.subr.bf16.mxu0 0
  %2386 = vmatpush2.bf16.msra.mxu0 0
  %2387 = vmatprep.subr.bf16.mxu0 0
  %2388 = vmatpush2.bf16.msra.mxu0 0
  %2389 = vmatprep.subr.bf16.mxu0 0
  %2390 = vmatpush2.bf16.msra.mxu0 0
  %2391 = vmatprep.mubr.bf16.mxu0 0
  %2392 = vmatmul.mubr.bf16.gmra.mxu0 %v2357
  %v2393 = vpop.f32.mrf.mxu0
  %v2394 = vadd.f32 0.0, %v2393
  %v2395 = vpop.f32.mrf.mxu0
  %v2396 = vpop.f32.mrf.mxu0
  %v2397 = vpop.f32.mrf.mxu0
  %2398 = vdwg.mxu0
  %v2400 = vsel %vm1007, %v2097, 0
  %2402 = vmatprep.subr.bf16.mxu0 0
  %2403 = vmatpush1.bf16.msra.mxu0 0
  %2404 = vmatprep.subr.bf16.mxu0 0
  %2405 = vmatpush1.bf16.msra.mxu0 0
  %2406 = vmatprep.subr.bf16.mxu0 0
  %2407 = vmatpush1.bf16.msra.mxu0 0
  %2408 = vmatprep.subr.bf16.mxu0 0
  %2409 = vmatpush1.bf16.msra.mxu0 0
  %2410 = vmatprep.subr.bf16.mxu0 0
  %2411 = vmatpush1.bf16.msra.mxu0 0
  %2412 = vmatprep.subr.bf16.mxu0 0
  %2413 = vmatpush1.bf16.msra.mxu0 0
  %2414 = vmatprep.subr.bf16.mxu0 0
  %2415 = vmatpush1.bf16.msra.mxu0 0
  %2416 = vmatprep.subr.bf16.mxu0 0
  %2417 = vmatpush1.bf16.msra.mxu0 %v203
  %2418 = vmatprep.subr.bf16.mxu0 0
  %2419 = vmatpush2.bf16.msra.mxu0 0
  %2420 = vmatprep.subr.bf16.mxu0 0
  %2421 = vmatpush2.bf16.msra.mxu0 0
  %2422 = vmatprep.subr.bf16.mxu0 0
  %2423 = vmatpush2.bf16.msra.mxu0 0
  %2424 = vmatprep.subr.bf16.mxu0 0
  %2425 = vmatpush2.bf16.msra.mxu0 0
  %2426 = vmatprep.subr.bf16.mxu0 0
  %2427 = vmatpush2.bf16.msra.mxu0 0
  %2428 = vmatprep.subr.bf16.mxu0 0
  %2429 = vmatpush2.bf16.msra.mxu0 0
  %2430 = vmatprep.subr.bf16.mxu0 0
  %2431 = vmatpush2.bf16.msra.mxu0 0
  %2432 = vmatprep.subr.bf16.mxu0 0
  %2433 = vmatpush2.bf16.msra.mxu0 0
  %2434 = vmatprep.mubr.bf16.mxu0 0
  %2435 = vmatmul.mubr.bf16.gmra.mxu0 %v2400
  %v2436 = vpop.f32.mrf.mxu0
  %v2437 = vadd.f32 0.0, %v2436
  %v2438 = vpop.f32.mrf.mxu0
  %v2439 = vpop.f32.mrf.mxu0
  %v2440 = vpop.f32.mrf.mxu0
  %2441 = vdwg.mxu0
  %v2442 = vmul.f32 %v2136, %v18
  %v2443 = vmul.f32 %v2179, %v18
  %v2444 = vmul.f32 %v2222, %v18
  %v2445 = vmul.f32 %v2265, %v18
  %v2446 = vmul.f32 %v2308, %v18
  %v2447 = vmul.f32 %v2351, %v18
  %v2448 = vmul.f32 %v2394, %v18
  %v2449 = vmul.f32 %v2437, %v18
  %v2450 = vsel %vm1360, %v2442, 0.0
  %v2451 = vrot.slane %v2450, 4
  %v2452 = vadd.f32 %v2450, %v2451
  %v2453 = vrot.slane %v2452, 2
  %v2454 = vadd.f32 %v2452, %v2453
  %v2455 = vrot.slane %v2454, 1
  %v2456 = vadd.f32 %v2454, %v2455
  %v2457 = vsel %vm1360, %v2443, 0.0
  %v2458 = vrot.slane %v2457, 4
  %v2459 = vadd.f32 %v2457, %v2458
  %v2460 = vrot.slane %v2459, 2
  %v2461 = vadd.f32 %v2459, %v2460
  %v2462 = vrot.slane %v2461, 1
  %v2463 = vadd.f32 %v2461, %v2462
  %v2464 = vsel %vm1360, %v2444, 0.0
  %v2465 = vrot.slane %v2464, 4
  %v2466 = vadd.f32 %v2464, %v2465
  %v2467 = vrot.slane %v2466, 2
  %v2468 = vadd.f32 %v2466, %v2467
  %v2469 = vrot.slane %v2468, 1
  %v2470 = vadd.f32 %v2468, %v2469
  %v2471 = vsel %vm1360, %v2445, 0.0
  %v2472 = vrot.slane %v2471, 4
  %v2473 = vadd.f32 %v2471, %v2472
  %v2474 = vrot.slane %v2473, 2
  %v2475 = vadd.f32 %v2473, %v2474
  %v2476 = vrot.slane %v2475, 1
  %v2477 = vadd.f32 %v2475, %v2476
  %v2478 = vsel %vm1360, %v2446, 0.0
  %v2479 = vrot.slane %v2478, 4
  %v2480 = vadd.f32 %v2478, %v2479
  %v2481 = vrot.slane %v2480, 2
  %v2482 = vadd.f32 %v2480, %v2481
  %v2483 = vrot.slane %v2482, 1
  %v2484 = vadd.f32 %v2482, %v2483
  %v2485 = vsel %vm1360, %v2447, 0.0
  %v2486 = vrot.slane %v2485, 4
  %v2487 = vadd.f32 %v2485, %v2486
  %v2488 = vrot.slane %v2487, 2
  %v2489 = vadd.f32 %v2487, %v2488
  %v2490 = vrot.slane %v2489, 1
  %v2491 = vadd.f32 %v2489, %v2490
  %v2492 = vsel %vm1360, %v2448, 0.0
  %v2493 = vrot.slane %v2492, 4
  %v2494 = vadd.f32 %v2492, %v2493
  %v2495 = vrot.slane %v2494, 2
  %v2496 = vadd.f32 %v2494, %v2495
  %v2497 = vrot.slane %v2496, 1
  %v2498 = vadd.f32 %v2496, %v2497
  %v2499 = vsel %vm1360, %v2449, 0.0
  %v2500 = vrot.slane %v2499, 4
  %v2501 = vadd.f32 %v2499, %v2500
  %v2502 = vrot.slane %v2501, 2
  %v2503 = vadd.f32 %v2501, %v2502
  %v2504 = vrot.slane %v2503, 1
  %v2505 = vadd.f32 %v2503, %v2504
  %v2506 = vmul.f32 %v2456, %v2456
  %v2507 = vmul.f32 %v2463, %v2463
  %v2508 = vmul.f32 %v2470, %v2470
  %v2509 = vmul.f32 %v2477, %v2477
  %v2510 = vmul.f32 %v2484, %v2484
  %v2511 = vmul.f32 %v2491, %v2491
  %v2512 = vmul.f32 %v2498, %v2498
  %v2513 = vmul.f32 %v2505, %v2505
  %v2522 = vsel %vm301, %v2507, %v2506
  %v2523 = vsel %vm303, %v2508, %v2522
  %v2524 = vsel %vm305, %v2509, %v2523
  %v2525 = vsel %vm307, %v2510, %v2524
  %v2526 = vsel %vm309, %v2511, %v2525
  %v2527 = vsel %vm311, %v2512, %v2526
  %v2528 = vsel %vm313, %v2513, %v2527
  %v2529 = vsel %vm204, %v2528, 0
  %2531 = vmatprep.subr.mxu0 0.0
  %2532 = vmatpush1.msra.mxu0 0.0
  %2533 = vmatprep.subr.mxu0 0.0
  %2534 = vmatpush1.msra.mxu0 0.0
  %2535 = vmatprep.subr.mxu0 0.0
  %2536 = vmatpush1.msra.mxu0 0.0
  %2537 = vmatprep.subr.mxu0 0.0
  %2538 = vmatpush1.msra.mxu0 0.0
  %2539 = vmatprep.subr.mxu0 0.0
  %2540 = vmatpush1.msra.mxu0 0.0
  %2541 = vmatprep.subr.mxu0 0.0
  %2542 = vmatpush1.msra.mxu0 0.0
  %2543 = vmatprep.subr.mxu0 0.0
  %2544 = vmatpush1.msra.mxu0 0.0
  %2545 = vmatprep.subr.mxu0 0.0
  %2546 = vmatpush1.msra.mxu0 0.0
  %2547 = vmatprep.subr.mxu0 0.0
  %2548 = vmatpush1.msra.mxu0 0.0
  %2549 = vmatprep.subr.mxu0 0.0
  %2550 = vmatpush1.msra.mxu0 0.0
  %2551 = vmatprep.subr.mxu0 0.0
  %2552 = vmatpush1.msra.mxu0 0.0
  %2553 = vmatprep.subr.mxu0 0.0
  %2554 = vmatpush1.msra.mxu0 0.0
  %2555 = vmatprep.subr.mxu0 0.0
  %2556 = vmatpush1.msra.mxu0 %v319
  %2557 = vmatprep.subr.mxu0 0.0
  %2558 = vmatpush1.msra.mxu0 %v21
  %2559 = vmatprep.subr.mxu0 0.0
  %2560 = vmatpush1.msra.mxu0 %v20
  %2561 = vmatprep.subr.mxu0 0.0
  %2562 = vmatpush1.msra.mxu0 %v19
  %2563 = vmatprep.subr.mxu0 0.0
  %2564 = vmatpush2.msra.mxu0 0.0
  %2565 = vmatprep.subr.mxu0 0.0
  %2566 = vmatpush2.msra.mxu0 0.0
  %2567 = vmatprep.subr.mxu0 0.0
  %2568 = vmatpush2.msra.mxu0 0.0
  %2569 = vmatprep.subr.mxu0 0.0
  %2570 = vmatpush2.msra.mxu0 0.0
  %2571 = vmatprep.subr.mxu0 0.0
  %2572 = vmatpush2.msra.mxu0 0.0
  %2573 = vmatprep.subr.mxu0 0.0
  %2574 = vmatpush2.msra.mxu0 0.0
  %2575 = vmatprep.subr.mxu0 0.0
  %2576 = vmatpush2.msra.mxu0 0.0
  %2577 = vmatprep.subr.mxu0 0.0
  %2578 = vmatpush2.msra.mxu0 0.0
  %2579 = vmatprep.subr.mxu0 0.0
  %2580 = vmatpush2.msra.mxu0 0.0
  %2581 = vmatprep.subr.mxu0 0.0
  %2582 = vmatpush2.msra.mxu0 0.0
  %2583 = vmatprep.subr.mxu0 0.0
  %2584 = vmatpush2.msra.mxu0 0.0
  %2585 = vmatprep.subr.mxu0 0.0
  %2586 = vmatpush2.msra.mxu0 0.0
  %2587 = vmatprep.subr.mxu0 0.0
  %2588 = vmatpush2.msra.mxu0 0.0
  %2589 = vmatprep.subr.mxu0 0.0
  %2590 = vmatpush2.msra.mxu0 0.0
  %2591 = vmatprep.subr.mxu0 0.0
  %2592 = vmatpush2.msra.mxu0 0.0
  %2593 = vmatprep.subr.mxu0 0.0
  %2594 = vmatpush2.msra.mxu0 0.0
  %2595 = vmatprep.mubr.f32.mxu0 0.0
  %2596 = vmatmul.mubr.f32.gmra.mxu0 %v2529
  %v2597 = vpop.f32.mrf.mxu0
  %v2598 = vadd.f32 1e-07, %v2597
  %v2599 = vpop.f32.mrf.mxu0
  %2600 = vdwg.mxu0
  %v2601 = vrsqrt.pop %v2598
  %v2603 = vsel %vm392, %v2601, 0
  %2605 = vmatprep.subr.mxu0 0.0
  %2606 = vmatpush1.msra.mxu0 0.0
  %2607 = vmatprep.subr.mxu0 0.0
  %2608 = vmatpush1.msra.mxu0 0.0
  %2609 = vmatprep.subr.mxu0 0.0
  %2610 = vmatpush1.msra.mxu0 0.0
  %2611 = vmatprep.subr.mxu0 0.0
  %2612 = vmatpush1.msra.mxu0 0.0
  %2613 = vmatprep.subr.mxu0 0.0
  %2614 = vmatpush1.msra.mxu0 0.0
  %2615 = vmatprep.subr.mxu0 0.0
  %2616 = vmatpush1.msra.mxu0 0.0
  %2617 = vmatprep.subr.mxu0 0.0
  %2618 = vmatpush1.msra.mxu0 0.0
  %2619 = vmatprep.subr.mxu0 0.0
  %2620 = vmatpush1.msra.mxu0 0.0
  %2621 = vmatprep.subr.mxu0 0.0
  %2622 = vmatpush1.msra.mxu0 0.0
  %2623 = vmatprep.subr.mxu0 0.0
  %2624 = vmatpush1.msra.mxu0 0.0
  %2625 = vmatprep.subr.mxu0 0.0
  %2626 = vmatpush1.msra.mxu0 0.0
  %2627 = vmatprep.subr.mxu0 0.0
  %2628 = vmatpush1.msra.mxu0 0.0
  %2629 = vmatprep.subr.mxu0 0.0
  %2630 = vmatpush1.msra.mxu0 0.0
  %2631 = vmatprep.subr.mxu0 0.0
  %2632 = vmatpush1.msra.mxu0 0.0
  %2633 = vmatprep.subr.mxu0 0.0
  %2634 = vmatpush1.msra.mxu0 0.0
  %2635 = vmatprep.subr.mxu0 0.0
  %2636 = vmatpush1.msra.mxu0 %v398
  %2637 = vmatprep.subr.mxu0 0.0
  %2638 = vmatpush2.msra.mxu0 0.0
  %2639 = vmatprep.subr.mxu0 0.0
  %2640 = vmatpush2.msra.mxu0 0.0
  %2641 = vmatprep.subr.mxu0 0.0
  %2642 = vmatpush2.msra.mxu0 0.0
  %2643 = vmatprep.subr.mxu0 0.0
  %2644 = vmatpush2.msra.mxu0 0.0
  %2645 = vmatprep.subr.mxu0 0.0
  %2646 = vmatpush2.msra.mxu0 0.0
  %2647 = vmatprep.subr.mxu0 0.0
  %2648 = vmatpush2.msra.mxu0 0.0
  %2649 = vmatprep.subr.mxu0 0.0
  %2650 = vmatpush2.msra.mxu0 0.0
  %2651 = vmatprep.subr.mxu0 0.0
  %2652 = vmatpush2.msra.mxu0 0.0
  %2653 = vmatprep.subr.mxu0 0.0
  %2654 = vmatpush2.msra.mxu0 0.0
  %2655 = vmatprep.subr.mxu0 0.0
  %2656 = vmatpush2.msra.mxu0 0.0
  %2657 = vmatprep.subr.mxu0 0.0
  %2658 = vmatpush2.msra.mxu0 0.0
  %2659 = vmatprep.subr.mxu0 0.0
  %2660 = vmatpush2.msra.mxu0 0.0
  %2661 = vmatprep.subr.mxu0 0.0
  %2662 = vmatpush2.msra.mxu0 0.0
  %2663 = vmatprep.subr.mxu0 0.0
  %2664 = vmatpush2.msra.mxu0 0.0
  %2665 = vmatprep.subr.mxu0 0.0
  %2666 = vmatpush2.msra.mxu0 0.0
  %2667 = vmatprep.subr.mxu0 0.0
  %2668 = vmatpush2.msra.mxu0 0.0
  %2669 = vmatprep.mubr.f32.mxu0 0.0
  %2670 = vmatmul.mubr.f32.gmra.mxu0 %v2603
  %v2671 = vpop.f32.mrf.mxu0
  %v2672 = vadd.f32 0.0, %v2671
  %v2673 = vpop.f32.mrf.mxu0
  %2674 = vdwg.mxu0
  %v2676 = vrot.slane %v2672, 1
  %v2677 = vrot.slane %v2672, 2
  %v2678 = vrot.slane %v2672, 3
  %v2679 = vrot.slane %v2672, 4
  %v2680 = vrot.slane %v2672, 5
  %v2681 = vrot.slane %v2672, 6
  %v2682 = vrot.slane %v2672, 7
  %v2691 = vmul.f32 %v2456, %v2672
  %v2692 = vmul.f32 %v2463, %v2676
  %v2693 = vmul.f32 %v2470, %v2677
  %v2694 = vmul.f32 %v2477, %v2678
  %v2695 = vmul.f32 %v2484, %v2679
  %v2696 = vmul.f32 %v2491, %v2680
  %v2697 = vmul.f32 %v2498, %v2681
  %v2698 = vmul.f32 %v2505, %v2682
  %v2699 = vlaneseq
  %v2700 = vshrl.u32 %v2699, 7
  %v2701 = vsub.s32 0, %v2700
  %v2702 = vrot.slane %v2691, %v2701
  %v2703 = vlaneseq
  %v2704 = vshrl.u32 %v2703, 7
  %v2705 = vsub.s32 0, %v2704
  %v2706 = vrot.slane %v2692, %v2705
  %v2707 = vlaneseq
  %v2708 = vshrl.u32 %v2707, 7
  %v2709 = vsub.s32 0, %v2708
  %v2710 = vrot.slane %v2693, %v2709
  %v2711 = vlaneseq
  %v2712 = vshrl.u32 %v2711, 7
  %v2713 = vsub.s32 0, %v2712
  %v2714 = vrot.slane %v2694, %v2713
  %v2715 = vlaneseq
  %v2716 = vshrl.u32 %v2715, 7
  %v2717 = vsub.s32 0, %v2716
  %v2718 = vrot.slane %v2695, %v2717
  %v2719 = vlaneseq
  %v2720 = vshrl.u32 %v2719, 7
  %v2721 = vsub.s32 0, %v2720
  %v2722 = vrot.slane %v2696, %v2721
  %v2723 = vlaneseq
  %v2724 = vshrl.u32 %v2723, 7
  %v2725 = vsub.s32 0, %v2724
  %v2726 = vrot.slane %v2697, %v2725
  %v2727 = vlaneseq
  %v2728 = vshrl.u32 %v2727, 7
  %v2729 = vsub.s32 0, %v2728
  %v2730 = vrot.slane %v2698, %v2729
  %v2731 = vmul.f32 %v2702, %v18
  %v2732 = vmul.f32 %v2706, %v18
  %v2733 = vmul.f32 %v2710, %v18
  %v2734 = vmul.f32 %v2714, %v18
  %v2735 = vmul.f32 %v2718, %v18
  %v2736 = vmul.f32 %v2722, %v18
  %v2737 = vmul.f32 %v2726, %v18
  %v2738 = vmul.f32 %v2730, %v18
  %v2739 = vpack.c.bf16 %v2731, %v2731
  %v2740 = vpack.c.bf16 %v2732, %v2732
  %v2741 = vpack.c.bf16 %v2733, %v2733
  %v2742 = vpack.c.bf16 %v2734, %v2734
  %v2743 = vpack.c.bf16 %v2735, %v2735
  %v2744 = vpack.c.bf16 %v2736, %v2736
  %v2745 = vpack.c.bf16 %v2737, %v2737
  %v2746 = vpack.c.bf16 %v2738, %v2738
  %v2748 = vsel %vm204, %v2739, 0
  %2750 = vmatprep.subr.bf16.mxu0 0
  %2751 = vmatpush1.bf16.xpose.msra.mxu0 0
  %2752 = vmatprep.subr.bf16.mxu0 0
  %2753 = vmatpush1.bf16.xpose.msra.mxu0 0
  %2754 = vmatprep.subr.bf16.mxu0 0
  %2755 = vmatpush1.bf16.xpose.msra.mxu0 0
  %2756 = vmatprep.subr.bf16.mxu0 0
  %2757 = vmatpush1.bf16.xpose.msra.mxu0 0
  %2758 = vmatprep.subr.bf16.mxu0 0
  %2759 = vmatpush1.bf16.xpose.msra.mxu0 0
  %2760 = vmatprep.subr.bf16.mxu0 0
  %2761 = vmatpush1.bf16.xpose.msra.mxu0 0
  %2762 = vmatprep.subr.bf16.mxu0 0
  %2763 = vmatpush1.bf16.xpose.msra.mxu0 0
  %2764 = vmatprep.subr.bf16.mxu0 0
  %2765 = vmatpush1.bf16.xpose.msra.mxu0 %v546
  %2766 = vmatprep.subr.bf16.mxu0 0
  %2767 = vmatpush2.bf16.xpose.msra.mxu0 0
  %2768 = vmatprep.subr.bf16.mxu0 0
  %2769 = vmatpush2.bf16.xpose.msra.mxu0 0
  %2770 = vmatprep.subr.bf16.mxu0 0
  %2771 = vmatpush2.bf16.xpose.msra.mxu0 0
  %2772 = vmatprep.subr.bf16.mxu0 0
  %2773 = vmatpush2.bf16.xpose.msra.mxu0 0
  %2774 = vmatprep.subr.bf16.mxu0 0
  %2775 = vmatpush2.bf16.xpose.msra.mxu0 0
  %2776 = vmatprep.subr.bf16.mxu0 0
  %2777 = vmatpush2.bf16.xpose.msra.mxu0 0
  %2778 = vmatprep.subr.bf16.mxu0 0
  %2779 = vmatpush2.bf16.xpose.msra.mxu0 0
  %2780 = vmatprep.subr.bf16.mxu0 0
  %2781 = vmatpush2.bf16.xpose.msra.mxu0 0
  %2782 = vmatprep.mubr.bf16.mxu0 0
  %2783 = vmatmul.mubr.bf16.gmra.mxu0 %v2748
  %v2784 = vpop.f32.mrf.mxu0
  %v2785 = vadd.f32 0.0, %v2784
  %v2786 = vpop.f32.mrf.mxu0
  %v2787 = vpop.f32.mrf.mxu0
  %v2788 = vpop.f32.mrf.mxu0
  %2789 = vdwg.mxu0
  %v2791 = vsel %vm204, %v2740, 0
  %2793 = vmatprep.subr.bf16.mxu0 0
  %2794 = vmatpush1.bf16.xpose.msra.mxu0 0
  %2795 = vmatprep.subr.bf16.mxu0 0
  %2796 = vmatpush1.bf16.xpose.msra.mxu0 0
  %2797 = vmatprep.subr.bf16.mxu0 0
  %2798 = vmatpush1.bf16.xpose.msra.mxu0 0
  %2799 = vmatprep.subr.bf16.mxu0 0
  %2800 = vmatpush1.bf16.xpose.msra.mxu0 0
  %2801 = vmatprep.subr.bf16.mxu0 0
  %2802 = vmatpush1.bf16.xpose.msra.mxu0 0
  %2803 = vmatprep.subr.bf16.mxu0 0
  %2804 = vmatpush1.bf16.xpose.msra.mxu0 0
  %2805 = vmatprep.subr.bf16.mxu0 0
  %2806 = vmatpush1.bf16.xpose.msra.mxu0 0
  %2807 = vmatprep.subr.bf16.mxu0 0
  %2808 = vmatpush1.bf16.xpose.msra.mxu0 %v592
  %2809 = vmatprep.subr.bf16.mxu0 0
  %2810 = vmatpush2.bf16.xpose.msra.mxu0 0
  %2811 = vmatprep.subr.bf16.mxu0 0
  %2812 = vmatpush2.bf16.xpose.msra.mxu0 0
  %2813 = vmatprep.subr.bf16.mxu0 0
  %2814 = vmatpush2.bf16.xpose.msra.mxu0 0
  %2815 = vmatprep.subr.bf16.mxu0 0
  %2816 = vmatpush2.bf16.xpose.msra.mxu0 0
  %2817 = vmatprep.subr.bf16.mxu0 0
  %2818 = vmatpush2.bf16.xpose.msra.mxu0 0
  %2819 = vmatprep.subr.bf16.mxu0 0
  %2820 = vmatpush2.bf16.xpose.msra.mxu0 0
  %2821 = vmatprep.subr.bf16.mxu0 0
  %2822 = vmatpush2.bf16.xpose.msra.mxu0 0
  %2823 = vmatprep.subr.bf16.mxu0 0
  %2824 = vmatpush2.bf16.xpose.msra.mxu0 0
  %2825 = vmatprep.mubr.bf16.mxu0 0
  %2826 = vmatmul.mubr.bf16.gmra.mxu0 %v2791
  %v2827 = vpop.f32.mrf.mxu0
  %v2828 = vadd.f32 0.0, %v2827
  %v2829 = vpop.f32.mrf.mxu0
  %v2830 = vpop.f32.mrf.mxu0
  %v2831 = vpop.f32.mrf.mxu0
  %2832 = vdwg.mxu0
  %v2834 = vsel %vm204, %v2741, 0
  %2836 = vmatprep.subr.bf16.mxu0 0
  %2837 = vmatpush1.bf16.xpose.msra.mxu0 0
  %2838 = vmatprep.subr.bf16.mxu0 0
  %2839 = vmatpush1.bf16.xpose.msra.mxu0 0
  %2840 = vmatprep.subr.bf16.mxu0 0
  %2841 = vmatpush1.bf16.xpose.msra.mxu0 0
  %2842 = vmatprep.subr.bf16.mxu0 0
  %2843 = vmatpush1.bf16.xpose.msra.mxu0 0
  %2844 = vmatprep.subr.bf16.mxu0 0
  %2845 = vmatpush1.bf16.xpose.msra.mxu0 0
  %2846 = vmatprep.subr.bf16.mxu0 0
  %2847 = vmatpush1.bf16.xpose.msra.mxu0 0
  %2848 = vmatprep.subr.bf16.mxu0 0
  %2849 = vmatpush1.bf16.xpose.msra.mxu0 0
  %2850 = vmatprep.subr.bf16.mxu0 0
  %2851 = vmatpush1.bf16.xpose.msra.mxu0 %v638
  %2852 = vmatprep.subr.bf16.mxu0 0
  %2853 = vmatpush2.bf16.xpose.msra.mxu0 0
  %2854 = vmatprep.subr.bf16.mxu0 0
  %2855 = vmatpush2.bf16.xpose.msra.mxu0 0
  %2856 = vmatprep.subr.bf16.mxu0 0
  %2857 = vmatpush2.bf16.xpose.msra.mxu0 0
  %2858 = vmatprep.subr.bf16.mxu0 0
  %2859 = vmatpush2.bf16.xpose.msra.mxu0 0
  %2860 = vmatprep.subr.bf16.mxu0 0
  %2861 = vmatpush2.bf16.xpose.msra.mxu0 0
  %2862 = vmatprep.subr.bf16.mxu0 0
  %2863 = vmatpush2.bf16.xpose.msra.mxu0 0
  %2864 = vmatprep.subr.bf16.mxu0 0
  %2865 = vmatpush2.bf16.xpose.msra.mxu0 0
  %2866 = vmatprep.subr.bf16.mxu0 0
  %2867 = vmatpush2.bf16.xpose.msra.mxu0 0
  %2868 = vmatprep.mubr.bf16.mxu0 0
  %2869 = vmatmul.mubr.bf16.gmra.mxu0 %v2834
  %v2870 = vpop.f32.mrf.mxu0
  %v2871 = vadd.f32 0.0, %v2870
  %v2872 = vpop.f32.mrf.mxu0
  %v2873 = vpop.f32.mrf.mxu0
  %v2874 = vpop.f32.mrf.mxu0
  %2875 = vdwg.mxu0
  %v2877 = vsel %vm204, %v2742, 0
  %2879 = vmatprep.subr.bf16.mxu0 0
  %2880 = vmatpush1.bf16.xpose.msra.mxu0 0
  %2881 = vmatprep.subr.bf16.mxu0 0
  %2882 = vmatpush1.bf16.xpose.msra.mxu0 0
  %2883 = vmatprep.subr.bf16.mxu0 0
  %2884 = vmatpush1.bf16.xpose.msra.mxu0 0
  %2885 = vmatprep.subr.bf16.mxu0 0
  %2886 = vmatpush1.bf16.xpose.msra.mxu0 0
  %2887 = vmatprep.subr.bf16.mxu0 0
  %2888 = vmatpush1.bf16.xpose.msra.mxu0 0
  %2889 = vmatprep.subr.bf16.mxu0 0
  %2890 = vmatpush1.bf16.xpose.msra.mxu0 0
  %2891 = vmatprep.subr.bf16.mxu0 0
  %2892 = vmatpush1.bf16.xpose.msra.mxu0 0
  %2893 = vmatprep.subr.bf16.mxu0 0
  %2894 = vmatpush1.bf16.xpose.msra.mxu0 %v684
  %2895 = vmatprep.subr.bf16.mxu0 0
  %2896 = vmatpush2.bf16.xpose.msra.mxu0 0
  %2897 = vmatprep.subr.bf16.mxu0 0
  %2898 = vmatpush2.bf16.xpose.msra.mxu0 0
  %2899 = vmatprep.subr.bf16.mxu0 0
  %2900 = vmatpush2.bf16.xpose.msra.mxu0 0
  %2901 = vmatprep.subr.bf16.mxu0 0
  %2902 = vmatpush2.bf16.xpose.msra.mxu0 0
  %2903 = vmatprep.subr.bf16.mxu0 0
  %2904 = vmatpush2.bf16.xpose.msra.mxu0 0
  %2905 = vmatprep.subr.bf16.mxu0 0
  %2906 = vmatpush2.bf16.xpose.msra.mxu0 0
  %2907 = vmatprep.subr.bf16.mxu0 0
  %2908 = vmatpush2.bf16.xpose.msra.mxu0 0
  %2909 = vmatprep.subr.bf16.mxu0 0
  %2910 = vmatpush2.bf16.xpose.msra.mxu0 0
  %2911 = vmatprep.mubr.bf16.mxu0 0
  %2912 = vmatmul.mubr.bf16.gmra.mxu0 %v2877
  %v2913 = vpop.f32.mrf.mxu0
  %v2914 = vadd.f32 0.0, %v2913
  %v2915 = vpop.f32.mrf.mxu0
  %v2916 = vpop.f32.mrf.mxu0
  %v2917 = vpop.f32.mrf.mxu0
  %2918 = vdwg.mxu0
  %v2920 = vsel %vm204, %v2743, 0
  %2922 = vmatprep.subr.bf16.mxu0 0
  %2923 = vmatpush1.bf16.xpose.msra.mxu0 0
  %2924 = vmatprep.subr.bf16.mxu0 0
  %2925 = vmatpush1.bf16.xpose.msra.mxu0 0
  %2926 = vmatprep.subr.bf16.mxu0 0
  %2927 = vmatpush1.bf16.xpose.msra.mxu0 0
  %2928 = vmatprep.subr.bf16.mxu0 0
  %2929 = vmatpush1.bf16.xpose.msra.mxu0 0
  %2930 = vmatprep.subr.bf16.mxu0 0
  %2931 = vmatpush1.bf16.xpose.msra.mxu0 0
  %2932 = vmatprep.subr.bf16.mxu0 0
  %2933 = vmatpush1.bf16.xpose.msra.mxu0 0
  %2934 = vmatprep.subr.bf16.mxu0 0
  %2935 = vmatpush1.bf16.xpose.msra.mxu0 0
  %2936 = vmatprep.subr.bf16.mxu0 0
  %2937 = vmatpush1.bf16.xpose.msra.mxu0 %v730
  %2938 = vmatprep.subr.bf16.mxu0 0
  %2939 = vmatpush2.bf16.xpose.msra.mxu0 0
  %2940 = vmatprep.subr.bf16.mxu0 0
  %2941 = vmatpush2.bf16.xpose.msra.mxu0 0
  %2942 = vmatprep.subr.bf16.mxu0 0
  %2943 = vmatpush2.bf16.xpose.msra.mxu0 0
  %2944 = vmatprep.subr.bf16.mxu0 0
  %2945 = vmatpush2.bf16.xpose.msra.mxu0 0
  %2946 = vmatprep.subr.bf16.mxu0 0
  %2947 = vmatpush2.bf16.xpose.msra.mxu0 0
  %2948 = vmatprep.subr.bf16.mxu0 0
  %2949 = vmatpush2.bf16.xpose.msra.mxu0 0
  %2950 = vmatprep.subr.bf16.mxu0 0
  %2951 = vmatpush2.bf16.xpose.msra.mxu0 0
  %2952 = vmatprep.subr.bf16.mxu0 0
  %2953 = vmatpush2.bf16.xpose.msra.mxu0 0
  %2954 = vmatprep.mubr.bf16.mxu0 0
  %2955 = vmatmul.mubr.bf16.gmra.mxu0 %v2920
  %v2956 = vpop.f32.mrf.mxu0
  %v2957 = vadd.f32 0.0, %v2956
  %v2958 = vpop.f32.mrf.mxu0
  %v2959 = vpop.f32.mrf.mxu0
  %v2960 = vpop.f32.mrf.mxu0
  %2961 = vdwg.mxu0
  %v2963 = vsel %vm204, %v2744, 0
  %2965 = vmatprep.subr.bf16.mxu0 0
  %2966 = vmatpush1.bf16.xpose.msra.mxu0 0
  %2967 = vmatprep.subr.bf16.mxu0 0
  %2968 = vmatpush1.bf16.xpose.msra.mxu0 0
  %2969 = vmatprep.subr.bf16.mxu0 0
  %2970 = vmatpush1.bf16.xpose.msra.mxu0 0
  %2971 = vmatprep.subr.bf16.mxu0 0
  %2972 = vmatpush1.bf16.xpose.msra.mxu0 0
  %2973 = vmatprep.subr.bf16.mxu0 0
  %2974 = vmatpush1.bf16.xpose.msra.mxu0 0
  %2975 = vmatprep.subr.bf16.mxu0 0
  %2976 = vmatpush1.bf16.xpose.msra.mxu0 0
  %2977 = vmatprep.subr.bf16.mxu0 0
  %2978 = vmatpush1.bf16.xpose.msra.mxu0 0
  %2979 = vmatprep.subr.bf16.mxu0 0
  %2980 = vmatpush1.bf16.xpose.msra.mxu0 %v776
  %2981 = vmatprep.subr.bf16.mxu0 0
  %2982 = vmatpush2.bf16.xpose.msra.mxu0 0
  %2983 = vmatprep.subr.bf16.mxu0 0
  %2984 = vmatpush2.bf16.xpose.msra.mxu0 0
  %2985 = vmatprep.subr.bf16.mxu0 0
  %2986 = vmatpush2.bf16.xpose.msra.mxu0 0
  %2987 = vmatprep.subr.bf16.mxu0 0
  %2988 = vmatpush2.bf16.xpose.msra.mxu0 0
  %2989 = vmatprep.subr.bf16.mxu0 0
  %2990 = vmatpush2.bf16.xpose.msra.mxu0 0
  %2991 = vmatprep.subr.bf16.mxu0 0
  %2992 = vmatpush2.bf16.xpose.msra.mxu0 0
  %2993 = vmatprep.subr.bf16.mxu0 0
  %2994 = vmatpush2.bf16.xpose.msra.mxu0 0
  %2995 = vmatprep.subr.bf16.mxu0 0
  %2996 = vmatpush2.bf16.xpose.msra.mxu0 0
  %2997 = vmatprep.mubr.bf16.mxu0 0
  %2998 = vmatmul.mubr.bf16.gmra.mxu0 %v2963
  %v2999 = vpop.f32.mrf.mxu0
  %v3000 = vadd.f32 0.0, %v2999
  %v3001 = vpop.f32.mrf.mxu0
  %v3002 = vpop.f32.mrf.mxu0
  %v3003 = vpop.f32.mrf.mxu0
  %3004 = vdwg.mxu0
  %v3006 = vsel %vm204, %v2745, 0
  %3008 = vmatprep.subr.bf16.mxu0 0
  %3009 = vmatpush1.bf16.xpose.msra.mxu0 0
  %3010 = vmatprep.subr.bf16.mxu0 0
  %3011 = vmatpush1.bf16.xpose.msra.mxu0 0
  %3012 = vmatprep.subr.bf16.mxu0 0
  %3013 = vmatpush1.bf16.xpose.msra.mxu0 0
  %3014 = vmatprep.subr.bf16.mxu0 0
  %3015 = vmatpush1.bf16.xpose.msra.mxu0 0
  %3016 = vmatprep.subr.bf16.mxu0 0
  %3017 = vmatpush1.bf16.xpose.msra.mxu0 0
  %3018 = vmatprep.subr.bf16.mxu0 0
  %3019 = vmatpush1.bf16.xpose.msra.mxu0 0
  %3020 = vmatprep.subr.bf16.mxu0 0
  %3021 = vmatpush1.bf16.xpose.msra.mxu0 0
  %3022 = vmatprep.subr.bf16.mxu0 0
  %3023 = vmatpush1.bf16.xpose.msra.mxu0 %v822
  %3024 = vmatprep.subr.bf16.mxu0 0
  %3025 = vmatpush2.bf16.xpose.msra.mxu0 0
  %3026 = vmatprep.subr.bf16.mxu0 0
  %3027 = vmatpush2.bf16.xpose.msra.mxu0 0
  %3028 = vmatprep.subr.bf16.mxu0 0
  %3029 = vmatpush2.bf16.xpose.msra.mxu0 0
  %3030 = vmatprep.subr.bf16.mxu0 0
  %3031 = vmatpush2.bf16.xpose.msra.mxu0 0
  %3032 = vmatprep.subr.bf16.mxu0 0
  %3033 = vmatpush2.bf16.xpose.msra.mxu0 0
  %3034 = vmatprep.subr.bf16.mxu0 0
  %3035 = vmatpush2.bf16.xpose.msra.mxu0 0
  %3036 = vmatprep.subr.bf16.mxu0 0
  %3037 = vmatpush2.bf16.xpose.msra.mxu0 0
  %3038 = vmatprep.subr.bf16.mxu0 0
  %3039 = vmatpush2.bf16.xpose.msra.mxu0 0
  %3040 = vmatprep.mubr.bf16.mxu0 0
  %3041 = vmatmul.mubr.bf16.gmra.mxu0 %v3006
  %v3042 = vpop.f32.mrf.mxu0
  %v3043 = vadd.f32 0.0, %v3042
  %v3044 = vpop.f32.mrf.mxu0
  %v3045 = vpop.f32.mrf.mxu0
  %v3046 = vpop.f32.mrf.mxu0
  %3047 = vdwg.mxu0
  %v3049 = vsel %vm204, %v2746, 0
  %3051 = vmatprep.subr.bf16.mxu0 0
  %3052 = vmatpush1.bf16.xpose.msra.mxu0 0
  %3053 = vmatprep.subr.bf16.mxu0 0
  %3054 = vmatpush1.bf16.xpose.msra.mxu0 0
  %3055 = vmatprep.subr.bf16.mxu0 0
  %3056 = vmatpush1.bf16.xpose.msra.mxu0 0
  %3057 = vmatprep.subr.bf16.mxu0 0
  %3058 = vmatpush1.bf16.xpose.msra.mxu0 0
  %3059 = vmatprep.subr.bf16.mxu0 0
  %3060 = vmatpush1.bf16.xpose.msra.mxu0 0
  %3061 = vmatprep.subr.bf16.mxu0 0
  %3062 = vmatpush1.bf16.xpose.msra.mxu0 0
  %3063 = vmatprep.subr.bf16.mxu0 0
  %3064 = vmatpush1.bf16.xpose.msra.mxu0 0
  %3065 = vmatprep.subr.bf16.mxu0 0
  %3066 = vmatpush1.bf16.xpose.msra.mxu0 %v868
  %3067 = vmatprep.subr.bf16.mxu0 0
  %3068 = vmatpush2.bf16.xpose.msra.mxu0 0
  %3069 = vmatprep.subr.bf16.mxu0 0
  %3070 = vmatpush2.bf16.xpose.msra.mxu0 0
  %3071 = vmatprep.subr.bf16.mxu0 0
  %3072 = vmatpush2.bf16.xpose.msra.mxu0 0
  %3073 = vmatprep.subr.bf16.mxu0 0
  %3074 = vmatpush2.bf16.xpose.msra.mxu0 0
  %3075 = vmatprep.subr.bf16.mxu0 0
  %3076 = vmatpush2.bf16.xpose.msra.mxu0 0
  %3077 = vmatprep.subr.bf16.mxu0 0
  %3078 = vmatpush2.bf16.xpose.msra.mxu0 0
  %3079 = vmatprep.subr.bf16.mxu0 0
  %3080 = vmatpush2.bf16.xpose.msra.mxu0 0
  %3081 = vmatprep.subr.bf16.mxu0 0
  %3082 = vmatpush2.bf16.xpose.msra.mxu0 0
  %3083 = vmatprep.mubr.bf16.mxu0 0
  %3084 = vmatmul.mubr.bf16.gmra.mxu0 %v3049
  %v3085 = vpop.f32.mrf.mxu0
  %v3086 = vadd.f32 0.0, %v3085
  %v3087 = vpop.f32.mrf.mxu0
  %v3088 = vpop.f32.mrf.mxu0
  %v3089 = vpop.f32.mrf.mxu0
  %3090 = vdwg.mxu0
  %v3091 = vmul.f32 %v2785, 1.442695
  %v3092 = vpow.pop %v3091
  %v3093 = vmul.f32 %v2828, 1.442695
  %v3094 = vpow.pop %v3093
  %v3095 = vmul.f32 %v2871, 1.442695
  %v3096 = vpow.pop %v3095
  %v3097 = vmul.f32 %v2914, 1.442695
  %v3098 = vpow.pop %v3097
  %v3099 = vmul.f32 %v2957, 1.442695
  %v3100 = vpow.pop %v3099
  %v3101 = vmul.f32 %v3000, 1.442695
  %v3102 = vpow.pop %v3101
  %v3103 = vmul.f32 %v3043, 1.442695
  %v3104 = vpow.pop %v3103
  %v3105 = vmul.f32 %v3086, 1.442695
  %v3106 = vpow.pop %v3105
  %v3107 = vsel %vm926, %v3092, 0.0
  %v3108 = vrot.slane %v3107, 4
  %v3109 = vadd.f32 %v3107, %v3108
  %v3110 = vrot.slane %v3109, 2
  %v3111 = vadd.f32 %v3109, %v3110
  %v3112 = vrot.slane %v3111, 1
  %v3113 = vadd.f32 %v3111, %v3112
  %v3114 = vsel %vm926, %v3094, 0.0
  %v3115 = vrot.slane %v3114, 4
  %v3116 = vadd.f32 %v3114, %v3115
  %v3117 = vrot.slane %v3116, 2
  %v3118 = vadd.f32 %v3116, %v3117
  %v3119 = vrot.slane %v3118, 1
  %v3120 = vadd.f32 %v3118, %v3119
  %v3121 = vsel %vm926, %v3096, 0.0
  %v3122 = vrot.slane %v3121, 4
  %v3123 = vadd.f32 %v3121, %v3122
  %v3124 = vrot.slane %v3123, 2
  %v3125 = vadd.f32 %v3123, %v3124
  %v3126 = vrot.slane %v3125, 1
  %v3127 = vadd.f32 %v3125, %v3126
  %v3128 = vsel %vm926, %v3098, 0.0
  %v3129 = vrot.slane %v3128, 4
  %v3130 = vadd.f32 %v3128, %v3129
  %v3131 = vrot.slane %v3130, 2
  %v3132 = vadd.f32 %v3130, %v3131
  %v3133 = vrot.slane %v3132, 1
  %v3134 = vadd.f32 %v3132, %v3133
  %v3135 = vsel %vm926, %v3100, 0.0
  %v3136 = vrot.slane %v3135, 4
  %v3137 = vadd.f32 %v3135, %v3136
  %v3138 = vrot.slane %v3137, 2
  %v3139 = vadd.f32 %v3137, %v3138
  %v3140 = vrot.slane %v3139, 1
  %v3141 = vadd.f32 %v3139, %v3140
  %v3142 = vsel %vm926, %v3102, 0.0
  %v3143 = vrot.slane %v3142, 4
  %v3144 = vadd.f32 %v3142, %v3143
  %v3145 = vrot.slane %v3144, 2
  %v3146 = vadd.f32 %v3144, %v3145
  %v3147 = vrot.slane %v3146, 1
  %v3148 = vadd.f32 %v3146, %v3147
  %v3149 = vsel %vm926, %v3104, 0.0
  %v3150 = vrot.slane %v3149, 4
  %v3151 = vadd.f32 %v3149, %v3150
  %v3152 = vrot.slane %v3151, 2
  %v3153 = vadd.f32 %v3151, %v3152
  %v3154 = vrot.slane %v3153, 1
  %v3155 = vadd.f32 %v3153, %v3154
  %v3156 = vsel %vm926, %v3106, 0.0
  %v3157 = vrot.slane %v3156, 4
  %v3158 = vadd.f32 %v3156, %v3157
  %v3159 = vrot.slane %v3158, 2
  %v3160 = vadd.f32 %v3158, %v3159
  %v3161 = vrot.slane %v3160, 1
  %v3162 = vadd.f32 %v3160, %v3161
  %v3163 = vrcp.pop %v3113
  %v3164 = vrcp.pop %v3120
  %v3165 = vrcp.pop %v3127
  %v3166 = vrcp.pop %v3134
  %v3167 = vrcp.pop %v3141
  %v3168 = vrcp.pop %v3148
  %v3169 = vrcp.pop %v3155
  %v3170 = vrcp.pop %v3162
  %v3171 = vmul.f32 %v3092, %v3163
  %v3172 = vmul.f32 %v3094, %v3164
  %v3173 = vmul.f32 %v3096, %v3165
  %v3174 = vmul.f32 %v3098, %v3166
  %v3175 = vmul.f32 %v3100, %v3167
  %v3176 = vmul.f32 %v3102, %v3168
  %v3177 = vmul.f32 %v3104, %v3169
  %v3178 = vmul.f32 %v3106, %v3170
  %v3179 = vpack.c.bf16 %v3171, %v3171
  %v3180 = vpack.c.bf16 %v3172, %v3172
  %v3181 = vpack.c.bf16 %v3173, %v3173
  %v3182 = vpack.c.bf16 %v3174, %v3174
  %v3183 = vpack.c.bf16 %v3175, %v3175
  %v3184 = vpack.c.bf16 %v3176, %v3176
  %v3185 = vpack.c.bf16 %v3177, %v3177
  %v3186 = vpack.c.bf16 %v3178, %v3178
  %v3188 = vsel %vm1007, %v3179, 0
  %3190 = vmatprep.subr.bf16.mxu0 0
  %3191 = vmatpush1.bf16.msra.mxu0 0
  %3192 = vmatprep.subr.bf16.mxu0 0
  %3193 = vmatpush1.bf16.msra.mxu0 0
  %3194 = vmatprep.subr.bf16.mxu0 0
  %3195 = vmatpush1.bf16.msra.mxu0 0
  %3196 = vmatprep.subr.bf16.mxu0 0
  %3197 = vmatpush1.bf16.msra.mxu0 0
  %3198 = vmatprep.subr.bf16.mxu0 0
  %3199 = vmatpush1.bf16.msra.mxu0 0
  %3200 = vmatprep.subr.bf16.mxu0 0
  %3201 = vmatpush1.bf16.msra.mxu0 0
  %3202 = vmatprep.subr.bf16.mxu0 0
  %3203 = vmatpush1.bf16.msra.mxu0 0
  %3204 = vmatprep.subr.bf16.mxu0 0
  %3205 = vmatpush1.bf16.msra.mxu0 %v196
  %3206 = vmatprep.subr.bf16.mxu0 0
  %3207 = vmatpush2.bf16.msra.mxu0 0
  %3208 = vmatprep.subr.bf16.mxu0 0
  %3209 = vmatpush2.bf16.msra.mxu0 0
  %3210 = vmatprep.subr.bf16.mxu0 0
  %3211 = vmatpush2.bf16.msra.mxu0 0
  %3212 = vmatprep.subr.bf16.mxu0 0
  %3213 = vmatpush2.bf16.msra.mxu0 0
  %3214 = vmatprep.subr.bf16.mxu0 0
  %3215 = vmatpush2.bf16.msra.mxu0 0
  %3216 = vmatprep.subr.bf16.mxu0 0
  %3217 = vmatpush2.bf16.msra.mxu0 0
  %3218 = vmatprep.subr.bf16.mxu0 0
  %3219 = vmatpush2.bf16.msra.mxu0 0
  %3220 = vmatprep.subr.bf16.mxu0 0
  %3221 = vmatpush2.bf16.msra.mxu0 0
  %3222 = vmatprep.mubr.bf16.mxu0 0
  %3223 = vmatmul.mubr.bf16.gmra.mxu0 %v3188
  %v3224 = vpop.f32.mrf.mxu0
  %v3225 = vadd.f32 0.0, %v3224
  %v3226 = vpop.f32.mrf.mxu0
  %v3227 = vpop.f32.mrf.mxu0
  %v3228 = vpop.f32.mrf.mxu0
  %3229 = vdwg.mxu0
  %v3231 = vsel %vm1007, %v3180, 0
  %3233 = vmatprep.subr.bf16.mxu0 0
  %3234 = vmatpush1.bf16.msra.mxu0 0
  %3235 = vmatprep.subr.bf16.mxu0 0
  %3236 = vmatpush1.bf16.msra.mxu0 0
  %3237 = vmatprep.subr.bf16.mxu0 0
  %3238 = vmatpush1.bf16.msra.mxu0 0
  %3239 = vmatprep.subr.bf16.mxu0 0
  %3240 = vmatpush1.bf16.msra.mxu0 0
  %3241 = vmatprep.subr.bf16.mxu0 0
  %3242 = vmatpush1.bf16.msra.mxu0 0
  %3243 = vmatprep.subr.bf16.mxu0 0
  %3244 = vmatpush1.bf16.msra.mxu0 0
  %3245 = vmatprep.subr.bf16.mxu0 0
  %3246 = vmatpush1.bf16.msra.mxu0 0
  %3247 = vmatprep.subr.bf16.mxu0 0
  %3248 = vmatpush1.bf16.msra.mxu0 %v197
  %3249 = vmatprep.subr.bf16.mxu0 0
  %3250 = vmatpush2.bf16.msra.mxu0 0
  %3251 = vmatprep.subr.bf16.mxu0 0
  %3252 = vmatpush2.bf16.msra.mxu0 0
  %3253 = vmatprep.subr.bf16.mxu0 0
  %3254 = vmatpush2.bf16.msra.mxu0 0
  %3255 = vmatprep.subr.bf16.mxu0 0
  %3256 = vmatpush2.bf16.msra.mxu0 0
  %3257 = vmatprep.subr.bf16.mxu0 0
  %3258 = vmatpush2.bf16.msra.mxu0 0
  %3259 = vmatprep.subr.bf16.mxu0 0
  %3260 = vmatpush2.bf16.msra.mxu0 0
  %3261 = vmatprep.subr.bf16.mxu0 0
  %3262 = vmatpush2.bf16.msra.mxu0 0
  %3263 = vmatprep.subr.bf16.mxu0 0
  %3264 = vmatpush2.bf16.msra.mxu0 0
  %3265 = vmatprep.mubr.bf16.mxu0 0
  %3266 = vmatmul.mubr.bf16.gmra.mxu0 %v3231
  %v3267 = vpop.f32.mrf.mxu0
  %v3268 = vadd.f32 0.0, %v3267
  %v3269 = vpop.f32.mrf.mxu0
  %v3270 = vpop.f32.mrf.mxu0
  %v3271 = vpop.f32.mrf.mxu0
  %3272 = vdwg.mxu0
  %v3274 = vsel %vm1007, %v3181, 0
  %3276 = vmatprep.subr.bf16.mxu0 0
  %3277 = vmatpush1.bf16.msra.mxu0 0
  %3278 = vmatprep.subr.bf16.mxu0 0
  %3279 = vmatpush1.bf16.msra.mxu0 0
  %3280 = vmatprep.subr.bf16.mxu0 0
  %3281 = vmatpush1.bf16.msra.mxu0 0
  %3282 = vmatprep.subr.bf16.mxu0 0
  %3283 = vmatpush1.bf16.msra.mxu0 0
  %3284 = vmatprep.subr.bf16.mxu0 0
  %3285 = vmatpush1.bf16.msra.mxu0 0
  %3286 = vmatprep.subr.bf16.mxu0 0
  %3287 = vmatpush1.bf16.msra.mxu0 0
  %3288 = vmatprep.subr.bf16.mxu0 0
  %3289 = vmatpush1.bf16.msra.mxu0 0
  %3290 = vmatprep.subr.bf16.mxu0 0
  %3291 = vmatpush1.bf16.msra.mxu0 %v198
  %3292 = vmatprep.subr.bf16.mxu0 0
  %3293 = vmatpush2.bf16.msra.mxu0 0
  %3294 = vmatprep.subr.bf16.mxu0 0
  %3295 = vmatpush2.bf16.msra.mxu0 0
  %3296 = vmatprep.subr.bf16.mxu0 0
  %3297 = vmatpush2.bf16.msra.mxu0 0
  %3298 = vmatprep.subr.bf16.mxu0 0
  %3299 = vmatpush2.bf16.msra.mxu0 0
  %3300 = vmatprep.subr.bf16.mxu0 0
  %3301 = vmatpush2.bf16.msra.mxu0 0
  %3302 = vmatprep.subr.bf16.mxu0 0
  %3303 = vmatpush2.bf16.msra.mxu0 0
  %3304 = vmatprep.subr.bf16.mxu0 0
  %3305 = vmatpush2.bf16.msra.mxu0 0
  %3306 = vmatprep.subr.bf16.mxu0 0
  %3307 = vmatpush2.bf16.msra.mxu0 0
  %3308 = vmatprep.mubr.bf16.mxu0 0
  %3309 = vmatmul.mubr.bf16.gmra.mxu0 %v3274
  %v3310 = vpop.f32.mrf.mxu0
  %v3311 = vadd.f32 0.0, %v3310
  %v3312 = vpop.f32.mrf.mxu0
  %v3313 = vpop.f32.mrf.mxu0
  %v3314 = vpop.f32.mrf.mxu0
  %3315 = vdwg.mxu0
  %v3317 = vsel %vm1007, %v3182, 0
  %3319 = vmatprep.subr.bf16.mxu0 0
  %3320 = vmatpush1.bf16.msra.mxu0 0
  %3321 = vmatprep.subr.bf16.mxu0 0
  %3322 = vmatpush1.bf16.msra.mxu0 0
  %3323 = vmatprep.subr.bf16.mxu0 0
  %3324 = vmatpush1.bf16.msra.mxu0 0
  %3325 = vmatprep.subr.bf16.mxu0 0
  %3326 = vmatpush1.bf16.msra.mxu0 0
  %3327 = vmatprep.subr.bf16.mxu0 0
  %3328 = vmatpush1.bf16.msra.mxu0 0
  %3329 = vmatprep.subr.bf16.mxu0 0
  %3330 = vmatpush1.bf16.msra.mxu0 0
  %3331 = vmatprep.subr.bf16.mxu0 0
  %3332 = vmatpush1.bf16.msra.mxu0 0
  %3333 = vmatprep.subr.bf16.mxu0 0
  %3334 = vmatpush1.bf16.msra.mxu0 %v199
  %3335 = vmatprep.subr.bf16.mxu0 0
  %3336 = vmatpush2.bf16.msra.mxu0 0
  %3337 = vmatprep.subr.bf16.mxu0 0
  %3338 = vmatpush2.bf16.msra.mxu0 0
  %3339 = vmatprep.subr.bf16.mxu0 0
  %3340 = vmatpush2.bf16.msra.mxu0 0
  %3341 = vmatprep.subr.bf16.mxu0 0
  %3342 = vmatpush2.bf16.msra.mxu0 0
  %3343 = vmatprep.subr.bf16.mxu0 0
  %3344 = vmatpush2.bf16.msra.mxu0 0
  %3345 = vmatprep.subr.bf16.mxu0 0
  %3346 = vmatpush2.bf16.msra.mxu0 0
  %3347 = vmatprep.subr.bf16.mxu0 0
  %3348 = vmatpush2.bf16.msra.mxu0 0
  %3349 = vmatprep.subr.bf16.mxu0 0
  %3350 = vmatpush2.bf16.msra.mxu0 0
  %3351 = vmatprep.mubr.bf16.mxu0 0
  %3352 = vmatmul.mubr.bf16.gmra.mxu0 %v3317
  %v3353 = vpop.f32.mrf.mxu0
  %v3354 = vadd.f32 0.0, %v3353
  %v3355 = vpop.f32.mrf.mxu0
  %v3356 = vpop.f32.mrf.mxu0
  %v3357 = vpop.f32.mrf.mxu0
  %3358 = vdwg.mxu0
  %v3360 = vsel %vm1007, %v3183, 0
  %3362 = vmatprep.subr.bf16.mxu0 0
  %3363 = vmatpush1.bf16.msra.mxu0 0
  %3364 = vmatprep.subr.bf16.mxu0 0
  %3365 = vmatpush1.bf16.msra.mxu0 0
  %3366 = vmatprep.subr.bf16.mxu0 0
  %3367 = vmatpush1.bf16.msra.mxu0 0
  %3368 = vmatprep.subr.bf16.mxu0 0
  %3369 = vmatpush1.bf16.msra.mxu0 0
  %3370 = vmatprep.subr.bf16.mxu0 0
  %3371 = vmatpush1.bf16.msra.mxu0 0
  %3372 = vmatprep.subr.bf16.mxu0 0
  %3373 = vmatpush1.bf16.msra.mxu0 0
  %3374 = vmatprep.subr.bf16.mxu0 0
  %3375 = vmatpush1.bf16.msra.mxu0 0
  %3376 = vmatprep.subr.bf16.mxu0 0
  %3377 = vmatpush1.bf16.msra.mxu0 %v200
  %3378 = vmatprep.subr.bf16.mxu0 0
  %3379 = vmatpush2.bf16.msra.mxu0 0
  %3380 = vmatprep.subr.bf16.mxu0 0
  %3381 = vmatpush2.bf16.msra.mxu0 0
  %3382 = vmatprep.subr.bf16.mxu0 0
  %3383 = vmatpush2.bf16.msra.mxu0 0
  %3384 = vmatprep.subr.bf16.mxu0 0
  %3385 = vmatpush2.bf16.msra.mxu0 0
  %3386 = vmatprep.subr.bf16.mxu0 0
  %3387 = vmatpush2.bf16.msra.mxu0 0
  %3388 = vmatprep.subr.bf16.mxu0 0
  %3389 = vmatpush2.bf16.msra.mxu0 0
  %3390 = vmatprep.subr.bf16.mxu0 0
  %3391 = vmatpush2.bf16.msra.mxu0 0
  %3392 = vmatprep.subr.bf16.mxu0 0
  %3393 = vmatpush2.bf16.msra.mxu0 0
  %3394 = vmatprep.mubr.bf16.mxu0 0
  %3395 = vmatmul.mubr.bf16.gmra.mxu0 %v3360
  %v3396 = vpop.f32.mrf.mxu0
  %v3397 = vadd.f32 0.0, %v3396
  %v3398 = vpop.f32.mrf.mxu0
  %v3399 = vpop.f32.mrf.mxu0
  %v3400 = vpop.f32.mrf.mxu0
  %3401 = vdwg.mxu0
  %v3403 = vsel %vm1007, %v3184, 0
  %3405 = vmatprep.subr.bf16.mxu0 0
  %3406 = vmatpush1.bf16.msra.mxu0 0
  %3407 = vmatprep.subr.bf16.mxu0 0
  %3408 = vmatpush1.bf16.msra.mxu0 0
  %3409 = vmatprep.subr.bf16.mxu0 0
  %3410 = vmatpush1.bf16.msra.mxu0 0
  %3411 = vmatprep.subr.bf16.mxu0 0
  %3412 = vmatpush1.bf16.msra.mxu0 0
  %3413 = vmatprep.subr.bf16.mxu0 0
  %3414 = vmatpush1.bf16.msra.mxu0 0
  %3415 = vmatprep.subr.bf16.mxu0 0
  %3416 = vmatpush1.bf16.msra.mxu0 0
  %3417 = vmatprep.subr.bf16.mxu0 0
  %3418 = vmatpush1.bf16.msra.mxu0 0
  %3419 = vmatprep.subr.bf16.mxu0 0
  %3420 = vmatpush1.bf16.msra.mxu0 %v201
  %3421 = vmatprep.subr.bf16.mxu0 0
  %3422 = vmatpush2.bf16.msra.mxu0 0
  %3423 = vmatprep.subr.bf16.mxu0 0
  %3424 = vmatpush2.bf16.msra.mxu0 0
  %3425 = vmatprep.subr.bf16.mxu0 0
  %3426 = vmatpush2.bf16.msra.mxu0 0
  %3427 = vmatprep.subr.bf16.mxu0 0
  %3428 = vmatpush2.bf16.msra.mxu0 0
  %3429 = vmatprep.subr.bf16.mxu0 0
  %3430 = vmatpush2.bf16.msra.mxu0 0
  %3431 = vmatprep.subr.bf16.mxu0 0
  %3432 = vmatpush2.bf16.msra.mxu0 0
  %3433 = vmatprep.subr.bf16.mxu0 0
  %3434 = vmatpush2.bf16.msra.mxu0 0
  %3435 = vmatprep.subr.bf16.mxu0 0
  %3436 = vmatpush2.bf16.msra.mxu0 0
  %3437 = vmatprep.mubr.bf16.mxu0 0
  %3438 = vmatmul.mubr.bf16.gmra.mxu0 %v3403
  %v3439 = vpop.f32.mrf.mxu0
  %v3440 = vadd.f32 0.0, %v3439
  %v3441 = vpop.f32.mrf.mxu0
  %v3442 = vpop.f32.mrf.mxu0
  %v3443 = vpop.f32.mrf.mxu0
  %3444 = vdwg.mxu0
  %v3446 = vsel %vm1007, %v3185, 0
  %3448 = vmatprep.subr.bf16.mxu0 0
  %3449 = vmatpush1.bf16.msra.mxu0 0
  %3450 = vmatprep.subr.bf16.mxu0 0
  %3451 = vmatpush1.bf16.msra.mxu0 0
  %3452 = vmatprep.subr.bf16.mxu0 0
  %3453 = vmatpush1.bf16.msra.mxu0 0
  %3454 = vmatprep.subr.bf16.mxu0 0
  %3455 = vmatpush1.bf16.msra.mxu0 0
  %3456 = vmatprep.subr.bf16.mxu0 0
  %3457 = vmatpush1.bf16.msra.mxu0 0
  %3458 = vmatprep.subr.bf16.mxu0 0
  %3459 = vmatpush1.bf16.msra.mxu0 0
  %3460 = vmatprep.subr.bf16.mxu0 0
  %3461 = vmatpush1.bf16.msra.mxu0 0
  %3462 = vmatprep.subr.bf16.mxu0 0
  %3463 = vmatpush1.bf16.msra.mxu0 %v202
  %3464 = vmatprep.subr.bf16.mxu0 0
  %3465 = vmatpush2.bf16.msra.mxu0 0
  %3466 = vmatprep.subr.bf16.mxu0 0
  %3467 = vmatpush2.bf16.msra.mxu0 0
  %3468 = vmatprep.subr.bf16.mxu0 0
  %3469 = vmatpush2.bf16.msra.mxu0 0
  %3470 = vmatprep.subr.bf16.mxu0 0
  %3471 = vmatpush2.bf16.msra.mxu0 0
  %3472 = vmatprep.subr.bf16.mxu0 0
  %3473 = vmatpush2.bf16.msra.mxu0 0
  %3474 = vmatprep.subr.bf16.mxu0 0
  %3475 = vmatpush2.bf16.msra.mxu0 0
  %3476 = vmatprep.subr.bf16.mxu0 0
  %3477 = vmatpush2.bf16.msra.mxu0 0
  %3478 = vmatprep.subr.bf16.mxu0 0
  %3479 = vmatpush2.bf16.msra.mxu0 0
  %3480 = vmatprep.mubr.bf16.mxu0 0
  %3481 = vmatmul.mubr.bf16.gmra.mxu0 %v3446
  %v3482 = vpop.f32.mrf.mxu0
  %v3483 = vadd.f32 0.0, %v3482
  %v3484 = vpop.f32.mrf.mxu0
  %v3485 = vpop.f32.mrf.mxu0
  %v3486 = vpop.f32.mrf.mxu0
  %3487 = vdwg.mxu0
  %v3489 = vsel %vm1007, %v3186, 0
  %3491 = vmatprep.subr.bf16.mxu0 0
  %3492 = vmatpush1.bf16.msra.mxu0 0
  %3493 = vmatprep.subr.bf16.mxu0 0
  %3494 = vmatpush1.bf16.msra.mxu0 0
  %3495 = vmatprep.subr.bf16.mxu0 0
  %3496 = vmatpush1.bf16.msra.mxu0 0
  %3497 = vmatprep.subr.bf16.mxu0 0
  %3498 = vmatpush1.bf16.msra.mxu0 0
  %3499 = vmatprep.subr.bf16.mxu0 0
  %3500 = vmatpush1.bf16.msra.mxu0 0
  %3501 = vmatprep.subr.bf16.mxu0 0
  %3502 = vmatpush1.bf16.msra.mxu0 0
  %3503 = vmatprep.subr.bf16.mxu0 0
  %3504 = vmatpush1.bf16.msra.mxu0 0
  %3505 = vmatprep.subr.bf16.mxu0 0
  %3506 = vmatpush1.bf16.msra.mxu0 %v203
  %3507 = vmatprep.subr.bf16.mxu0 0
  %3508 = vmatpush2.bf16.msra.mxu0 0
  %3509 = vmatprep.subr.bf16.mxu0 0
  %3510 = vmatpush2.bf16.msra.mxu0 0
  %3511 = vmatprep.subr.bf16.mxu0 0
  %3512 = vmatpush2.bf16.msra.mxu0 0
  %3513 = vmatprep.subr.bf16.mxu0 0
  %3514 = vmatpush2.bf16.msra.mxu0 0
  %3515 = vmatprep.subr.bf16.mxu0 0
  %3516 = vmatpush2.bf16.msra.mxu0 0
  %3517 = vmatprep.subr.bf16.mxu0 0
  %3518 = vmatpush2.bf16.msra.mxu0 0
  %3519 = vmatprep.subr.bf16.mxu0 0
  %3520 = vmatpush2.bf16.msra.mxu0 0
  %3521 = vmatprep.subr.bf16.mxu0 0
  %3522 = vmatpush2.bf16.msra.mxu0 0
  %3523 = vmatprep.mubr.bf16.mxu0 0
  %3524 = vmatmul.mubr.bf16.gmra.mxu0 %v3489
  %v3525 = vpop.f32.mrf.mxu0
  %v3526 = vadd.f32 0.0, %v3525
  %v3527 = vpop.f32.mrf.mxu0
  %v3528 = vpop.f32.mrf.mxu0
  %v3529 = vpop.f32.mrf.mxu0
  %3530 = vdwg.mxu0
  %v3531 = vmul.f32 %v3225, %v18
  %v3532 = vmul.f32 %v3268, %v18
  %v3533 = vmul.f32 %v3311, %v18
  %v3534 = vmul.f32 %v3354, %v18
  %v3535 = vmul.f32 %v3397, %v18
  %v3536 = vmul.f32 %v3440, %v18
  %v3537 = vmul.f32 %v3483, %v18
  %v3538 = vmul.f32 %v3526, %v18
  %v3539 = vsel %vm1360, %v3531, 0.0
  %v3540 = vrot.slane %v3539, 4
  %v3541 = vadd.f32 %v3539, %v3540
  %v3542 = vrot.slane %v3541, 2
  %v3543 = vadd.f32 %v3541, %v3542
  %v3544 = vrot.slane %v3543, 1
  %v3545 = vadd.f32 %v3543, %v3544
  %v3546 = vsel %vm1360, %v3532, 0.0
  %v3547 = vrot.slane %v3546, 4
  %v3548 = vadd.f32 %v3546, %v3547
  %v3549 = vrot.slane %v3548, 2
  %v3550 = vadd.f32 %v3548, %v3549
  %v3551 = vrot.slane %v3550, 1
  %v3552 = vadd.f32 %v3550, %v3551
  %v3553 = vsel %vm1360, %v3533, 0.0
  %v3554 = vrot.slane %v3553, 4
  %v3555 = vadd.f32 %v3553, %v3554
  %v3556 = vrot.slane %v3555, 2
  %v3557 = vadd.f32 %v3555, %v3556
  %v3558 = vrot.slane %v3557, 1
  %v3559 = vadd.f32 %v3557, %v3558
  %v3560 = vsel %vm1360, %v3534, 0.0
  %v3561 = vrot.slane %v3560, 4
  %v3562 = vadd.f32 %v3560, %v3561
  %v3563 = vrot.slane %v3562, 2
  %v3564 = vadd.f32 %v3562, %v3563
  %v3565 = vrot.slane %v3564, 1
  %v3566 = vadd.f32 %v3564, %v3565
  %v3567 = vsel %vm1360, %v3535, 0.0
  %v3568 = vrot.slane %v3567, 4
  %v3569 = vadd.f32 %v3567, %v3568
  %v3570 = vrot.slane %v3569, 2
  %v3571 = vadd.f32 %v3569, %v3570
  %v3572 = vrot.slane %v3571, 1
  %v3573 = vadd.f32 %v3571, %v3572
  %v3574 = vsel %vm1360, %v3536, 0.0
  %v3575 = vrot.slane %v3574, 4
  %v3576 = vadd.f32 %v3574, %v3575
  %v3577 = vrot.slane %v3576, 2
  %v3578 = vadd.f32 %v3576, %v3577
  %v3579 = vrot.slane %v3578, 1
  %v3580 = vadd.f32 %v3578, %v3579
  %v3581 = vsel %vm1360, %v3537, 0.0
  %v3582 = vrot.slane %v3581, 4
  %v3583 = vadd.f32 %v3581, %v3582
  %v3584 = vrot.slane %v3583, 2
  %v3585 = vadd.f32 %v3583, %v3584
  %v3586 = vrot.slane %v3585, 1
  %v3587 = vadd.f32 %v3585, %v3586
  %v3588 = vsel %vm1360, %v3538, 0.0
  %v3589 = vrot.slane %v3588, 4
  %v3590 = vadd.f32 %v3588, %v3589
  %v3591 = vrot.slane %v3590, 2
  %v3592 = vadd.f32 %v3590, %v3591
  %v3593 = vrot.slane %v3592, 1
  %v3594 = vadd.f32 %v3592, %v3593
  %v3595 = vmul.f32 %v3545, %v3545
  %v3596 = vmul.f32 %v3552, %v3552
  %v3597 = vmul.f32 %v3559, %v3559
  %v3598 = vmul.f32 %v3566, %v3566
  %v3599 = vmul.f32 %v3573, %v3573
  %v3600 = vmul.f32 %v3580, %v3580
  %v3601 = vmul.f32 %v3587, %v3587
  %v3602 = vmul.f32 %v3594, %v3594
  %v3611 = vsel %vm301, %v3596, %v3595
  %v3612 = vsel %vm303, %v3597, %v3611
  %v3613 = vsel %vm305, %v3598, %v3612
  %v3614 = vsel %vm307, %v3599, %v3613
  %v3615 = vsel %vm309, %v3600, %v3614
  %v3616 = vsel %vm311, %v3601, %v3615
  %v3617 = vsel %vm313, %v3602, %v3616
  %v3618 = vsel %vm204, %v3617, 0
  %3620 = vmatprep.subr.mxu0 0.0
  %3621 = vmatpush1.msra.mxu0 0.0
  %3622 = vmatprep.subr.mxu0 0.0
  %3623 = vmatpush1.msra.mxu0 0.0
  %3624 = vmatprep.subr.mxu0 0.0
  %3625 = vmatpush1.msra.mxu0 0.0
  %3626 = vmatprep.subr.mxu0 0.0
  %3627 = vmatpush1.msra.mxu0 0.0
  %3628 = vmatprep.subr.mxu0 0.0
  %3629 = vmatpush1.msra.mxu0 0.0
  %3630 = vmatprep.subr.mxu0 0.0
  %3631 = vmatpush1.msra.mxu0 0.0
  %3632 = vmatprep.subr.mxu0 0.0
  %3633 = vmatpush1.msra.mxu0 0.0
  %3634 = vmatprep.subr.mxu0 0.0
  %3635 = vmatpush1.msra.mxu0 0.0
  %3636 = vmatprep.subr.mxu0 0.0
  %3637 = vmatpush1.msra.mxu0 0.0
  %3638 = vmatprep.subr.mxu0 0.0
  %3639 = vmatpush1.msra.mxu0 0.0
  %3640 = vmatprep.subr.mxu0 0.0
  %3641 = vmatpush1.msra.mxu0 0.0
  %3642 = vmatprep.subr.mxu0 0.0
  %3643 = vmatpush1.msra.mxu0 0.0
  %3644 = vmatprep.subr.mxu0 0.0
  %3645 = vmatpush1.msra.mxu0 %v319
  %3646 = vmatprep.subr.mxu0 0.0
  %3647 = vmatpush1.msra.mxu0 %v21
  %3648 = vmatprep.subr.mxu0 0.0
  %3649 = vmatpush1.msra.mxu0 %v20
  %3650 = vmatprep.subr.mxu0 0.0
  %3651 = vmatpush1.msra.mxu0 %v19
  %3652 = vmatprep.subr.mxu0 0.0
  %3653 = vmatpush2.msra.mxu0 0.0
  %3654 = vmatprep.subr.mxu0 0.0
  %3655 = vmatpush2.msra.mxu0 0.0
  %3656 = vmatprep.subr.mxu0 0.0
  %3657 = vmatpush2.msra.mxu0 0.0
  %3658 = vmatprep.subr.mxu0 0.0
  %3659 = vmatpush2.msra.mxu0 0.0
  %3660 = vmatprep.subr.mxu0 0.0
  %3661 = vmatpush2.msra.mxu0 0.0
  %3662 = vmatprep.subr.mxu0 0.0
  %3663 = vmatpush2.msra.mxu0 0.0
  %3664 = vmatprep.subr.mxu0 0.0
  %3665 = vmatpush2.msra.mxu0 0.0
  %3666 = vmatprep.subr.mxu0 0.0
  %3667 = vmatpush2.msra.mxu0 0.0
  %3668 = vmatprep.subr.mxu0 0.0
  %3669 = vmatpush2.msra.mxu0 0.0
  %3670 = vmatprep.subr.mxu0 0.0
  %3671 = vmatpush2.msra.mxu0 0.0
  %3672 = vmatprep.subr.mxu0 0.0
  %3673 = vmatpush2.msra.mxu0 0.0
  %3674 = vmatprep.subr.mxu0 0.0
  %3675 = vmatpush2.msra.mxu0 0.0
  %3676 = vmatprep.subr.mxu0 0.0
  %3677 = vmatpush2.msra.mxu0 0.0
  %3678 = vmatprep.subr.mxu0 0.0
  %3679 = vmatpush2.msra.mxu0 0.0
  %3680 = vmatprep.subr.mxu0 0.0
  %3681 = vmatpush2.msra.mxu0 0.0
  %3682 = vmatprep.subr.mxu0 0.0
  %3683 = vmatpush2.msra.mxu0 0.0
  %3684 = vmatprep.mubr.f32.mxu0 0.0
  %3685 = vmatmul.mubr.f32.gmra.mxu0 %v3618
  %v3686 = vpop.f32.mrf.mxu0
  %v3687 = vadd.f32 1e-07, %v3686
  %v3688 = vpop.f32.mrf.mxu0
  %3689 = vdwg.mxu0
  %v3690 = vrsqrt.pop %v3687
  %v3692 = vsel %vm392, %v3690, 0
  %3694 = vmatprep.subr.mxu0 0.0
  %3695 = vmatpush1.msra.mxu0 0.0
  %3696 = vmatprep.subr.mxu0 0.0
  %3697 = vmatpush1.msra.mxu0 0.0
  %3698 = vmatprep.subr.mxu0 0.0
  %3699 = vmatpush1.msra.mxu0 0.0
  %3700 = vmatprep.subr.mxu0 0.0
  %3701 = vmatpush1.msra.mxu0 0.0
  %3702 = vmatprep.subr.mxu0 0.0
  %3703 = vmatpush1.msra.mxu0 0.0
  %3704 = vmatprep.subr.mxu0 0.0
  %3705 = vmatpush1.msra.mxu0 0.0
  %3706 = vmatprep.subr.mxu0 0.0
  %3707 = vmatpush1.msra.mxu0 0.0
  %3708 = vmatprep.subr.mxu0 0.0
  %3709 = vmatpush1.msra.mxu0 0.0
  %3710 = vmatprep.subr.mxu0 0.0
  %3711 = vmatpush1.msra.mxu0 0.0
  %3712 = vmatprep.subr.mxu0 0.0
  %3713 = vmatpush1.msra.mxu0 0.0
  %3714 = vmatprep.subr.mxu0 0.0
  %3715 = vmatpush1.msra.mxu0 0.0
  %3716 = vmatprep.subr.mxu0 0.0
  %3717 = vmatpush1.msra.mxu0 0.0
  %3718 = vmatprep.subr.mxu0 0.0
  %3719 = vmatpush1.msra.mxu0 0.0
  %3720 = vmatprep.subr.mxu0 0.0
  %3721 = vmatpush1.msra.mxu0 0.0
  %3722 = vmatprep.subr.mxu0 0.0
  %3723 = vmatpush1.msra.mxu0 0.0
  %3724 = vmatprep.subr.mxu0 0.0
  %3725 = vmatpush1.msra.mxu0 %v398
  %3726 = vmatprep.subr.mxu0 0.0
  %3727 = vmatpush2.msra.mxu0 0.0
  %3728 = vmatprep.subr.mxu0 0.0
  %3729 = vmatpush2.msra.mxu0 0.0
  %3730 = vmatprep.subr.mxu0 0.0
  %3731 = vmatpush2.msra.mxu0 0.0
  %3732 = vmatprep.subr.mxu0 0.0
  %3733 = vmatpush2.msra.mxu0 0.0
  %3734 = vmatprep.subr.mxu0 0.0
  %3735 = vmatpush2.msra.mxu0 0.0
  %3736 = vmatprep.subr.mxu0 0.0
  %3737 = vmatpush2.msra.mxu0 0.0
  %3738 = vmatprep.subr.mxu0 0.0
  %3739 = vmatpush2.msra.mxu0 0.0
  %3740 = vmatprep.subr.mxu0 0.0
  %3741 = vmatpush2.msra.mxu0 0.0
  %3742 = vmatprep.subr.mxu0 0.0
  %3743 = vmatpush2.msra.mxu0 0.0
  %3744 = vmatprep.subr.mxu0 0.0
  %3745 = vmatpush2.msra.mxu0 0.0
  %3746 = vmatprep.subr.mxu0 0.0
  %3747 = vmatpush2.msra.mxu0 0.0
  %3748 = vmatprep.subr.mxu0 0.0
  %3749 = vmatpush2.msra.mxu0 0.0
  %3750 = vmatprep.subr.mxu0 0.0
  %3751 = vmatpush2.msra.mxu0 0.0
  %3752 = vmatprep.subr.mxu0 0.0
  %3753 = vmatpush2.msra.mxu0 0.0
  %3754 = vmatprep.subr.mxu0 0.0
  %3755 = vmatpush2.msra.mxu0 0.0
  %3756 = vmatprep.subr.mxu0 0.0
  %3757 = vmatpush2.msra.mxu0 0.0
  %3758 = vmatprep.mubr.f32.mxu0 0.0
  %3759 = vmatmul.mubr.f32.gmra.mxu0 %v3692
  %v3760 = vpop.f32.mrf.mxu0
  %v3761 = vadd.f32 0.0, %v3760
  %v3762 = vpop.f32.mrf.mxu0
  %3763 = vdwg.mxu0
  %v3765 = vrot.slane %v3761, 1
  %v3766 = vrot.slane %v3761, 2
  %v3767 = vrot.slane %v3761, 3
  %v3768 = vrot.slane %v3761, 4
  %v3769 = vrot.slane %v3761, 5
  %v3770 = vrot.slane %v3761, 6
  %v3771 = vrot.slane %v3761, 7
  %v3780 = vmul.f32 %v3545, %v3761
  %v3781 = vmul.f32 %v3552, %v3765
  %v3782 = vmul.f32 %v3559, %v3766
  %v3783 = vmul.f32 %v3566, %v3767
  %v3784 = vmul.f32 %v3573, %v3768
  %v3785 = vmul.f32 %v3580, %v3769
  %v3786 = vmul.f32 %v3587, %v3770
  %v3787 = vmul.f32 %v3594, %v3771
  %v3796 = vrot.slane %v3781, 7
  %v3797 = vsel %vm301, %v3796, %v3780
  %v3798 = vrot.slane %v3782, 6
  %v3799 = vsel %vm303, %v3798, %v3797
  %v3800 = vrot.slane %v3783, 5
  %v3801 = vsel %vm305, %v3800, %v3799
  %v3802 = vrot.slane %v3784, 4
  %v3803 = vsel %vm307, %v3802, %v3801
  %v3804 = vrot.slane %v3785, 3
  %v3805 = vsel %vm309, %v3804, %v3803
  %v3806 = vrot.slane %v3786, 2
  %v3807 = vsel %vm311, %v3806, %v3805
  %v3808 = vrot.slane %v3787, 1
  %v3809 = vsel %vm313, %v3808, %v3807
  %3811 = vst.msk [vmem:[%s4] sm:$0xff] %vm204, %v3809
  // Predicated region
  $region18: #{caps_layer_forward.1} parent=0 // pred_check
    _
  $region19: #{caps_layer_forward.1} parent=0 // pred_check_branch
    %3813 = sbr.rel (0) target = $region21
  $region20: #{caps_layer_forward.1} parent=0 // pred_region
    _
  $region21: #{caps_layer_forward.1} parent=0 // pred_fallthru
    _
  // Predicated region
  $region22: #{caps_layer_forward.1} parent=0 // pred_check
    _
  $region23: #{caps_layer_forward.1} parent=0 // pred_check_branch
    %3815 = sbr.rel (0) target = $region25
  $region24: #{caps_layer_forward.1} parent=0 // pred_region
    _
  $region25: #{caps_layer_forward.1} parent=0 // pred_fallthru
    _

</llo_original>
